<compile_context>
chip_gen: v6e
topology: v6e:2x2x1
jax: 0.10.0
libtpu: 0.0.40
codegen_flags: <defaults>
</compile_context>

<pallas_src>
import functools

import jax
import jax.numpy as jnp
from jax.experimental import pallas as pl
from jax.experimental.pallas import tpu as pltpu

MAX_LENGTH = 8      # config.max_length
IN_CH = 4
HID_CH = 256
FC1_OUT = 512
KSIZE = 3
OUT_PAD = 128       # fc2 output padded to a full lane tile


# ---------------------------------------------------------------------------
# Fused forward kernel (everything VMEM-resident, single grid step)
# ---------------------------------------------------------------------------
def _fused_forward_kernel(x_ref, w1_ref, b1_ref, w2_ref, b2_ref,
                          wf1_ref, bf1_ref, wf2_ref, bf2_ref, o_ref,
                          *, batch, length):
    f32 = jnp.float32
    bf16 = jnp.bfloat16

    def conv3_relu(h, w_taps_ref, b_ref):
        # h: (L*B, Cin) f32 with rows ordered l*B + b.
        # w_taps_ref: (3, Cin, Cout) bf16; tap k multiplies x[l + k - 1] (PyTorch k=0,1,2).
        edge = jnp.zeros((batch, h.shape[1]), f32)
        h_prev = jnp.concatenate([edge, h[:-batch]], axis=0)   # x[l-1], zero at l == 0
        h_next = jnp.concatenate([h[batch:], edge], axis=0)    # x[l+1], zero at l == L-1
        acc = jnp.dot(h_prev.astype(bf16), w_taps_ref[0], preferred_element_type=f32)
        acc += jnp.dot(h.astype(bf16), w_taps_ref[1], preferred_element_type=f32)
        acc += jnp.dot(h_next.astype(bf16), w_taps_ref[2], preferred_element_type=f32)
        return jnp.maximum(acc + b_ref[...], 0.0)

    x = x_ref[...].astype(f32)                   # (L*B, 4)
    h1 = conv3_relu(x, w1_ref, b1_ref)           # (L*B, 256)  conv1 + relu
    h2 = conv3_relu(h1, w2_ref, b2_ref)          # (L*B, 256)  conv2 + relu
    # spatial_dropout / dropout: identity in eval mode.

    # fc1: PyTorch flattens (B, 256, L) channel-major. wf1 was pre-permuted on the host to
    # position-major taps (L, 256, 512), so fc1 == sum_l h2[position l rows] @ wf1[l].
    acc = jnp.zeros((batch, FC1_OUT), f32)
    for l in range(length):                      # static unroll; length is small
        rows = h2[l * batch:(l + 1) * batch, :]  # (B, 256) -- contiguous rows for position l
        acc += jnp.dot(rows.astype(bf16), wf1_ref[l], preferred_element_type=f32)
    f1 = jnp.maximum(acc + bf1_ref[...], 0.0)    # (B, 512)  fc1 + relu

    # fc2 + sigmoid; output padded to 128 lanes for an unmasked, lane-dense store.
    y = jnp.dot(f1.astype(bf16), wf2_ref[...], preferred_element_type=f32) + bf2_ref[...]
    sig = pl.reciprocal(1.0 + jnp.exp(-y), approx=True)   # EUP exp + approx vrcp
    o_ref[...] = jnp.clip(sig, 0.0, 1.0)         # guard approx-reciprocal rounding


def demonstrative_forward(x, kp):
    """x: (B, 4, L) float32 (PyTorch NCL). Returns (B, L) float32 in [0, 1]."""
    B, C, L = x.shape
    # Position-major rows: row = l*B + b (tiny one-time relayout of the input only).
    x_rows = jnp.transpose(x, (2, 0, 1)).reshape(L * B, C).astype(jnp.float32)

    kernel = functools.partial(_fused_forward_kernel, batch=B, length=L)
    out_padded = pl.pallas_call(
        kernel,
        out_shape=jax.ShapeDtypeStruct((B, OUT_PAD), jnp.float32),
        grid_spec=pltpu.PrefetchScalarGridSpec(
            num_scalar_prefetch=0,
            grid=(1,),
            in_specs=[
                pl.BlockSpec(x_rows.shape, lambda i: (0, 0)),
                pl.BlockSpec(kp["w1"].shape, lambda i: (0, 0, 0)),
                pl.BlockSpec(kp["b1"].shape, lambda i: (0, 0)),
                pl.BlockSpec(kp["w2"].shape, lambda i: (0, 0, 0)),
                pl.BlockSpec(kp["b2"].shape, lambda i: (0, 0)),
                pl.BlockSpec(kp["wf1"].shape, lambda i: (0, 0, 0)),
                pl.BlockSpec(kp["bf1"].shape, lambda i: (0, 0)),
                pl.BlockSpec(kp["wf2"].shape, lambda i: (0, 0)),
                pl.BlockSpec(kp["bf2"].shape, lambda i: (0, 0)),
            ],
            out_specs=pl.BlockSpec((B, OUT_PAD), lambda i: (0, 0)),
        ),
        compiler_params=pltpu.CompilerParams(
            dimension_semantics=("arbitrary",)),
    )(x_rows, kp["w1"], kp["b1"], kp["w2"], kp["b2"],
      kp["wf1"], kp["bf1"], kp["wf2"], kp["bf2"])
    return out_padded[:, :L]


# ---------------------------------------------------------------------------
# One-time host-side conversion: PyTorch-layout params -> kernel-ready layout
# ---------------------------------------------------------------------------
def prepare_params(tp, length=MAX_LENGTH):
    bf16 = jnp.bfloat16
    # Conv1d weight (Cout, Cin, K) -> per-tap (K, Cin, Cout), bf16.
    w1 = jnp.transpose(tp["conv1_w"], (2, 1, 0)).astype(bf16)          # (3, 4, 256)
    w2 = jnp.transpose(tp["conv2_w"], (2, 1, 0)).astype(bf16)          # (3, 256, 256)
    # fc1 weight (512, C*L) acts on channel-major flatten (index c*L + l);
    # permute to position-major per-position taps (L, C, 512).
    wf1 = jnp.transpose(tp["fc1_w"].reshape(FC1_OUT, HID_CH, length),
                        (2, 1, 0)).astype(bf16)                        # (L, 256, 512)
    # fc2 weight (L, 512) -> (512, L), pad N up to 128 lanes.
    wf2 = jnp.pad(jnp.transpose(tp["fc2_w"], (1, 0)),
                  ((0, 0), (0, OUT_PAD - length))).astype(bf16)        # (512, 128)
    return {
        "w1": w1, "b1": tp["conv1_b"].reshape(1, -1).astype(jnp.float32),
        "w2": w2, "b2": tp["conv2_b"].reshape(1, -1).astype(jnp.float32),
        "wf1": wf1, "bf1": tp["fc1_b"].reshape(1, -1).astype(jnp.float32),
        "wf2": wf2,
        "bf2": jnp.pad(tp["fc2_b"], (0, OUT_PAD - length)).reshape(1, -1).astype(jnp.float32),
    }


# ---------------------------------------------------------------------------
# Deterministic synthetic params in exact PyTorch layouts
# ---------------------------------------------------------------------------
def init_torch_params(key, length=MAX_LENGTH):
    ks = jax.random.split(key, 8)

    def unif(k, shape, fan_in):
        bound = 1.0 / jnp.sqrt(fan_in)
        return jax.random.uniform(k, shape, jnp.float32, -bound, bound)

    return {
        "conv1_w": unif(ks[0], (HID_CH, IN_CH, KSIZE), IN_CH * KSIZE),
        "conv1_b": unif(ks[1], (HID_CH,), IN_CH * KSIZE),
        "conv2_w": unif(ks[2], (HID_CH, HID_CH, KSIZE), HID_CH * KSIZE),
        "conv2_b": unif(ks[3], (HID_CH,), HID_CH * KSIZE),
        "fc1_w": unif(ks[4], (FC1_OUT, length * HID_CH), length * HID_CH),
        "fc1_b": unif(ks[5], (FC1_OUT,), length * HID_CH),
        "fc2_w": unif(ks[6], (length, FC1_OUT), FC1_OUT),
        "fc2_b": unif(ks[7], (length,), FC1_OUT),
    }


# ---------------------------------------------------------------------------
# Pure-JAX reference (PyTorch semantics, bf16-rounded weights) for a sanity check
# ---------------------------------------------------------------------------
def reference_forward(x, tp):
    q = lambda n: tp[n].astype(jnp.bfloat16).astype(jnp.float32)
    B, C, L = x.shape

    def conv1d_same(h, w, b):
        hp = jnp.pad(h, ((0, 0), (0, 0), (1, 1)))
        out = jnp.zeros((h.shape[0], w.shape[0], L), jnp.float32)
        for k in range(KSIZE):
            out += jnp.einsum("bcl,oc->bol", hp[:, :, k:k + L], w[:, :, k])
        return out + b[None, :, None]

    h1 = jax.nn.relu(conv1d_same(x, q("conv1_w"), tp["conv1_b"]))
    h2 = jax.nn.relu(conv1d_same(h1, q("conv2_w"), tp["conv2_b"]))
    flat = h2.reshape(B, -1)                                   # channel-major flatten
    f1 = jax.nn.relu(flat @ q("fc1_w").T + tp["fc1_b"])
    return jax.nn.sigmoid(f1 @ q("fc2_w").T + tp["fc2_b"])


if __name__ == "__main__":
    key = jax.random.PRNGKey(0)
    pkey, xkey = jax.random.split(key)

    torch_params = init_torch_params(pkey)
    kparams = prepare_params(torch_params)      # one-time layout/bf16 conversion

    B = 2
    x = jax.random.normal(xkey, (B, IN_CH, MAX_LENGTH), jnp.float32)   # NCL like PyTorch

    out = jax.jit(demonstrative_forward)(x, kparams)
    out = jax.block_until_ready(out)

    assert out.shape == (B, MAX_LENGTH)
    assert bool(jnp.all(jnp.isfinite(out)))
    assert bool(jnp.all((out >= 0.0) & (out <= 1.0)))

    ref = reference_forward(x, torch_params)
    max_err = float(jnp.max(jnp.abs(out - ref)))
    assert max_err < 5e-2, f"mismatch vs reference: {max_err}"

    print("KERNEL_OK")
</pallas_src>

<mosaic_0001>
module attributes {stable_mosaic.version = 11 : i64} {
  func.func @_fused_forward_kernel(%arg0: i32, %arg1: memref<16x4xf32, #tpu.memory_space<vmem>>, %arg2: memref<3x4x256xbf16, #tpu.memory_space<vmem>>, %arg3: memref<1x256xf32, #tpu.memory_space<vmem>>, %arg4: memref<3x256x256xbf16, #tpu.memory_space<vmem>>, %arg5: memref<1x256xf32, #tpu.memory_space<vmem>>, %arg6: memref<8x256x512xbf16, #tpu.memory_space<vmem>>, %arg7: memref<1x512xf32, #tpu.memory_space<vmem>>, %arg8: memref<512x128xbf16, #tpu.memory_space<vmem>>, %arg9: memref<1x128xf32, #tpu.memory_space<vmem>>, %arg10: memref<2x128xf32, #tpu.memory_space<vmem>>) attributes {dimension_semantics = [#tpu.dimension_semantics<arbitrary>], iteration_bounds = array<i64: 1>, scalar_prefetch = 0 : i64, scratch_operands = 0 : i64, tpu.core_type = #tpu.core_type<tc>, window_params = [{pipeline_mode = #tpu.pipeline_mode<synchronous>, transform_indices = @transform_0, window_bounds = array<i64: 16, 4>}, {pipeline_mode = #tpu.pipeline_mode<synchronous>, transform_indices = @transform_1, window_bounds = array<i64: 3, 4, 256>}, {pipeline_mode = #tpu.pipeline_mode<synchronous>, transform_indices = @transform_2, window_bounds = array<i64: 1, 256>}, {pipeline_mode = #tpu.pipeline_mode<synchronous>, transform_indices = @transform_3, window_bounds = array<i64: 3, 256, 256>}, {pipeline_mode = #tpu.pipeline_mode<synchronous>, transform_indices = @transform_4, window_bounds = array<i64: 1, 256>}, {pipeline_mode = #tpu.pipeline_mode<synchronous>, transform_indices = @transform_5, window_bounds = array<i64: 8, 256, 512>}, {pipeline_mode = #tpu.pipeline_mode<synchronous>, transform_indices = @transform_6, window_bounds = array<i64: 1, 512>}, {pipeline_mode = #tpu.pipeline_mode<synchronous>, transform_indices = @transform_7, window_bounds = array<i64: 512, 128>}, {pipeline_mode = #tpu.pipeline_mode<synchronous>, transform_indices = @transform_8, window_bounds = array<i64: 1, 128>}, {pipeline_mode = #tpu.pipeline_mode<synchronous>, transform_indices = @transform_9, window_bounds = array<i64: 2, 128>}]} {
    %c0 = arith.constant 0 : index
    %c0_0 = arith.constant 0 : index
    %0 = vector.load %arg1[%c0, %c0_0] : memref<16x4xf32, #tpu.memory_space<vmem>>, vector<16x4xf32>
    %cst = arith.constant 0.000000e+00 : f32
    %1 = vector.broadcast %cst : f32 to vector<2x4xf32>
    %2 = vector.extract_strided_slice %0 {offsets = [0, 0], sizes = [14, 4], strides = [1, 1]} : vector<16x4xf32> to vector<14x4xf32>
    %3 = tpu.concatenate %1, %2 in 0 : vector<2x4xf32>, vector<14x4xf32> -> vector<16x4xf32>
    %4 = vector.extract_strided_slice %0 {offsets = [2, 0], sizes = [14, 4], strides = [1, 1]} : vector<16x4xf32> to vector<14x4xf32>
    %5 = tpu.concatenate %4, %1 in 0 : vector<14x4xf32>, vector<2x4xf32> -> vector<16x4xf32>
    %6 = arith.truncf %3 : vector<16x4xf32> to vector<16x4xbf16>
    %c0_1 = arith.constant 0 : index
    %c0_2 = arith.constant 0 : index
    %c0_3 = arith.constant 0 : index
    %7 = vector.load %arg2[%c0_1, %c0_2, %c0_3] : memref<3x4x256xbf16, #tpu.memory_space<vmem>>, vector<1x4x256xbf16>
    %8 = vector.shape_cast %7 : vector<1x4x256xbf16> to vector<4x256xbf16>
    %cst_4 = arith.constant dense<0.000000e+00> : vector<16x256xf32>
    %9 = tpu.matmul %6, %8, %cst_4 {dimension_numbers = #tpu.dot_dimension_numbers<[1], [0], [0], [1], [0, 0, 1, 1], [], []>} : vector<16x4xbf16>, vector<4x256xbf16>, vector<16x256xf32> -> vector<16x256xf32>
    %10 = arith.truncf %0 : vector<16x4xf32> to vector<16x4xbf16>
    %c1 = arith.constant 1 : index
    %c0_5 = arith.constant 0 : index
    %c0_6 = arith.constant 0 : index
    %11 = vector.load %arg2[%c1, %c0_5, %c0_6] : memref<3x4x256xbf16, #tpu.memory_space<vmem>>, vector<1x4x256xbf16>
    %12 = vector.shape_cast %11 : vector<1x4x256xbf16> to vector<4x256xbf16>
    %cst_7 = arith.constant dense<0.000000e+00> : vector<16x256xf32>
    %13 = tpu.matmul %10, %12, %cst_7 {dimension_numbers = #tpu.dot_dimension_numbers<[1], [0], [0], [1], [0, 0, 1, 1], [], []>} : vector<16x4xbf16>, vector<4x256xbf16>, vector<16x256xf32> -> vector<16x256xf32>
    %14 = arith.addf %9, %13 : vector<16x256xf32>
    %15 = arith.truncf %5 : vector<16x4xf32> to vector<16x4xbf16>
    %c2 = arith.constant 2 : index
    %c0_8 = arith.constant 0 : index
    %c0_9 = arith.constant 0 : index
    %16 = vector.load %arg2[%c2, %c0_8, %c0_9] : memref<3x4x256xbf16, #tpu.memory_space<vmem>>, vector<1x4x256xbf16>
    %17 = vector.shape_cast %16 : vector<1x4x256xbf16> to vector<4x256xbf16>
    %cst_10 = arith.constant dense<0.000000e+00> : vector<16x256xf32>
    %18 = tpu.matmul %15, %17, %cst_10 {dimension_numbers = #tpu.dot_dimension_numbers<[1], [0], [0], [1], [0, 0, 1, 1], [], []>} : vector<16x4xbf16>, vector<4x256xbf16>, vector<16x256xf32> -> vector<16x256xf32>
    %19 = arith.addf %14, %18 : vector<16x256xf32>
    %c0_11 = arith.constant 0 : index
    %c0_12 = arith.constant 0 : index
    %20 = vector.load %arg3[%c0_11, %c0_12] : memref<1x256xf32, #tpu.memory_space<vmem>>, vector<1x256xf32>
    %21 = vector.broadcast %20 : vector<1x256xf32> to vector<16x256xf32>
    %22 = arith.addf %19, %21 : vector<16x256xf32>
    %cst_13 = arith.constant 0.000000e+00 : f32
    %23 = vector.broadcast %cst_13 : f32 to vector<16x256xf32>
    %24 = arith.maximumf %22, %23 : vector<16x256xf32>
    %cst_14 = arith.constant 0.000000e+00 : f32
    %25 = vector.broadcast %cst_14 : f32 to vector<2x256xf32>
    %26 = vector.extract_strided_slice %24 {offsets = [0, 0], sizes = [14, 256], strides = [1, 1]} : vector<16x256xf32> to vector<14x256xf32>
    %27 = tpu.concatenate %25, %26 in 0 : vector<2x256xf32>, vector<14x256xf32> -> vector<16x256xf32>
    %28 = vector.extract_strided_slice %24 {offsets = [2, 0], sizes = [14, 256], strides = [1, 1]} : vector<16x256xf32> to vector<14x256xf32>
    %29 = tpu.concatenate %28, %25 in 0 : vector<14x256xf32>, vector<2x256xf32> -> vector<16x256xf32>
    %30 = arith.truncf %27 : vector<16x256xf32> to vector<16x256xbf16>
    %c0_15 = arith.constant 0 : index
    %c0_16 = arith.constant 0 : index
    %c0_17 = arith.constant 0 : index
    %31 = vector.load %arg4[%c0_15, %c0_16, %c0_17] : memref<3x256x256xbf16, #tpu.memory_space<vmem>>, vector<1x256x256xbf16>
    %32 = vector.shape_cast %31 : vector<1x256x256xbf16> to vector<256x256xbf16>
    %cst_18 = arith.constant dense<0.000000e+00> : vector<16x256xf32>
    %33 = tpu.matmul %30, %32, %cst_18 {dimension_numbers = #tpu.dot_dimension_numbers<[1], [0], [0], [1], [0, 0, 1, 1], [], []>} : vector<16x256xbf16>, vector<256x256xbf16>, vector<16x256xf32> -> vector<16x256xf32>
    %34 = arith.truncf %24 : vector<16x256xf32> to vector<16x256xbf16>
    %c1_19 = arith.constant 1 : index
    %c0_20 = arith.constant 0 : index
    %c0_21 = arith.constant 0 : index
    %35 = vector.load %arg4[%c1_19, %c0_20, %c0_21] : memref<3x256x256xbf16, #tpu.memory_space<vmem>>, vector<1x256x256xbf16>
    %36 = vector.shape_cast %35 : vector<1x256x256xbf16> to vector<256x256xbf16>
    %cst_22 = arith.constant dense<0.000000e+00> : vector<16x256xf32>
    %37 = tpu.matmul %34, %36, %cst_22 {dimension_numbers = #tpu.dot_dimension_numbers<[1], [0], [0], [1], [0, 0, 1, 1], [], []>} : vector<16x256xbf16>, vector<256x256xbf16>, vector<16x256xf32> -> vector<16x256xf32>
    %38 = arith.addf %33, %37 : vector<16x256xf32>
    %39 = arith.truncf %29 : vector<16x256xf32> to vector<16x256xbf16>
    %c2_23 = arith.constant 2 : index
    %c0_24 = arith.constant 0 : index
    %c0_25 = arith.constant 0 : index
    %40 = vector.load %arg4[%c2_23, %c0_24, %c0_25] : memref<3x256x256xbf16, #tpu.memory_space<vmem>>, vector<1x256x256xbf16>
    %41 = vector.shape_cast %40 : vector<1x256x256xbf16> to vector<256x256xbf16>
    %cst_26 = arith.constant dense<0.000000e+00> : vector<16x256xf32>
    %42 = tpu.matmul %39, %41, %cst_26 {dimension_numbers = #tpu.dot_dimension_numbers<[1], [0], [0], [1], [0, 0, 1, 1], [], []>} : vector<16x256xbf16>, vector<256x256xbf16>, vector<16x256xf32> -> vector<16x256xf32>
    %43 = arith.addf %38, %42 : vector<16x256xf32>
    %c0_27 = arith.constant 0 : index
    %c0_28 = arith.constant 0 : index
    %44 = vector.load %arg5[%c0_27, %c0_28] : memref<1x256xf32, #tpu.memory_space<vmem>>, vector<1x256xf32>
    %45 = vector.broadcast %44 : vector<1x256xf32> to vector<16x256xf32>
    %46 = arith.addf %43, %45 : vector<16x256xf32>
    %cst_29 = arith.constant 0.000000e+00 : f32
    %47 = vector.broadcast %cst_29 : f32 to vector<16x256xf32>
    %48 = arith.maximumf %46, %47 : vector<16x256xf32>
    %cst_30 = arith.constant 0.000000e+00 : f32
    %49 = vector.broadcast %cst_30 : f32 to vector<2x512xf32>
    %50 = vector.extract_strided_slice %48 {offsets = [0, 0], sizes = [2, 256], strides = [1, 1]} : vector<16x256xf32> to vector<2x256xf32>
    %51 = arith.truncf %50 : vector<2x256xf32> to vector<2x256xbf16>
    %c0_31 = arith.constant 0 : index
    %c0_32 = arith.constant 0 : index
    %c0_33 = arith.constant 0 : index
    %52 = vector.load %arg6[%c0_31, %c0_32, %c0_33] : memref<8x256x512xbf16, #tpu.memory_space<vmem>>, vector<1x256x512xbf16>
    %53 = vector.shape_cast %52 : vector<1x256x512xbf16> to vector<256x512xbf16>
    %cst_34 = arith.constant dense<0.000000e+00> : vector<2x512xf32>
    %54 = tpu.matmul %51, %53, %cst_34 {dimension_numbers = #tpu.dot_dimension_numbers<[1], [0], [0], [1], [0, 0, 1, 1], [], []>} : vector<2x256xbf16>, vector<256x512xbf16>, vector<2x512xf32> -> vector<2x512xf32>
    %55 = arith.addf %49, %54 : vector<2x512xf32>
    %56 = vector.extract_strided_slice %48 {offsets = [2, 0], sizes = [2, 256], strides = [1, 1]} : vector<16x256xf32> to vector<2x256xf32>
    %57 = arith.truncf %56 : vector<2x256xf32> to vector<2x256xbf16>
    %c1_35 = arith.constant 1 : index
    %c0_36 = arith.constant 0 : index
    %c0_37 = arith.constant 0 : index
    %58 = vector.load %arg6[%c1_35, %c0_36, %c0_37] : memref<8x256x512xbf16, #tpu.memory_space<vmem>>, vector<1x256x512xbf16>
    %59 = vector.shape_cast %58 : vector<1x256x512xbf16> to vector<256x512xbf16>
    %cst_38 = arith.constant dense<0.000000e+00> : vector<2x512xf32>
    %60 = tpu.matmul %57, %59, %cst_38 {dimension_numbers = #tpu.dot_dimension_numbers<[1], [0], [0], [1], [0, 0, 1, 1], [], []>} : vector<2x256xbf16>, vector<256x512xbf16>, vector<2x512xf32> -> vector<2x512xf32>
    %61 = arith.addf %55, %60 : vector<2x512xf32>
    %62 = vector.extract_strided_slice %48 {offsets = [4, 0], sizes = [2, 256], strides = [1, 1]} : vector<16x256xf32> to vector<2x256xf32>
    %63 = arith.truncf %62 : vector<2x256xf32> to vector<2x256xbf16>
    %c2_39 = arith.constant 2 : index
    %c0_40 = arith.constant 0 : index
    %c0_41 = arith.constant 0 : index
    %64 = vector.load %arg6[%c2_39, %c0_40, %c0_41] : memref<8x256x512xbf16, #tpu.memory_space<vmem>>, vector<1x256x512xbf16>
    %65 = vector.shape_cast %64 : vector<1x256x512xbf16> to vector<256x512xbf16>
    %cst_42 = arith.constant dense<0.000000e+00> : vector<2x512xf32>
    %66 = tpu.matmul %63, %65, %cst_42 {dimension_numbers = #tpu.dot_dimension_numbers<[1], [0], [0], [1], [0, 0, 1, 1], [], []>} : vector<2x256xbf16>, vector<256x512xbf16>, vector<2x512xf32> -> vector<2x512xf32>
    %67 = arith.addf %61, %66 : vector<2x512xf32>
    %68 = vector.extract_strided_slice %48 {offsets = [6, 0], sizes = [2, 256], strides = [1, 1]} : vector<16x256xf32> to vector<2x256xf32>
    %69 = arith.truncf %68 : vector<2x256xf32> to vector<2x256xbf16>
    %c3 = arith.constant 3 : index
    %c0_43 = arith.constant 0 : index
    %c0_44 = arith.constant 0 : index
    %70 = vector.load %arg6[%c3, %c0_43, %c0_44] : memref<8x256x512xbf16, #tpu.memory_space<vmem>>, vector<1x256x512xbf16>
    %71 = vector.shape_cast %70 : vector<1x256x512xbf16> to vector<256x512xbf16>
    %cst_45 = arith.constant dense<0.000000e+00> : vector<2x512xf32>
    %72 = tpu.matmul %69, %71, %cst_45 {dimension_numbers = #tpu.dot_dimension_numbers<[1], [0], [0], [1], [0, 0, 1, 1], [], []>} : vector<2x256xbf16>, vector<256x512xbf16>, vector<2x512xf32> -> vector<2x512xf32>
    %73 = arith.addf %67, %72 : vector<2x512xf32>
    %74 = vector.extract_strided_slice %48 {offsets = [8, 0], sizes = [2, 256], strides = [1, 1]} : vector<16x256xf32> to vector<2x256xf32>
    %75 = arith.truncf %74 : vector<2x256xf32> to vector<2x256xbf16>
    %c4 = arith.constant 4 : index
    %c0_46 = arith.constant 0 : index
    %c0_47 = arith.constant 0 : index
    %76 = vector.load %arg6[%c4, %c0_46, %c0_47] : memref<8x256x512xbf16, #tpu.memory_space<vmem>>, vector<1x256x512xbf16>
    %77 = vector.shape_cast %76 : vector<1x256x512xbf16> to vector<256x512xbf16>
    %cst_48 = arith.constant dense<0.000000e+00> : vector<2x512xf32>
    %78 = tpu.matmul %75, %77, %cst_48 {dimension_numbers = #tpu.dot_dimension_numbers<[1], [0], [0], [1], [0, 0, 1, 1], [], []>} : vector<2x256xbf16>, vector<256x512xbf16>, vector<2x512xf32> -> vector<2x512xf32>
    %79 = arith.addf %73, %78 : vector<2x512xf32>
    %80 = vector.extract_strided_slice %48 {offsets = [10, 0], sizes = [2, 256], strides = [1, 1]} : vector<16x256xf32> to vector<2x256xf32>
    %81 = arith.truncf %80 : vector<2x256xf32> to vector<2x256xbf16>
    %c5 = arith.constant 5 : index
    %c0_49 = arith.constant 0 : index
    %c0_50 = arith.constant 0 : index
    %82 = vector.load %arg6[%c5, %c0_49, %c0_50] : memref<8x256x512xbf16, #tpu.memory_space<vmem>>, vector<1x256x512xbf16>
    %83 = vector.shape_cast %82 : vector<1x256x512xbf16> to vector<256x512xbf16>
    %cst_51 = arith.constant dense<0.000000e+00> : vector<2x512xf32>
    %84 = tpu.matmul %81, %83, %cst_51 {dimension_numbers = #tpu.dot_dimension_numbers<[1], [0], [0], [1], [0, 0, 1, 1], [], []>} : vector<2x256xbf16>, vector<256x512xbf16>, vector<2x512xf32> -> vector<2x512xf32>
    %85 = arith.addf %79, %84 : vector<2x512xf32>
    %86 = vector.extract_strided_slice %48 {offsets = [12, 0], sizes = [2, 256], strides = [1, 1]} : vector<16x256xf32> to vector<2x256xf32>
    %87 = arith.truncf %86 : vector<2x256xf32> to vector<2x256xbf16>
    %c6 = arith.constant 6 : index
    %c0_52 = arith.constant 0 : index
    %c0_53 = arith.constant 0 : index
    %88 = vector.load %arg6[%c6, %c0_52, %c0_53] : memref<8x256x512xbf16, #tpu.memory_space<vmem>>, vector<1x256x512xbf16>
    %89 = vector.shape_cast %88 : vector<1x256x512xbf16> to vector<256x512xbf16>
    %cst_54 = arith.constant dense<0.000000e+00> : vector<2x512xf32>
    %90 = tpu.matmul %87, %89, %cst_54 {dimension_numbers = #tpu.dot_dimension_numbers<[1], [0], [0], [1], [0, 0, 1, 1], [], []>} : vector<2x256xbf16>, vector<256x512xbf16>, vector<2x512xf32> -> vector<2x512xf32>
    %91 = arith.addf %85, %90 : vector<2x512xf32>
    %92 = vector.extract_strided_slice %48 {offsets = [14, 0], sizes = [2, 256], strides = [1, 1]} : vector<16x256xf32> to vector<2x256xf32>
    %93 = arith.truncf %92 : vector<2x256xf32> to vector<2x256xbf16>
    %c7 = arith.constant 7 : index
    %c0_55 = arith.constant 0 : index
    %c0_56 = arith.constant 0 : index
    %94 = vector.load %arg6[%c7, %c0_55, %c0_56] : memref<8x256x512xbf16, #tpu.memory_space<vmem>>, vector<1x256x512xbf16>
    %95 = vector.shape_cast %94 : vector<1x256x512xbf16> to vector<256x512xbf16>
    %cst_57 = arith.constant dense<0.000000e+00> : vector<2x512xf32>
    %96 = tpu.matmul %93, %95, %cst_57 {dimension_numbers = #tpu.dot_dimension_numbers<[1], [0], [0], [1], [0, 0, 1, 1], [], []>} : vector<2x256xbf16>, vector<256x512xbf16>, vector<2x512xf32> -> vector<2x512xf32>
    %97 = arith.addf %91, %96 : vector<2x512xf32>
    %c0_58 = arith.constant 0 : index
    %c0_59 = arith.constant 0 : index
    %98 = vector.load %arg7[%c0_58, %c0_59] : memref<1x512xf32, #tpu.memory_space<vmem>>, vector<1x512xf32>
    %99 = vector.broadcast %98 : vector<1x512xf32> to vector<2x512xf32>
    %100 = arith.addf %97, %99 : vector<2x512xf32>
    %cst_60 = arith.constant 0.000000e+00 : f32
    %101 = vector.broadcast %cst_60 : f32 to vector<2x512xf32>
    %102 = arith.maximumf %100, %101 : vector<2x512xf32>
    %103 = arith.truncf %102 : vector<2x512xf32> to vector<2x512xbf16>
    %c0_61 = arith.constant 0 : index
    %c0_62 = arith.constant 0 : index
    %104 = vector.load %arg8[%c0_61, %c0_62] : memref<512x128xbf16, #tpu.memory_space<vmem>>, vector<512x128xbf16>
    %cst_63 = arith.constant dense<0.000000e+00> : vector<2x128xf32>
    %105 = tpu.matmul %103, %104, %cst_63 {dimension_numbers = #tpu.dot_dimension_numbers<[1], [0], [0], [1], [0, 0, 1, 1], [], []>} : vector<2x512xbf16>, vector<512x128xbf16>, vector<2x128xf32> -> vector<2x128xf32>
    %c0_64 = arith.constant 0 : index
    %c0_65 = arith.constant 0 : index
    %106 = vector.load %arg9[%c0_64, %c0_65] : memref<1x128xf32, #tpu.memory_space<vmem>>, vector<1x128xf32>
    %107 = vector.broadcast %106 : vector<1x128xf32> to vector<2x128xf32>
    %108 = arith.addf %105, %107 : vector<2x128xf32>
    %cst_66 = arith.constant 0.000000e+00 : f32
    %109 = vector.broadcast %cst_66 : f32 to vector<2x128xf32>
    %110 = arith.subf %109, %108 : vector<2x128xf32>
    %111 = math.exp %110 : vector<2x128xf32>
    %cst_67 = arith.constant 1.000000e+00 : f32
    %112 = vector.broadcast %cst_67 : f32 to vector<2x128xf32>
    %113 = arith.addf %112, %111 : vector<2x128xf32>
    %114 = tpu.reciprocal %113 {approx = true} : vector<2x128xf32> -> vector<2x128xf32>
    %cst_68 = arith.constant 0.000000e+00 : f32
    %cst_69 = arith.constant 1.000000e+00 : f32
    %115 = vector.broadcast %cst_68 : f32 to vector<2x128xf32>
    %116 = arith.maximumf %115, %114 : vector<2x128xf32>
    %117 = vector.broadcast %cst_69 : f32 to vector<2x128xf32>
    %118 = arith.minimumf %117, %116 : vector<2x128xf32>
    %c0_70 = arith.constant 0 : index
    %c0_71 = arith.constant 0 : index
    %119 = vector.load %arg10[%c0_70, %c0_71] : memref<2x128xf32, #tpu.memory_space<vmem>>, vector<2x128xf32>
    tpu.vector_store %arg10[%c0_70, %c0_71], %118 {strides = array<i32>} : memref<2x128xf32, #tpu.memory_space<vmem>>, vector<2x128xf32>,
    return
  }
  func.func @transform_0(%arg0: i32) -> (i32, i32) {
    %c0_i32 = arith.constant 0 : i32
    %c0_i32_0 = arith.constant 0 : i32
    %c0_i32_1 = arith.constant 0 : i32
    return %c0_i32, %c0_i32_0 : i32, i32
  }
  func.func @transform_1(%arg0: i32) -> (i32, i32, i32) {
    %c0_i32 = arith.constant 0 : i32
    %c0_i32_0 = arith.constant 0 : i32
    %c0_i32_1 = arith.constant 0 : i32
    %c0_i32_2 = arith.constant 0 : i32
    return %c0_i32, %c0_i32_0, %c0_i32_1 : i32, i32, i32
  }
  func.func @transform_2(%arg0: i32) -> (i32, i32) {
    %c0_i32 = arith.constant 0 : i32
    %c0_i32_0 = arith.constant 0 : i32
    %c0_i32_1 = arith.constant 0 : i32
    return %c0_i32, %c0_i32_0 : i32, i32
  }
  func.func @transform_3(%arg0: i32) -> (i32, i32, i32) {
    %c0_i32 = arith.constant 0 : i32
    %c0_i32_0 = arith.constant 0 : i32
    %c0_i32_1 = arith.constant 0 : i32
    %c0_i32_2 = arith.constant 0 : i32
    return %c0_i32, %c0_i32_0, %c0_i32_1 : i32, i32, i32
  }
  func.func @transform_4(%arg0: i32) -> (i32, i32) {
    %c0_i32 = arith.constant 0 : i32
    %c0_i32_0 = arith.constant 0 : i32
    %c0_i32_1 = arith.constant 0 : i32
    return %c0_i32, %c0_i32_0 : i32, i32
  }
  func.func @transform_5(%arg0: i32) -> (i32, i32, i32) {
    %c0_i32 = arith.constant 0 : i32
    %c0_i32_0 = arith.constant 0 : i32
    %c0_i32_1 = arith.constant 0 : i32
    %c0_i32_2 = arith.constant 0 : i32
    return %c0_i32, %c0_i32_0, %c0_i32_1 : i32, i32, i32
  }
  func.func @transform_6(%arg0: i32) -> (i32, i32) {
    %c0_i32 = arith.constant 0 : i32
    %c0_i32_0 = arith.constant 0 : i32
    %c0_i32_1 = arith.constant 0 : i32
    return %c0_i32, %c0_i32_0 : i32, i32
  }
  func.func @transform_7(%arg0: i32) -> (i32, i32) {
    %c0_i32 = arith.constant 0 : i32
    %c0_i32_0 = arith.constant 0 : i32
    %c0_i32_1 = arith.constant 0 : i32
    return %c0_i32, %c0_i32_0 : i32, i32
  }
  func.func @transform_8(%arg0: i32) -> (i32, i32) {
    %c0_i32 = arith.constant 0 : i32
    %c0_i32_0 = arith.constant 0 : i32
    %c0_i32_1 = arith.constant 0 : i32
    return %c0_i32, %c0_i32_0 : i32, i32
  }
  func.func @transform_9(%arg0: i32) -> (i32, i32) {
    %c0_i32 = arith.constant 0 : i32
    %c0_i32_0 = arith.constant 0 : i32
    %c0_i32_1 = arith.constant 0 : i32
    return %c0_i32, %c0_i32_0 : i32, i32
  }
}

</mosaic_0001>

<llo_original>
// kernel: demonstrative_forward.1
$region0: #{demonstrative_forward.1}
  #allocation0 [shape = 'u32[]', space=smem, size = 0x4, offset = 0x4, fixed_abs, tag = 'smem constant byte address 0x4 - core index']
  #allocation1 [shape = 'u32[144,128]{1,0:T(1,128)}', space=vmem, size = 0x12000, scoped, tag = 'internal scratch']
  %s0 = inlined_call_operand.vmem [shape: f32[16,4], index: 0, kind: input, shape index: {}]
  %s1 = inlined_call_operand.hbm [shape: bf16[3,4,256], index: 1, kind: input, shape index: {}]
  %s2 = inlined_call_operand.hbm [shape: f32[1,256], index: 2, kind: input, shape index: {}]
  %s3 = inlined_call_operand.hbm [shape: bf16[3,256,256], index: 3, kind: input, shape index: {}]
  %s4 = inlined_call_operand.hbm [shape: f32[1,256], index: 4, kind: input, shape index: {}]
  %s5 = inlined_call_operand.hbm [shape: bf16[8,256,512], index: 5, kind: input, shape index: {}]
  %s6 = inlined_call_operand.hbm [shape: f32[1,512], index: 6, kind: input, shape index: {}]
  %s7 = inlined_call_operand.hbm [shape: bf16[512,128], index: 7, kind: input, shape index: {}]
  %s8 = inlined_call_operand.hbm [shape: f32[1,128], index: 8, kind: input, shape index: {}]
  %s9 = inlined_call_operand.hbm [shape: f32[2,128], index: 9, kind: output, shape index: {}]
  %s10 = sld [smem:[#allocation0]]
  $region78: #{demonstrative_forward.1} parent=0
    _
  %s12 = ssub.s32 1, %s10
  %s13 = scalar_select 0, %s12, %s10
  $region1: #{demonstrative_forward.1} parent=0
    #allocation2 [shape = 'u8[6144]{0}', space=vmem, size = 0x1800, scoped, tag = 'input window, operand 1, single buffered']
    #allocation3 [shape = 's32[1]{0}', space=sflag, size = 0x4, scoped, tag = 'scoped memory for demonstrative_forward.1']
    #allocation4 [shape = 's32[1]{0}', space=sflag, size = 0x4, scoped, tag = 'scoped memory for demonstrative_forward.1']
    #allocation5 [shape = 'u8[1024]{0}', space=vmem, size = 0x400, scoped, tag = 'input window, operand 2, single buffered']
    #allocation6 [shape = 's32[1]{0}', space=sflag, size = 0x4, scoped, tag = 'scoped memory for demonstrative_forward.1']
    #allocation7 [shape = 'u8[393216]{0}', space=vmem, size = 0x60000, scoped, tag = 'input window, operand 3, single buffered']
    #allocation8 [shape = 'u8[1024]{0}', space=vmem, size = 0x400, scoped, tag = 'input window, operand 4, single buffered']
    #allocation9 [shape = 's32[1]{0}', space=sflag, size = 0x4, scoped, tag = 'scoped memory for demonstrative_forward.1']
    #allocation10 [shape = 'u8[2097152]{0}', space=vmem, size = 0x200000, scoped, tag = 'input window, operand 5, single buffered']
    #allocation11 [shape = 'u8[2048]{0}', space=vmem, size = 0x800, scoped, tag = 'input window, operand 6, single buffered']
    #allocation12 [shape = 's32[1]{0}', space=sflag, size = 0x4, scoped, tag = 'scoped memory for demonstrative_forward.1']
    #allocation13 [shape = 'u8[131072]{0}', space=vmem, size = 0x20000, scoped, tag = 'input window, operand 7, single buffered']
    #allocation14 [shape = 'u8[512]{0}', space=vmem, size = 0x400, scoped, tag = 'input window, operand 8, single buffered']
    #allocation15 [shape = 's32[1]{0}', space=sflag, size = 0x4, scoped, tag = 'scoped memory for demonstrative_forward.1']
    #allocation16 [shape = 'u8[1024]{0}', space=vmem, size = 0x400, scoped, tag = 'output window, operand 0, single buffered']
    %14 = vsyncpa [#allocation3], 0
    %15 = vsyncpa [#allocation6], 0
    %16 = vsyncpa [#allocation9], 0
    %17 = vsyncpa [#allocation12], 0
    %18 = vsyncpa [#allocation15], 0
    %19 = vsyncpa [#allocation4], 0
    // Predicated region
    $region2: #{demonstrative_forward.1} parent=1 // pred_check
      _
    $region3: #{demonstrative_forward.1} parent=1 // pred_check_branch
      %21 = sbr.rel (0) target = $region5
    $region4: #{demonstrative_forward.1} parent=1 // pred_region
      _
    $region5: #{demonstrative_forward.1} parent=1 // pred_fallthru
      _
    // Predicated region
    $region6: #{demonstrative_forward.1} parent=1 // pred_check
      _
    $region7: #{demonstrative_forward.1} parent=1 // pred_check_branch
      %23 = sbr.rel (0) target = $region9
    $region8: #{demonstrative_forward.1} parent=1 // pred_region
      %s25 = ssub.s32 192, 192
      %26 = vsyncadd [#allocation3], %s25
      %s27 = sshll.u32 [#allocation2], 4
      %s28 = int_to_ptr.vmem [resolvable:$true] %s27
      %33 = dma.hbm_to_vmem [thread:$0]  %s1, 192, %s28, [#allocation3], 64, 64, 4
    $region9: #{demonstrative_forward.1} parent=1 // pred_fallthru
      _
    // Predicated region
    $region10: #{demonstrative_forward.1} parent=1 // pred_check
      _
    $region11: #{demonstrative_forward.1} parent=1 // pred_check_branch
      %35 = sbr.rel (0) target = $region13
    $region12: #{demonstrative_forward.1} parent=1 // pred_region
      %s37 = ssub.s32 32, 32
      %38 = vsyncadd [#allocation6], %s37
      %s40 = sshll.u32 [#allocation5], 4
      %s41 = int_to_ptr.vmem [resolvable:$true] %s40
      %43 = dma.hbm_to_vmem [thread:$0]  %s2, 32, %s41, [#allocation6]
    $region13: #{demonstrative_forward.1} parent=1 // pred_fallthru
      _
    // Predicated region
    $region14: #{demonstrative_forward.1} parent=1 // pred_check
      _
    $region15: #{demonstrative_forward.1} parent=1 // pred_check_branch
      %45 = sbr.rel (0) target = $region17
    $region16: #{demonstrative_forward.1} parent=1 // pred_region
      %s47 = ssub.s32 12288, 12288
      %48 = vsyncadd [#allocation6], %s47
      %s49 = sshll.u32 [#allocation7], 4
      %s50 = int_to_ptr.vmem [resolvable:$true] %s49
      %55 = dma.hbm_to_vmem [thread:$0]  %s3, 12288, %s50, [#allocation6], 128, 128, 8
    $region17: #{demonstrative_forward.1} parent=1 // pred_fallthru
      _
    // Predicated region
    $region18: #{demonstrative_forward.1} parent=1 // pred_check
      _
    $region19: #{demonstrative_forward.1} parent=1 // pred_check_branch
      %57 = sbr.rel (0) target = $region21
    $region20: #{demonstrative_forward.1} parent=1 // pred_region
      %s59 = ssub.s32 32, 32
      %60 = vsyncadd [#allocation9], %s59
      %s62 = sshll.u32 [#allocation8], 4
      %s63 = int_to_ptr.vmem [resolvable:$true] %s62
      %65 = dma.hbm_to_vmem [thread:$0]  %s4, 32, %s63, [#allocation9]
    $region21: #{demonstrative_forward.1} parent=1 // pred_fallthru
      _
    // Predicated region
    $region22: #{demonstrative_forward.1} parent=1 // pred_check
      _
    $region23: #{demonstrative_forward.1} parent=1 // pred_check_branch
      %67 = sbr.rel (0) target = $region25
    $region24: #{demonstrative_forward.1} parent=1 // pred_region
      %s69 = ssub.s32 65536, 65536
      %70 = vsyncadd [#allocation9], %s69
      %s71 = sshll.u32 [#allocation10], 4
      %s72 = int_to_ptr.vmem [resolvable:$true] %s71
      %77 = dma.hbm_to_vmem [thread:$0]  %s5, 65536, %s72, [#allocation9], 256, 256, 16
    $region25: #{demonstrative_forward.1} parent=1 // pred_fallthru
      _
    // Predicated region
    $region26: #{demonstrative_forward.1} parent=1 // pred_check
      _
    $region27: #{demonstrative_forward.1} parent=1 // pred_check_branch
      %79 = sbr.rel (0) target = $region29
    $region28: #{demonstrative_forward.1} parent=1 // pred_region
      %s81 = ssub.s32 64, 64
      %82 = vsyncadd [#allocation12], %s81
      %s84 = sshll.u32 [#allocation11], 4
      %s85 = int_to_ptr.vmem [resolvable:$true] %s84
      %87 = dma.hbm_to_vmem [thread:$0]  %s6, 64, %s85, [#allocation12]
    $region29: #{demonstrative_forward.1} parent=1 // pred_fallthru
      _
    // Predicated region
    $region30: #{demonstrative_forward.1} parent=1 // pred_check
      _
    $region31: #{demonstrative_forward.1} parent=1 // pred_check_branch
      %89 = sbr.rel (0) target = $region33
    $region32: #{demonstrative_forward.1} parent=1 // pred_region
      %s91 = ssub.s32 4096, 4096
      %92 = vsyncadd [#allocation12], %s91
      %s93 = sshll.u32 [#allocation13], 4
      %s94 = int_to_ptr.vmem [resolvable:$true] %s93
      %99 = dma.hbm_to_vmem [thread:$0]  %s7, 4096, %s94, [#allocation12], 64, 64, 4
    $region33: #{demonstrative_forward.1} parent=1 // pred_fallthru
      _
    // Predicated region
    $region34: #{demonstrative_forward.1} parent=1 // pred_check
      _
    $region35: #{demonstrative_forward.1} parent=1 // pred_check_branch
      %101 = sbr.rel (0) target = $region37
    $region36: #{demonstrative_forward.1} parent=1 // pred_region
      %s103 = ssub.s32 16, 16
      %104 = vsyncadd [#allocation15], %s103
      %s106 = sshll.u32 [#allocation14], 4
      %s107 = int_to_ptr.vmem [resolvable:$true] %s106
      %109 = dma.hbm_to_vmem [thread:$0]  %s8, 16, %s107, [#allocation15]
    $region37: #{demonstrative_forward.1} parent=1 // pred_fallthru
      _
    // Predicated region
    $region38: #{demonstrative_forward.1} parent=1 // pred_check
      _
    $region39: #{demonstrative_forward.1} parent=1 // pred_check_branch
      %111 = sbr.rel (0) target = $region41
    $region40: #{demonstrative_forward.1} parent=1 // pred_region
      %112 = dma.done [#allocation3], 192
    $region41: #{demonstrative_forward.1} parent=1 // pred_fallthru
      _
    // Predicated region
    $region42: #{demonstrative_forward.1} parent=1 // pred_check
      _
    $region43: #{demonstrative_forward.1} parent=1 // pred_check_branch
      %114 = sbr.rel (0) target = $region45
    $region44: #{demonstrative_forward.1} parent=1 // pred_region
      %115 = dma.done [#allocation6], 32
    $region45: #{demonstrative_forward.1} parent=1 // pred_fallthru
      _
    // Predicated region
    $region46: #{demonstrative_forward.1} parent=1 // pred_check
      _
    $region47: #{demonstrative_forward.1} parent=1 // pred_check_branch
      %117 = sbr.rel (0) target = $region49
    $region48: #{demonstrative_forward.1} parent=1 // pred_region
      %118 = dma.done [#allocation6], 12288
    $region49: #{demonstrative_forward.1} parent=1 // pred_fallthru
      _
    // Predicated region
    $region50: #{demonstrative_forward.1} parent=1 // pred_check
      _
    $region51: #{demonstrative_forward.1} parent=1 // pred_check_branch
      %120 = sbr.rel (0) target = $region53
    $region52: #{demonstrative_forward.1} parent=1 // pred_region
      %121 = dma.done [#allocation9], 32
    $region53: #{demonstrative_forward.1} parent=1 // pred_fallthru
      _
    // Predicated region
    $region54: #{demonstrative_forward.1} parent=1 // pred_check
      _
    $region55: #{demonstrative_forward.1} parent=1 // pred_check_branch
      %123 = sbr.rel (0) target = $region57
    $region56: #{demonstrative_forward.1} parent=1 // pred_region
      %124 = dma.done [#allocation9], 65536
    $region57: #{demonstrative_forward.1} parent=1 // pred_fallthru
      _
    // Predicated region
    $region58: #{demonstrative_forward.1} parent=1 // pred_check
      _
    $region59: #{demonstrative_forward.1} parent=1 // pred_check_branch
      %126 = sbr.rel (0) target = $region61
    $region60: #{demonstrative_forward.1} parent=1 // pred_region
      %127 = dma.done [#allocation12], 64
    $region61: #{demonstrative_forward.1} parent=1 // pred_fallthru
      _
    // Predicated region
    $region62: #{demonstrative_forward.1} parent=1 // pred_check
      _
    $region63: #{demonstrative_forward.1} parent=1 // pred_check_branch
      %129 = sbr.rel (0) target = $region65
    $region64: #{demonstrative_forward.1} parent=1 // pred_region
      %130 = dma.done [#allocation12], 4096
    $region65: #{demonstrative_forward.1} parent=1 // pred_fallthru
      _
    // Predicated region
    $region66: #{demonstrative_forward.1} parent=1 // pred_check
      _
    $region67: #{demonstrative_forward.1} parent=1 // pred_check_branch
      %132 = sbr.rel (0) target = $region69
    $region68: #{demonstrative_forward.1} parent=1 // pred_region
      %133 = dma.done [#allocation15], 16
    $region69: #{demonstrative_forward.1} parent=1 // pred_fallthru
      _
    %v135 = vld [vmem:[%s0] sm:$0xff]
    %v136 = vld [vmem:[%s0 + $0x8] sm:$0xff]
    %vm139 = vcmask 1041408
    %v140 = vrot.slane %v135, 6
    %v141 = vrot.slane %v136, 6
    %v142 = vsel %vm139, %v140, %v141
    %v145 = vsel %vm139, 0.0, %v140
    %vm146 = vcmask 1045504
    %v147 = vrot.slane %v135, 2
    %v148 = vrot.slane %v136, 2
    %v149 = vsel %vm146, %v147, %v148
    %v152 = vsel %vm146, %v148, 0.0
    %v153 = vpack.c.bf16 %v142, %v145
    %v154 = vld [vmem:[#allocation2] sm:$0xf]
    %v155 = vpack.c.bf16 %v136, %v135
    %s156 = scalar_lea.vmem [#allocation2], 4
    %v157 = vld [vmem:[%s156] sm:$0xf]
    %v160 = vunpack.c.l.s4 1983009808
    %v161 = vunpack.c.0.s8 %v160
    %v162 = vlaneseq
    %v163 = vshrl.u32 %v162, 7
    %v164 = vsub.s32 %v161, %v163
    %v165 = vrot.slane %v157, %v164
    %v166 = vcombine.high %v165, %v165
    %vm167 = vcmask 31744
    %v169 = vsel %vm167, %v155, 0
    %v172 = vsel %vm139, %v165, 0
    %v175 = vsel %vm139, %v166, 0
    %177 = vmatprep.subr.bf16.mxu0 0
    %178 = vmatpush1.bf16.msra.mxu0 0
    %179 = vmatprep.subr.bf16.mxu0 0
    %180 = vmatpush1.bf16.msra.mxu0 0
    %181 = vmatprep.subr.bf16.mxu0 0
    %182 = vmatpush1.bf16.msra.mxu0 0
    %183 = vmatprep.subr.bf16.mxu0 0
    %184 = vmatpush1.bf16.msra.mxu0 0
    %185 = vmatprep.subr.bf16.mxu0 0
    %186 = vmatpush1.bf16.msra.mxu0 0
    %187 = vmatprep.subr.bf16.mxu0 0
    %188 = vmatpush1.bf16.msra.mxu0 0
    %189 = vmatprep.subr.bf16.mxu0 0
    %190 = vmatpush1.bf16.msra.mxu0 0
    %191 = vmatprep.subr.bf16.mxu0 %v175
    %192 = vmatpush1.bf16.msra.mxu0 %v172
    %193 = vmatprep.subr.bf16.mxu0 0
    %194 = vmatpush2.bf16.msra.mxu0 0
    %195 = vmatprep.subr.bf16.mxu0 0
    %196 = vmatpush2.bf16.msra.mxu0 0
    %197 = vmatprep.subr.bf16.mxu0 0
    %198 = vmatpush2.bf16.msra.mxu0 0
    %199 = vmatprep.subr.bf16.mxu0 0
    %200 = vmatpush2.bf16.msra.mxu0 0
    %201 = vmatprep.subr.bf16.mxu0 0
    %202 = vmatpush2.bf16.msra.mxu0 0
    %203 = vmatprep.subr.bf16.mxu0 0
    %204 = vmatpush2.bf16.msra.mxu0 0
    %205 = vmatprep.subr.bf16.mxu0 0
    %206 = vmatpush2.bf16.msra.mxu0 0
    %207 = vmatprep.subr.bf16.mxu0 0
    %208 = vmatpush2.bf16.msra.mxu0 0
    %209 = vmatprep.mubr.bf16.mxu0 0
    %210 = vmatmul.mubr.bf16.gmra.mxu0 %v169
    %v211 = vpop.f32.mrf.mxu0
    %v212 = vadd.f32 0.0, %v211
    %v213 = vpop.f32.mrf.mxu0
    %v214 = vadd.f32 0.0, %v213
    %v215 = vpop.f32.mrf.mxu0
    %v216 = vadd.f32 0.0, %v215
    %v217 = vpop.f32.mrf.mxu0
    %v218 = vadd.f32 0.0, %v217
    %219 = vdwg.mxu0
    %v222 = vunpack.c.l.s4 1983009808
    %v223 = vunpack.c.0.s8 %v222
    %v224 = vlaneseq
    %v225 = vshrl.u32 %v224, 7
    %v226 = vsub.s32 %v223, %v225
    %v227 = vrot.slane %v154, %v226
    %v228 = vcombine.high %v227, %v227
    %v230 = vsel %vm167, %v153, 0
    %v233 = vsel %vm139, %v227, 0
    %v236 = vsel %vm139, %v228, 0
    %238 = vmatprep.subr.bf16.mxu0 0
    %239 = vmatpush1.bf16.msra.mxu0 0
    %240 = vmatprep.subr.bf16.mxu0 0
    %241 = vmatpush1.bf16.msra.mxu0 0
    %242 = vmatprep.subr.bf16.mxu0 0
    %243 = vmatpush1.bf16.msra.mxu0 0
    %244 = vmatprep.subr.bf16.mxu0 0
    %245 = vmatpush1.bf16.msra.mxu0 0
    %246 = vmatprep.subr.bf16.mxu0 0
    %247 = vmatpush1.bf16.msra.mxu0 0
    %248 = vmatprep.subr.bf16.mxu0 0
    %249 = vmatpush1.bf16.msra.mxu0 0
    %250 = vmatprep.subr.bf16.mxu0 0
    %251 = vmatpush1.bf16.msra.mxu0 0
    %252 = vmatprep.subr.bf16.mxu0 %v236
    %253 = vmatpush1.bf16.msra.mxu0 %v233
    %254 = vmatprep.subr.bf16.mxu0 0
    %255 = vmatpush2.bf16.msra.mxu0 0
    %256 = vmatprep.subr.bf16.mxu0 0
    %257 = vmatpush2.bf16.msra.mxu0 0
    %258 = vmatprep.subr.bf16.mxu0 0
    %259 = vmatpush2.bf16.msra.mxu0 0
    %260 = vmatprep.subr.bf16.mxu0 0
    %261 = vmatpush2.bf16.msra.mxu0 0
    %262 = vmatprep.subr.bf16.mxu0 0
    %263 = vmatpush2.bf16.msra.mxu0 0
    %264 = vmatprep.subr.bf16.mxu0 0
    %265 = vmatpush2.bf16.msra.mxu0 0
    %266 = vmatprep.subr.bf16.mxu0 0
    %267 = vmatpush2.bf16.msra.mxu0 0
    %268 = vmatprep.subr.bf16.mxu0 0
    %269 = vmatpush2.bf16.msra.mxu0 0
    %270 = vmatprep.mubr.bf16.mxu0 0
    %271 = vmatmul.mubr.bf16.gmra.mxu0 %v230
    %v272 = vpop.f32.mrf.mxu0
    %v273 = vadd.f32 %v212, %v272
    %v274 = vpop.f32.mrf.mxu0
    %v275 = vadd.f32 %v214, %v274
    %v276 = vpop.f32.mrf.mxu0
    %v277 = vadd.f32 %v216, %v276
    %v278 = vpop.f32.mrf.mxu0
    %v279 = vadd.f32 %v218, %v278
    %280 = vdwg.mxu0
    %v281 = vpack.c.bf16 %v152, %v149
    %s282 = scalar_lea.vmem [#allocation2], 8
    %v283 = vld [vmem:[%s282] sm:$0xf]
    %v286 = vunpack.c.l.s4 1983009808
    %v287 = vunpack.c.0.s8 %v286
    %v288 = vlaneseq
    %v289 = vshrl.u32 %v288, 7
    %v290 = vsub.s32 %v287, %v289
    %v291 = vrot.slane %v283, %v290
    %v292 = vcombine.high %v291, %v291
    %v294 = vsel %vm167, %v281, 0
    %v297 = vsel %vm139, %v291, 0
    %v300 = vsel %vm139, %v292, 0
    %302 = vmatprep.subr.bf16.mxu0 0
    %303 = vmatpush1.bf16.msra.mxu0 0
    %304 = vmatprep.subr.bf16.mxu0 0
    %305 = vmatpush1.bf16.msra.mxu0 0
    %306 = vmatprep.subr.bf16.mxu0 0
    %307 = vmatpush1.bf16.msra.mxu0 0
    %308 = vmatprep.subr.bf16.mxu0 0
    %309 = vmatpush1.bf16.msra.mxu0 0
    %310 = vmatprep.subr.bf16.mxu0 0
    %311 = vmatpush1.bf16.msra.mxu0 0
    %312 = vmatprep.subr.bf16.mxu0 0
    %313 = vmatpush1.bf16.msra.mxu0 0
    %314 = vmatprep.subr.bf16.mxu0 0
    %315 = vmatpush1.bf16.msra.mxu0 0
    %316 = vmatprep.subr.bf16.mxu0 %v300
    %317 = vmatpush1.bf16.msra.mxu0 %v297
    %318 = vmatprep.subr.bf16.mxu0 0
    %319 = vmatpush2.bf16.msra.mxu0 0
    %320 = vmatprep.subr.bf16.mxu0 0
    %321 = vmatpush2.bf16.msra.mxu0 0
    %322 = vmatprep.subr.bf16.mxu0 0
    %323 = vmatpush2.bf16.msra.mxu0 0
    %324 = vmatprep.subr.bf16.mxu0 0
    %325 = vmatpush2.bf16.msra.mxu0 0
    %326 = vmatprep.subr.bf16.mxu0 0
    %327 = vmatpush2.bf16.msra.mxu0 0
    %328 = vmatprep.subr.bf16.mxu0 0
    %329 = vmatpush2.bf16.msra.mxu0 0
    %330 = vmatprep.subr.bf16.mxu0 0
    %331 = vmatpush2.bf16.msra.mxu0 0
    %332 = vmatprep.subr.bf16.mxu0 0
    %333 = vmatpush2.bf16.msra.mxu0 0
    %334 = vmatprep.mubr.bf16.mxu0 0
    %335 = vmatmul.mubr.bf16.gmra.mxu0 %v294
    %v336 = vpop.f32.mrf.mxu0
    %v337 = vadd.f32 0.0, %v336
    %v338 = vpop.f32.mrf.mxu0
    %v339 = vadd.f32 0.0, %v338
    %v340 = vpop.f32.mrf.mxu0
    %v341 = vadd.f32 0.0, %v340
    %v342 = vpop.f32.mrf.mxu0
    %v343 = vadd.f32 0.0, %v342
    %344 = vdwg.mxu0
    %v345 = vadd.f32 %v273, %v337
    %v346 = vadd.f32 %v275, %v339
    %v347 = vadd.f32 %v277, %v341
    %v348 = vadd.f32 %v279, %v343
    %v349 = vld [vmem:[#allocation5] sm:$0x3]
    %v351 = vlaneseq
    %v352 = vshrl.u32 %v351, 7
    %v353 = vsub.s32 0, %v352
    %v354 = vrot.slane %v349, %v353
    %v355 = vlaneseq
    %v356 = vshrl.u32 %v355, 7
    %v357 = vsub.s32 1, %v356
    %v358 = vrot.slane %v349, %v357
    %v361 = vadd.f32 %v345, %v354
    %v362 = vadd.f32 %v346, %v358
    %v363 = vadd.f32 %v347, %v354
    %v364 = vadd.f32 %v348, %v358
    %v365 = vmax.f32 %v361, 0.0
    %v366 = vmax.f32 %v362, 0.0
    %v367 = vmax.f32 %v363, 0.0
    %v368 = vmax.f32 %v364, 0.0
    %v373 = vrot.slane %v365, 6
    %v374 = vrot.slane %v366, 6
    %v375 = vrot.slane %v367, 6
    %v376 = vsel %vm139, %v373, %v375
    %v377 = vrot.slane %v368, 6
    %v378 = vsel %vm139, %v374, %v377
    %v383 = vsel %vm139, 0.0, %v373
    %v384 = vsel %vm139, 0.0, %v374
    %v385 = vrot.slane %v365, 2
    %v386 = vrot.slane %v367, 2
    %v387 = vsel %vm146, %v385, %v386
    %v388 = vrot.slane %v366, 2
    %v389 = vrot.slane %v368, 2
    %v390 = vsel %vm146, %v388, %v389
    %v395 = vsel %vm146, %v386, 0.0
    %v396 = vsel %vm146, %v389, 0.0
    %v397 = vpack.c.bf16 %v376, %v383
    %v398 = vpack.c.bf16 %v378, %v384
    %v399 = vld [vmem:[#allocation7] sm:$0xff]
    %v400 = vld [vmem:[#allocation7 + $0x8] sm:$0xff]
    %v401 = vld [vmem:[#allocation7 + $0x10] sm:$0xff]
    %v402 = vld [vmem:[#allocation7 + $0x18] sm:$0xff]
    %v403 = vld [vmem:[#allocation7 + $0x20] sm:$0xff]
    %v404 = vld [vmem:[#allocation7 + $0x28] sm:$0xff]
    %v405 = vld [vmem:[#allocation7 + $0x30] sm:$0xff]
    %v406 = vld [vmem:[#allocation7 + $0x38] sm:$0xff]
    %v407 = vld [vmem:[#allocation7 + $0x40] sm:$0xff]
    %v408 = vld [vmem:[#allocation7 + $0x48] sm:$0xff]
    %v409 = vld [vmem:[#allocation7 + $0x50] sm:$0xff]
    %v410 = vld [vmem:[#allocation7 + $0x58] sm:$0xff]
    %v411 = vld [vmem:[#allocation7 + $0x60] sm:$0xff]
    %v412 = vld [vmem:[#allocation7 + $0x68] sm:$0xff]
    %v413 = vld [vmem:[#allocation7 + $0x70] sm:$0xff]
    %v414 = vld [vmem:[#allocation7 + $0x78] sm:$0xff]
    %v415 = vld [vmem:[#allocation7 + $0x80] sm:$0xff]
    %v416 = vld [vmem:[#allocation7 + $0x88] sm:$0xff]
    %v417 = vld [vmem:[#allocation7 + $0x90] sm:$0xff]
    %v418 = vld [vmem:[#allocation7 + $0x98] sm:$0xff]
    %v419 = vld [vmem:[#allocation7 + $0xa0] sm:$0xff]
    %v420 = vld [vmem:[#allocation7 + $0xa8] sm:$0xff]
    %v421 = vld [vmem:[#allocation7 + $0xb0] sm:$0xff]
    %v422 = vld [vmem:[#allocation7 + $0xb8] sm:$0xff]
    %v423 = vld [vmem:[#allocation7 + $0xc0] sm:$0xff]
    %v424 = vld [vmem:[#allocation7 + $0xc8] sm:$0xff]
    %v425 = vld [vmem:[#allocation7 + $0xd0] sm:$0xff]
    %v426 = vld [vmem:[#allocation7 + $0xd8] sm:$0xff]
    %v427 = vld [vmem:[#allocation7 + $0xe0] sm:$0xff]
    %v428 = vld [vmem:[#allocation7 + $0xe8] sm:$0xff]
    %v429 = vld [vmem:[#allocation7 + $0xf0] sm:$0xff]
    %v430 = vld [vmem:[#allocation7 + $0xf8] sm:$0xff]
    %v431 = vpack.c.bf16 %v367, %v365
    %v432 = vpack.c.bf16 %v368, %v366
    %s433 = scalar_lea.vmem [#allocation7], 256
    %v434 = vld [vmem:[%s433] sm:$0xff]
    %v435 = vld [vmem:[%s433 + $0x8] sm:$0xff]
    %v436 = vld [vmem:[%s433 + $0x10] sm:$0xff]
    %v437 = vld [vmem:[%s433 + $0x18] sm:$0xff]
    %v438 = vld [vmem:[%s433 + $0x20] sm:$0xff]
    %v439 = vld [vmem:[%s433 + $0x28] sm:$0xff]
    %v440 = vld [vmem:[%s433 + $0x30] sm:$0xff]
    %v441 = vld [vmem:[%s433 + $0x38] sm:$0xff]
    %v442 = vld [vmem:[%s433 + $0x40] sm:$0xff]
    %v443 = vld [vmem:[%s433 + $0x48] sm:$0xff]
    %v444 = vld [vmem:[%s433 + $0x50] sm:$0xff]
    %v445 = vld [vmem:[%s433 + $0x58] sm:$0xff]
    %v446 = vld [vmem:[%s433 + $0x60] sm:$0xff]
    %v447 = vld [vmem:[%s433 + $0x68] sm:$0xff]
    %v448 = vld [vmem:[%s433 + $0x70] sm:$0xff]
    %v449 = vld [vmem:[%s433 + $0x78] sm:$0xff]
    %v450 = vld [vmem:[%s433 + $0x80] sm:$0xff]
    %v451 = vld [vmem:[%s433 + $0x88] sm:$0xff]
    %v452 = vld [vmem:[%s433 + $0x90] sm:$0xff]
    %v453 = vld [vmem:[%s433 + $0x98] sm:$0xff]
    %v454 = vld [vmem:[%s433 + $0xa0] sm:$0xff]
    %v455 = vld [vmem:[%s433 + $0xa8] sm:$0xff]
    %v456 = vld [vmem:[%s433 + $0xb0] sm:$0xff]
    %v457 = vld [vmem:[%s433 + $0xb8] sm:$0xff]
    %v458 = vld [vmem:[%s433 + $0xc0] sm:$0xff]
    %v459 = vld [vmem:[%s433 + $0xc8] sm:$0xff]
    %v460 = vld [vmem:[%s433 + $0xd0] sm:$0xff]
    %v461 = vld [vmem:[%s433 + $0xd8] sm:$0xff]
    %v462 = vld [vmem:[%s433 + $0xe0] sm:$0xff]
    %v463 = vld [vmem:[%s433 + $0xe8] sm:$0xff]
    %v464 = vld [vmem:[%s433 + $0xf0] sm:$0xff]
    %v465 = vld [vmem:[%s433 + $0xf8] sm:$0xff]
    %v498 = vunpack.c.l.b16 %v434
    %v499 = vunpack.c.h.b16 %v434
    %v500 = vunpack.c.l.b16 %v435
    %v501 = vunpack.c.h.b16 %v435
    %v502 = vunpack.c.l.b16 %v436
    %v503 = vunpack.c.h.b16 %v436
    %v504 = vunpack.c.l.b16 %v437
    %v505 = vunpack.c.h.b16 %v437
    %v506 = vunpack.c.l.b16 %v438
    %v507 = vunpack.c.h.b16 %v438
    %v508 = vunpack.c.l.b16 %v439
    %v509 = vunpack.c.h.b16 %v439
    %v510 = vunpack.c.l.b16 %v440
    %v511 = vunpack.c.h.b16 %v440
    %v512 = vunpack.c.l.b16 %v441
    %v513 = vunpack.c.h.b16 %v441
    %v514 = vunpack.c.l.b16 %v442
    %v515 = vunpack.c.h.b16 %v442
    %v516 = vunpack.c.l.b16 %v443
    %v517 = vunpack.c.h.b16 %v443
    %v518 = vunpack.c.l.b16 %v444
    %v519 = vunpack.c.h.b16 %v444
    %v520 = vunpack.c.l.b16 %v445
    %v521 = vunpack.c.h.b16 %v445
    %v522 = vunpack.c.l.b16 %v446
    %v523 = vunpack.c.h.b16 %v446
    %v524 = vunpack.c.l.b16 %v447
    %v525 = vunpack.c.h.b16 %v447
    %v526 = vunpack.c.l.b16 %v448
    %v527 = vunpack.c.h.b16 %v448
    %v528 = vunpack.c.l.b16 %v449
    %v529 = vunpack.c.h.b16 %v449
    %v530 = vunpack.c.l.b16 %v450
    %v531 = vunpack.c.h.b16 %v450
    %v532 = vunpack.c.l.b16 %v451
    %v533 = vunpack.c.h.b16 %v451
    %v534 = vunpack.c.l.b16 %v452
    %v535 = vunpack.c.h.b16 %v452
    %v536 = vunpack.c.l.b16 %v453
    %v537 = vunpack.c.h.b16 %v453
    %v538 = vunpack.c.l.b16 %v454
    %v539 = vunpack.c.h.b16 %v454
    %v540 = vunpack.c.l.b16 %v455
    %v541 = vunpack.c.h.b16 %v455
    %v542 = vunpack.c.l.b16 %v456
    %v543 = vunpack.c.h.b16 %v456
    %v544 = vunpack.c.l.b16 %v457
    %v545 = vunpack.c.h.b16 %v457
    %v546 = vunpack.c.l.b16 %v458
    %v547 = vunpack.c.h.b16 %v458
    %v548 = vunpack.c.l.b16 %v459
    %v549 = vunpack.c.h.b16 %v459
    %v550 = vunpack.c.l.b16 %v460
    %v551 = vunpack.c.h.b16 %v460
    %v552 = vunpack.c.l.b16 %v461
    %v553 = vunpack.c.h.b16 %v461
    %v554 = vunpack.c.l.b16 %v462
    %v555 = vunpack.c.h.b16 %v462
    %v556 = vunpack.c.l.b16 %v463
    %v557 = vunpack.c.h.b16 %v463
    %v558 = vunpack.c.l.b16 %v464
    %v559 = vunpack.c.h.b16 %v464
    %v560 = vunpack.c.l.b16 %v465
    %v561 = vunpack.c.h.b16 %v465
    %v562 = vpack.c.b16 %v500, %v498
    %v563 = vpack.c.b16 %v501, %v499
    %v564 = vpack.c.b16 %v504, %v502
    %v565 = vpack.c.b16 %v505, %v503
    %v566 = vpack.c.b16 %v508, %v506
    %v567 = vpack.c.b16 %v509, %v507
    %v568 = vpack.c.b16 %v512, %v510
    %v569 = vpack.c.b16 %v513, %v511
    %v570 = vpack.c.b16 %v516, %v514
    %v571 = vpack.c.b16 %v517, %v515
    %v572 = vpack.c.b16 %v520, %v518
    %v573 = vpack.c.b16 %v521, %v519
    %v574 = vpack.c.b16 %v524, %v522
    %v575 = vpack.c.b16 %v525, %v523
    %v576 = vpack.c.b16 %v528, %v526
    %v577 = vpack.c.b16 %v529, %v527
    %v578 = vpack.c.b16 %v532, %v530
    %v579 = vpack.c.b16 %v533, %v531
    %v580 = vpack.c.b16 %v536, %v534
    %v581 = vpack.c.b16 %v537, %v535
    %v582 = vpack.c.b16 %v540, %v538
    %v583 = vpack.c.b16 %v541, %v539
    %v584 = vpack.c.b16 %v544, %v542
    %v585 = vpack.c.b16 %v545, %v543
    %v586 = vpack.c.b16 %v548, %v546
    %v587 = vpack.c.b16 %v549, %v547
    %v588 = vpack.c.b16 %v552, %v550
    %v589 = vpack.c.b16 %v553, %v551
    %v590 = vpack.c.b16 %v556, %v554
    %v591 = vpack.c.b16 %v557, %v555
    %v592 = vpack.c.b16 %v560, %v558
    %v593 = vpack.c.b16 %v561, %v559
    %626 = vmatprep.subr.bf16.mxu0 %v577
    %627 = vmatpush1.bf16.msra.mxu0 %v576
    %628 = vmatprep.subr.bf16.mxu0 %v575
    %629 = vmatpush1.bf16.msra.mxu0 %v574
    %630 = vmatprep.subr.bf16.mxu0 %v573
    %631 = vmatpush1.bf16.msra.mxu0 %v572
    %632 = vmatprep.subr.bf16.mxu0 %v571
    %633 = vmatpush1.bf16.msra.mxu0 %v570
    %634 = vmatprep.subr.bf16.mxu0 %v569
    %635 = vmatpush1.bf16.msra.mxu0 %v568
    %636 = vmatprep.subr.bf16.mxu0 %v567
    %637 = vmatpush1.bf16.msra.mxu0 %v566
    %638 = vmatprep.subr.bf16.mxu0 %v565
    %639 = vmatpush1.bf16.msra.mxu0 %v564
    %640 = vmatprep.subr.bf16.mxu0 %v563
    %641 = vmatpush1.bf16.msra.mxu0 %v562
    %642 = vmatprep.subr.bf16.mxu0 %v593
    %643 = vmatpush2.bf16.msra.mxu0 %v592
    %644 = vmatprep.subr.bf16.mxu0 %v591
    %645 = vmatpush2.bf16.msra.mxu0 %v590
    %646 = vmatprep.subr.bf16.mxu0 %v589
    %647 = vmatpush2.bf16.msra.mxu0 %v588
    %648 = vmatprep.subr.bf16.mxu0 %v587
    %649 = vmatpush2.bf16.msra.mxu0 %v586
    %650 = vmatprep.subr.bf16.mxu0 %v585
    %651 = vmatpush2.bf16.msra.mxu0 %v584
    %652 = vmatprep.subr.bf16.mxu0 %v583
    %653 = vmatpush2.bf16.msra.mxu0 %v582
    %654 = vmatprep.subr.bf16.mxu0 %v581
    %655 = vmatpush2.bf16.msra.mxu0 %v580
    %656 = vmatprep.subr.bf16.mxu0 %v579
    %657 = vmatpush2.bf16.msra.mxu0 %v578
    %658 = vmatprep.mubr.bf16.mxu0 %v432
    %659 = vmatmul.mubr.bf16.gmra.mxu0 %v431
    %v660 = vpop.f32.mrf.mxu0
    %v661 = vadd.f32 0.0, %v660
    %v662 = vpop.f32.mrf.mxu0
    %v663 = vadd.f32 0.0, %v662
    %v664 = vpop.f32.mrf.mxu0
    %v665 = vadd.f32 0.0, %v664
    %v666 = vpop.f32.mrf.mxu0
    %v667 = vadd.f32 0.0, %v666
    %668 = vdwg.mxu0
    %v701 = vunpack.c.l.b16 %v399
    %v702 = vunpack.c.h.b16 %v399
    %v703 = vunpack.c.l.b16 %v400
    %v704 = vunpack.c.h.b16 %v400
    %v705 = vunpack.c.l.b16 %v401
    %v706 = vunpack.c.h.b16 %v401
    %v707 = vunpack.c.l.b16 %v402
    %v708 = vunpack.c.h.b16 %v402
    %v709 = vunpack.c.l.b16 %v403
    %v710 = vunpack.c.h.b16 %v403
    %v711 = vunpack.c.l.b16 %v404
    %v712 = vunpack.c.h.b16 %v404
    %v713 = vunpack.c.l.b16 %v405
    %v714 = vunpack.c.h.b16 %v405
    %v715 = vunpack.c.l.b16 %v406
    %v716 = vunpack.c.h.b16 %v406
    %v717 = vunpack.c.l.b16 %v407
    %v718 = vunpack.c.h.b16 %v407
    %v719 = vunpack.c.l.b16 %v408
    %v720 = vunpack.c.h.b16 %v408
    %v721 = vunpack.c.l.b16 %v409
    %v722 = vunpack.c.h.b16 %v409
    %v723 = vunpack.c.l.b16 %v410
    %v724 = vunpack.c.h.b16 %v410
    %v725 = vunpack.c.l.b16 %v411
    %v726 = vunpack.c.h.b16 %v411
    %v727 = vunpack.c.l.b16 %v412
    %v728 = vunpack.c.h.b16 %v412
    %v729 = vunpack.c.l.b16 %v413
    %v730 = vunpack.c.h.b16 %v413
    %v731 = vunpack.c.l.b16 %v414
    %v732 = vunpack.c.h.b16 %v414
    %v733 = vunpack.c.l.b16 %v415
    %v734 = vunpack.c.h.b16 %v415
    %v735 = vunpack.c.l.b16 %v416
    %v736 = vunpack.c.h.b16 %v416
    %v737 = vunpack.c.l.b16 %v417
    %v738 = vunpack.c.h.b16 %v417
    %v739 = vunpack.c.l.b16 %v418
    %v740 = vunpack.c.h.b16 %v418
    %v741 = vunpack.c.l.b16 %v419
    %v742 = vunpack.c.h.b16 %v419
    %v743 = vunpack.c.l.b16 %v420
    %v744 = vunpack.c.h.b16 %v420
    %v745 = vunpack.c.l.b16 %v421
    %v746 = vunpack.c.h.b16 %v421
    %v747 = vunpack.c.l.b16 %v422
    %v748 = vunpack.c.h.b16 %v422
    %v749 = vunpack.c.l.b16 %v423
    %v750 = vunpack.c.h.b16 %v423
    %v751 = vunpack.c.l.b16 %v424
    %v752 = vunpack.c.h.b16 %v424
    %v753 = vunpack.c.l.b16 %v425
    %v754 = vunpack.c.h.b16 %v425
    %v755 = vunpack.c.l.b16 %v426
    %v756 = vunpack.c.h.b16 %v426
    %v757 = vunpack.c.l.b16 %v427
    %v758 = vunpack.c.h.b16 %v427
    %v759 = vunpack.c.l.b16 %v428
    %v760 = vunpack.c.h.b16 %v428
    %v761 = vunpack.c.l.b16 %v429
    %v762 = vunpack.c.h.b16 %v429
    %v763 = vunpack.c.l.b16 %v430
    %v764 = vunpack.c.h.b16 %v430
    %v765 = vpack.c.b16 %v703, %v701
    %v766 = vpack.c.b16 %v704, %v702
    %v767 = vpack.c.b16 %v707, %v705
    %v768 = vpack.c.b16 %v708, %v706
    %v769 = vpack.c.b16 %v711, %v709
    %v770 = vpack.c.b16 %v712, %v710
    %v771 = vpack.c.b16 %v715, %v713
    %v772 = vpack.c.b16 %v716, %v714
    %v773 = vpack.c.b16 %v719, %v717
    %v774 = vpack.c.b16 %v720, %v718
    %v775 = vpack.c.b16 %v723, %v721
    %v776 = vpack.c.b16 %v724, %v722
    %v777 = vpack.c.b16 %v727, %v725
    %v778 = vpack.c.b16 %v728, %v726
    %v779 = vpack.c.b16 %v731, %v729
    %v780 = vpack.c.b16 %v732, %v730
    %v781 = vpack.c.b16 %v735, %v733
    %v782 = vpack.c.b16 %v736, %v734
    %v783 = vpack.c.b16 %v739, %v737
    %v784 = vpack.c.b16 %v740, %v738
    %v785 = vpack.c.b16 %v743, %v741
    %v786 = vpack.c.b16 %v744, %v742
    %v787 = vpack.c.b16 %v747, %v745
    %v788 = vpack.c.b16 %v748, %v746
    %v789 = vpack.c.b16 %v751, %v749
    %v790 = vpack.c.b16 %v752, %v750
    %v791 = vpack.c.b16 %v755, %v753
    %v792 = vpack.c.b16 %v756, %v754
    %v793 = vpack.c.b16 %v759, %v757
    %v794 = vpack.c.b16 %v760, %v758
    %v795 = vpack.c.b16 %v763, %v761
    %v796 = vpack.c.b16 %v764, %v762
    %829 = vmatprep.subr.bf16.mxu0 %v780
    %830 = vmatpush1.bf16.msra.mxu0 %v779
    %831 = vmatprep.subr.bf16.mxu0 %v778
    %832 = vmatpush1.bf16.msra.mxu0 %v777
    %833 = vmatprep.subr.bf16.mxu0 %v776
    %834 = vmatpush1.bf16.msra.mxu0 %v775
    %835 = vmatprep.subr.bf16.mxu0 %v774
    %836 = vmatpush1.bf16.msra.mxu0 %v773
    %837 = vmatprep.subr.bf16.mxu0 %v772
    %838 = vmatpush1.bf16.msra.mxu0 %v771
    %839 = vmatprep.subr.bf16.mxu0 %v770
    %840 = vmatpush1.bf16.msra.mxu0 %v769
    %841 = vmatprep.subr.bf16.mxu0 %v768
    %842 = vmatpush1.bf16.msra.mxu0 %v767
    %843 = vmatprep.subr.bf16.mxu0 %v766
    %844 = vmatpush1.bf16.msra.mxu0 %v765
    %845 = vmatprep.subr.bf16.mxu0 %v796
    %846 = vmatpush2.bf16.msra.mxu0 %v795
    %847 = vmatprep.subr.bf16.mxu0 %v794
    %848 = vmatpush2.bf16.msra.mxu0 %v793
    %849 = vmatprep.subr.bf16.mxu0 %v792
    %850 = vmatpush2.bf16.msra.mxu0 %v791
    %851 = vmatprep.subr.bf16.mxu0 %v790
    %852 = vmatpush2.bf16.msra.mxu0 %v789
    %853 = vmatprep.subr.bf16.mxu0 %v788
    %854 = vmatpush2.bf16.msra.mxu0 %v787
    %855 = vmatprep.subr.bf16.mxu0 %v786
    %856 = vmatpush2.bf16.msra.mxu0 %v785
    %857 = vmatprep.subr.bf16.mxu0 %v784
    %858 = vmatpush2.bf16.msra.mxu0 %v783
    %859 = vmatprep.subr.bf16.mxu0 %v782
    %860 = vmatpush2.bf16.msra.mxu0 %v781
    %861 = vmatprep.mubr.bf16.mxu0 %v398
    %862 = vmatmul.mubr.bf16.gmra.mxu0 %v397
    %v863 = vpop.f32.mrf.mxu0
    %v864 = vadd.f32 %v661, %v863
    %v865 = vpop.f32.mrf.mxu0
    %v866 = vadd.f32 %v663, %v865
    %v867 = vpop.f32.mrf.mxu0
    %v868 = vadd.f32 %v665, %v867
    %v869 = vpop.f32.mrf.mxu0
    %v870 = vadd.f32 %v667, %v869
    %871 = vdwg.mxu0
    %v872 = vpack.c.bf16 %v395, %v387
    %v873 = vpack.c.bf16 %v396, %v390
    %s874 = scalar_lea.vmem [#allocation7], 512
    %v875 = vld [vmem:[%s874] sm:$0xff]
    %v876 = vld [vmem:[%s874 + $0x8] sm:$0xff]
    %v877 = vld [vmem:[%s874 + $0x10] sm:$0xff]
    %v878 = vld [vmem:[%s874 + $0x18] sm:$0xff]
    %v879 = vld [vmem:[%s874 + $0x20] sm:$0xff]
    %v880 = vld [vmem:[%s874 + $0x28] sm:$0xff]
    %v881 = vld [vmem:[%s874 + $0x30] sm:$0xff]
    %v882 = vld [vmem:[%s874 + $0x38] sm:$0xff]
    %v883 = vld [vmem:[%s874 + $0x40] sm:$0xff]
    %v884 = vld [vmem:[%s874 + $0x48] sm:$0xff]
    %v885 = vld [vmem:[%s874 + $0x50] sm:$0xff]
    %v886 = vld [vmem:[%s874 + $0x58] sm:$0xff]
    %v887 = vld [vmem:[%s874 + $0x60] sm:$0xff]
    %v888 = vld [vmem:[%s874 + $0x68] sm:$0xff]
    %v889 = vld [vmem:[%s874 + $0x70] sm:$0xff]
    %v890 = vld [vmem:[%s874 + $0x78] sm:$0xff]
    %v891 = vld [vmem:[%s874 + $0x80] sm:$0xff]
    %v892 = vld [vmem:[%s874 + $0x88] sm:$0xff]
    %v893 = vld [vmem:[%s874 + $0x90] sm:$0xff]
    %v894 = vld [vmem:[%s874 + $0x98] sm:$0xff]
    %v895 = vld [vmem:[%s874 + $0xa0] sm:$0xff]
    %v896 = vld [vmem:[%s874 + $0xa8] sm:$0xff]
    %v897 = vld [vmem:[%s874 + $0xb0] sm:$0xff]
    %v898 = vld [vmem:[%s874 + $0xb8] sm:$0xff]
    %v899 = vld [vmem:[%s874 + $0xc0] sm:$0xff]
    %v900 = vld [vmem:[%s874 + $0xc8] sm:$0xff]
    %v901 = vld [vmem:[%s874 + $0xd0] sm:$0xff]
    %v902 = vld [vmem:[%s874 + $0xd8] sm:$0xff]
    %v903 = vld [vmem:[%s874 + $0xe0] sm:$0xff]
    %v904 = vld [vmem:[%s874 + $0xe8] sm:$0xff]
    %v905 = vld [vmem:[%s874 + $0xf0] sm:$0xff]
    %v906 = vld [vmem:[%s874 + $0xf8] sm:$0xff]
    %v939 = vunpack.c.l.b16 %v875
    %v940 = vunpack.c.h.b16 %v875
    %v941 = vunpack.c.l.b16 %v876
    %v942 = vunpack.c.h.b16 %v876
    %v943 = vunpack.c.l.b16 %v877
    %v944 = vunpack.c.h.b16 %v877
    %v945 = vunpack.c.l.b16 %v878
    %v946 = vunpack.c.h.b16 %v878
    %v947 = vunpack.c.l.b16 %v879
    %v948 = vunpack.c.h.b16 %v879
    %v949 = vunpack.c.l.b16 %v880
    %v950 = vunpack.c.h.b16 %v880
    %v951 = vunpack.c.l.b16 %v881
    %v952 = vunpack.c.h.b16 %v881
    %v953 = vunpack.c.l.b16 %v882
    %v954 = vunpack.c.h.b16 %v882
    %v955 = vunpack.c.l.b16 %v883
    %v956 = vunpack.c.h.b16 %v883
    %v957 = vunpack.c.l.b16 %v884
    %v958 = vunpack.c.h.b16 %v884
    %v959 = vunpack.c.l.b16 %v885
    %v960 = vunpack.c.h.b16 %v885
    %v961 = vunpack.c.l.b16 %v886
    %v962 = vunpack.c.h.b16 %v886
    %v963 = vunpack.c.l.b16 %v887
    %v964 = vunpack.c.h.b16 %v887
    %v965 = vunpack.c.l.b16 %v888
    %v966 = vunpack.c.h.b16 %v888
    %v967 = vunpack.c.l.b16 %v889
    %v968 = vunpack.c.h.b16 %v889
    %v969 = vunpack.c.l.b16 %v890
    %v970 = vunpack.c.h.b16 %v890
    %v971 = vunpack.c.l.b16 %v891
    %v972 = vunpack.c.h.b16 %v891
    %v973 = vunpack.c.l.b16 %v892
    %v974 = vunpack.c.h.b16 %v892
    %v975 = vunpack.c.l.b16 %v893
    %v976 = vunpack.c.h.b16 %v893
    %v977 = vunpack.c.l.b16 %v894
    %v978 = vunpack.c.h.b16 %v894
    %v979 = vunpack.c.l.b16 %v895
    %v980 = vunpack.c.h.b16 %v895
    %v981 = vunpack.c.l.b16 %v896
    %v982 = vunpack.c.h.b16 %v896
    %v983 = vunpack.c.l.b16 %v897
    %v984 = vunpack.c.h.b16 %v897
    %v985 = vunpack.c.l.b16 %v898
    %v986 = vunpack.c.h.b16 %v898
    %v987 = vunpack.c.l.b16 %v899
    %v988 = vunpack.c.h.b16 %v899
    %v989 = vunpack.c.l.b16 %v900
    %v990 = vunpack.c.h.b16 %v900
    %v991 = vunpack.c.l.b16 %v901
    %v992 = vunpack.c.h.b16 %v901
    %v993 = vunpack.c.l.b16 %v902
    %v994 = vunpack.c.h.b16 %v902
    %v995 = vunpack.c.l.b16 %v903
    %v996 = vunpack.c.h.b16 %v903
    %v997 = vunpack.c.l.b16 %v904
    %v998 = vunpack.c.h.b16 %v904
    %v999 = vunpack.c.l.b16 %v905
    %v1000 = vunpack.c.h.b16 %v905
    %v1001 = vunpack.c.l.b16 %v906
    %v1002 = vunpack.c.h.b16 %v906
    %v1003 = vpack.c.b16 %v941, %v939
    %v1004 = vpack.c.b16 %v942, %v940
    %v1005 = vpack.c.b16 %v945, %v943
    %v1006 = vpack.c.b16 %v946, %v944
    %v1007 = vpack.c.b16 %v949, %v947
    %v1008 = vpack.c.b16 %v950, %v948
    %v1009 = vpack.c.b16 %v953, %v951
    %v1010 = vpack.c.b16 %v954, %v952
    %v1011 = vpack.c.b16 %v957, %v955
    %v1012 = vpack.c.b16 %v958, %v956
    %v1013 = vpack.c.b16 %v961, %v959
    %v1014 = vpack.c.b16 %v962, %v960
    %v1015 = vpack.c.b16 %v965, %v963
    %v1016 = vpack.c.b16 %v966, %v964
    %v1017 = vpack.c.b16 %v969, %v967
    %v1018 = vpack.c.b16 %v970, %v968
    %v1019 = vpack.c.b16 %v973, %v971
    %v1020 = vpack.c.b16 %v974, %v972
    %v1021 = vpack.c.b16 %v977, %v975
    %v1022 = vpack.c.b16 %v978, %v976
    %v1023 = vpack.c.b16 %v981, %v979
    %v1024 = vpack.c.b16 %v982, %v980
    %v1025 = vpack.c.b16 %v985, %v983
    %v1026 = vpack.c.b16 %v986, %v984
    %v1027 = vpack.c.b16 %v989, %v987
    %v1028 = vpack.c.b16 %v990, %v988
    %v1029 = vpack.c.b16 %v993, %v991
    %v1030 = vpack.c.b16 %v994, %v992
    %v1031 = vpack.c.b16 %v997, %v995
    %v1032 = vpack.c.b16 %v998, %v996
    %v1033 = vpack.c.b16 %v1001, %v999
    %v1034 = vpack.c.b16 %v1002, %v1000
    %1067 = vmatprep.subr.bf16.mxu0 %v1018
    %1068 = vmatpush1.bf16.msra.mxu0 %v1017
    %1069 = vmatprep.subr.bf16.mxu0 %v1016
    %1070 = vmatpush1.bf16.msra.mxu0 %v1015
    %1071 = vmatprep.subr.bf16.mxu0 %v1014
    %1072 = vmatpush1.bf16.msra.mxu0 %v1013
    %1073 = vmatprep.subr.bf16.mxu0 %v1012
    %1074 = vmatpush1.bf16.msra.mxu0 %v1011
    %1075 = vmatprep.subr.bf16.mxu0 %v1010
    %1076 = vmatpush1.bf16.msra.mxu0 %v1009
    %1077 = vmatprep.subr.bf16.mxu0 %v1008
    %1078 = vmatpush1.bf16.msra.mxu0 %v1007
    %1079 = vmatprep.subr.bf16.mxu0 %v1006
    %1080 = vmatpush1.bf16.msra.mxu0 %v1005
    %1081 = vmatprep.subr.bf16.mxu0 %v1004
    %1082 = vmatpush1.bf16.msra.mxu0 %v1003
    %1083 = vmatprep.subr.bf16.mxu0 %v1034
    %1084 = vmatpush2.bf16.msra.mxu0 %v1033
    %1085 = vmatprep.subr.bf16.mxu0 %v1032
    %1086 = vmatpush2.bf16.msra.mxu0 %v1031
    %1087 = vmatprep.subr.bf16.mxu0 %v1030
    %1088 = vmatpush2.bf16.msra.mxu0 %v1029
    %1089 = vmatprep.subr.bf16.mxu0 %v1028
    %1090 = vmatpush2.bf16.msra.mxu0 %v1027
    %1091 = vmatprep.subr.bf16.mxu0 %v1026
    %1092 = vmatpush2.bf16.msra.mxu0 %v1025
    %1093 = vmatprep.subr.bf16.mxu0 %v1024
    %1094 = vmatpush2.bf16.msra.mxu0 %v1023
    %1095 = vmatprep.subr.bf16.mxu0 %v1022
    %1096 = vmatpush2.bf16.msra.mxu0 %v1021
    %1097 = vmatprep.subr.bf16.mxu0 %v1020
    %1098 = vmatpush2.bf16.msra.mxu0 %v1019
    %1099 = vmatprep.mubr.bf16.mxu0 %v873
    %1100 = vmatmul.mubr.bf16.gmra.mxu0 %v872
    %v1101 = vpop.f32.mrf.mxu0
    %v1102 = vadd.f32 0.0, %v1101
    %v1103 = vpop.f32.mrf.mxu0
    %v1104 = vadd.f32 0.0, %v1103
    %v1105 = vpop.f32.mrf.mxu0
    %v1106 = vadd.f32 0.0, %v1105
    %v1107 = vpop.f32.mrf.mxu0
    %v1108 = vadd.f32 0.0, %v1107
    %1109 = vdwg.mxu0
    %v1110 = vadd.f32 %v864, %v1102
    %v1111 = vadd.f32 %v866, %v1104
    %v1112 = vadd.f32 %v868, %v1106
    %v1113 = vadd.f32 %v870, %v1108
    %v1114 = vld [vmem:[#allocation8] sm:$0x3]
    %v1116 = vlaneseq
    %v1117 = vshrl.u32 %v1116, 7
    %v1118 = vsub.s32 0, %v1117
    %v1119 = vrot.slane %v1114, %v1118
    %v1120 = vlaneseq
    %v1121 = vshrl.u32 %v1120, 7
    %v1122 = vsub.s32 1, %v1121
    %v1123 = vrot.slane %v1114, %v1122
    %v1126 = vadd.f32 %v1110, %v1119
    %v1127 = vadd.f32 %v1111, %v1123
    %v1128 = vadd.f32 %v1112, %v1119
    %v1129 = vadd.f32 %v1113, %v1123
    %v1130 = vmax.f32 %v1126, 0.0
    %v1131 = vmax.f32 %v1127, 0.0
    %v1132 = vmax.f32 %v1128, 0.0
    %v1133 = vmax.f32 %v1129, 0.0
    %v1134 = vpack.c.bf16 %v1130, %v1130
    %v1135 = vpack.c.bf16 %v1131, %v1131
    %v1136 = vld [vmem:[#allocation10] sm:$0xff]
    %v1137 = vld [vmem:[#allocation10 + $0x8] sm:$0xff]
    %v1138 = vld [vmem:[#allocation10 + $0x10] sm:$0xff]
    %v1139 = vld [vmem:[#allocation10 + $0x18] sm:$0xff]
    %v1140 = vld [vmem:[#allocation10 + $0x20] sm:$0xff]
    %v1141 = vld [vmem:[#allocation10 + $0x28] sm:$0xff]
    %v1142 = vld [vmem:[#allocation10 + $0x30] sm:$0xff]
    %v1143 = vld [vmem:[#allocation10 + $0x38] sm:$0xff]
    %v1144 = vld [vmem:[#allocation10 + $0x40] sm:$0xff]
    %v1145 = vld [vmem:[#allocation10 + $0x48] sm:$0xff]
    %v1146 = vld [vmem:[#allocation10 + $0x50] sm:$0xff]
    %v1147 = vld [vmem:[#allocation10 + $0x58] sm:$0xff]
    %v1148 = vld [vmem:[#allocation10 + $0x60] sm:$0xff]
    %v1149 = vld [vmem:[#allocation10 + $0x68] sm:$0xff]
    %v1150 = vld [vmem:[#allocation10 + $0x70] sm:$0xff]
    %v1151 = vld [vmem:[#allocation10 + $0x78] sm:$0xff]
    %v1152 = vld [vmem:[#allocation10 + $0x80] sm:$0xff]
    %v1153 = vld [vmem:[#allocation10 + $0x88] sm:$0xff]
    %v1154 = vld [vmem:[#allocation10 + $0x90] sm:$0xff]
    %v1155 = vld [vmem:[#allocation10 + $0x98] sm:$0xff]
    %v1156 = vld [vmem:[#allocation10 + $0xa0] sm:$0xff]
    %v1157 = vld [vmem:[#allocation10 + $0xa8] sm:$0xff]
    %v1158 = vld [vmem:[#allocation10 + $0xb0] sm:$0xff]
    %v1159 = vld [vmem:[#allocation10 + $0xb8] sm:$0xff]
    %v1160 = vld [vmem:[#allocation10 + $0xc0] sm:$0xff]
    %v1161 = vld [vmem:[#allocation10 + $0xc8] sm:$0xff]
    %v1162 = vld [vmem:[#allocation10 + $0xd0] sm:$0xff]
    %v1163 = vld [vmem:[#allocation10 + $0xd8] sm:$0xff]
    %v1164 = vld [vmem:[#allocation10 + $0xe0] sm:$0xff]
    %v1165 = vld [vmem:[#allocation10 + $0xe8] sm:$0xff]
    %v1166 = vld [vmem:[#allocation10 + $0xf0] sm:$0xff]
    %v1167 = vld [vmem:[#allocation10 + $0xf8] sm:$0xff]
    %v1168 = vld [vmem:[#allocation10 + $0x100] sm:$0xff]
    %v1169 = vld [vmem:[#allocation10 + $0x108] sm:$0xff]
    %v1170 = vld [vmem:[#allocation10 + $0x110] sm:$0xff]
    %v1171 = vld [vmem:[#allocation10 + $0x118] sm:$0xff]
    %v1172 = vld [vmem:[#allocation10 + $0x120] sm:$0xff]
    %v1173 = vld [vmem:[#allocation10 + $0x128] sm:$0xff]
    %v1174 = vld [vmem:[#allocation10 + $0x130] sm:$0xff]
    %v1175 = vld [vmem:[#allocation10 + $0x138] sm:$0xff]
    %v1176 = vld [vmem:[#allocation10 + $0x140] sm:$0xff]
    %v1177 = vld [vmem:[#allocation10 + $0x148] sm:$0xff]
    %v1178 = vld [vmem:[#allocation10 + $0x150] sm:$0xff]
    %v1179 = vld [vmem:[#allocation10 + $0x158] sm:$0xff]
    %v1180 = vld [vmem:[#allocation10 + $0x160] sm:$0xff]
    %v1181 = vld [vmem:[#allocation10 + $0x168] sm:$0xff]
    %v1182 = vld [vmem:[#allocation10 + $0x170] sm:$0xff]
    %v1183 = vld [vmem:[#allocation10 + $0x178] sm:$0xff]
    %v1184 = vld [vmem:[#allocation10 + $0x180] sm:$0xff]
    %v1185 = vld [vmem:[#allocation10 + $0x188] sm:$0xff]
    %v1186 = vld [vmem:[#allocation10 + $0x190] sm:$0xff]
    %v1187 = vld [vmem:[#allocation10 + $0x198] sm:$0xff]
    %v1188 = vld [vmem:[#allocation10 + $0x1a0] sm:$0xff]
    %v1189 = vld [vmem:[#allocation10 + $0x1a8] sm:$0xff]
    %v1190 = vld [vmem:[#allocation10 + $0x1b0] sm:$0xff]
    %v1191 = vld [vmem:[#allocation10 + $0x1b8] sm:$0xff]
    %v1192 = vld [vmem:[#allocation10 + $0x1c0] sm:$0xff]
    %v1193 = vld [vmem:[#allocation10 + $0x1c8] sm:$0xff]
    %v1194 = vld [vmem:[#allocation10 + $0x1d0] sm:$0xff]
    %v1195 = vld [vmem:[#allocation10 + $0x1d8] sm:$0xff]
    %v1196 = vld [vmem:[#allocation10 + $0x1e0] sm:$0xff]
    %v1197 = vld [vmem:[#allocation10 + $0x1e8] sm:$0xff]
    %v1198 = vld [vmem:[#allocation10 + $0x1f0] sm:$0xff]
    %v1199 = vld [vmem:[#allocation10 + $0x1f8] sm:$0xff]
    %s1200 = scalar_lea.vmem [#allocation10], 512
    %v1201 = vld [vmem:[%s1200] sm:$0xff]
    %v1202 = vld [vmem:[%s1200 + $0x8] sm:$0xff]
    %v1203 = vld [vmem:[%s1200 + $0x10] sm:$0xff]
    %v1204 = vld [vmem:[%s1200 + $0x18] sm:$0xff]
    %v1205 = vld [vmem:[%s1200 + $0x20] sm:$0xff]
    %v1206 = vld [vmem:[%s1200 + $0x28] sm:$0xff]
    %v1207 = vld [vmem:[%s1200 + $0x30] sm:$0xff]
    %v1208 = vld [vmem:[%s1200 + $0x38] sm:$0xff]
    %v1209 = vld [vmem:[%s1200 + $0x40] sm:$0xff]
    %v1210 = vld [vmem:[%s1200 + $0x48] sm:$0xff]
    %v1211 = vld [vmem:[%s1200 + $0x50] sm:$0xff]
    %v1212 = vld [vmem:[%s1200 + $0x58] sm:$0xff]
    %v1213 = vld [vmem:[%s1200 + $0x60] sm:$0xff]
    %v1214 = vld [vmem:[%s1200 + $0x68] sm:$0xff]
    %v1215 = vld [vmem:[%s1200 + $0x70] sm:$0xff]
    %v1216 = vld [vmem:[%s1200 + $0x78] sm:$0xff]
    %v1217 = vld [vmem:[%s1200 + $0x80] sm:$0xff]
    %v1218 = vld [vmem:[%s1200 + $0x88] sm:$0xff]
    %v1219 = vld [vmem:[%s1200 + $0x90] sm:$0xff]
    %v1220 = vld [vmem:[%s1200 + $0x98] sm:$0xff]
    %v1221 = vld [vmem:[%s1200 + $0xa0] sm:$0xff]
    %v1222 = vld [vmem:[%s1200 + $0xa8] sm:$0xff]
    %v1223 = vld [vmem:[%s1200 + $0xb0] sm:$0xff]
    %v1224 = vld [vmem:[%s1200 + $0xb8] sm:$0xff]
    %v1225 = vld [vmem:[%s1200 + $0xc0] sm:$0xff]
    %v1226 = vld [vmem:[%s1200 + $0xc8] sm:$0xff]
    %v1227 = vld [vmem:[%s1200 + $0xd0] sm:$0xff]
    %v1228 = vld [vmem:[%s1200 + $0xd8] sm:$0xff]
    %v1229 = vld [vmem:[%s1200 + $0xe0] sm:$0xff]
    %v1230 = vld [vmem:[%s1200 + $0xe8] sm:$0xff]
    %v1231 = vld [vmem:[%s1200 + $0xf0] sm:$0xff]
    %v1232 = vld [vmem:[%s1200 + $0xf8] sm:$0xff]
    %v1233 = vld [vmem:[%s1200 + $0x100] sm:$0xff]
    %v1234 = vld [vmem:[%s1200 + $0x108] sm:$0xff]
    %v1235 = vld [vmem:[%s1200 + $0x110] sm:$0xff]
    %v1236 = vld [vmem:[%s1200 + $0x118] sm:$0xff]
    %v1237 = vld [vmem:[%s1200 + $0x120] sm:$0xff]
    %v1238 = vld [vmem:[%s1200 + $0x128] sm:$0xff]
    %v1239 = vld [vmem:[%s1200 + $0x130] sm:$0xff]
    %v1240 = vld [vmem:[%s1200 + $0x138] sm:$0xff]
    %v1241 = vld [vmem:[%s1200 + $0x140] sm:$0xff]
    %v1242 = vld [vmem:[%s1200 + $0x148] sm:$0xff]
    %v1243 = vld [vmem:[%s1200 + $0x150] sm:$0xff]
    %v1244 = vld [vmem:[%s1200 + $0x158] sm:$0xff]
    %v1245 = vld [vmem:[%s1200 + $0x160] sm:$0xff]
    %v1246 = vld [vmem:[%s1200 + $0x168] sm:$0xff]
    %v1247 = vld [vmem:[%s1200 + $0x170] sm:$0xff]
    %v1248 = vld [vmem:[%s1200 + $0x178] sm:$0xff]
    %v1249 = vld [vmem:[%s1200 + $0x180] sm:$0xff]
    %v1250 = vld [vmem:[%s1200 + $0x188] sm:$0xff]
    %v1251 = vld [vmem:[%s1200 + $0x190] sm:$0xff]
    %v1252 = vld [vmem:[%s1200 + $0x198] sm:$0xff]
    %v1253 = vld [vmem:[%s1200 + $0x1a0] sm:$0xff]
    %v1254 = vld [vmem:[%s1200 + $0x1a8] sm:$0xff]
    %v1255 = vld [vmem:[%s1200 + $0x1b0] sm:$0xff]
    %v1256 = vld [vmem:[%s1200 + $0x1b8] sm:$0xff]
    %v1257 = vld [vmem:[%s1200 + $0x1c0] sm:$0xff]
    %v1258 = vld [vmem:[%s1200 + $0x1c8] sm:$0xff]
    %v1259 = vld [vmem:[%s1200 + $0x1d0] sm:$0xff]
    %v1260 = vld [vmem:[%s1200 + $0x1d8] sm:$0xff]
    %v1261 = vld [vmem:[%s1200 + $0x1e0] sm:$0xff]
    %v1262 = vld [vmem:[%s1200 + $0x1e8] sm:$0xff]
    %v1263 = vld [vmem:[%s1200 + $0x1f0] sm:$0xff]
    %v1264 = vld [vmem:[%s1200 + $0x1f8] sm:$0xff]
    %v1267 = vrot.slane %v1134, 1
    %v1268 = vrot.slane %v1135, 1
    %v1335 = vunpack.c.l.b16 %v1201
    %v1336 = vunpack.c.h.b16 %v1201
    %v1337 = vunpack.c.l.b16 %v1202
    %v1338 = vunpack.c.h.b16 %v1202
    %v1339 = vunpack.c.l.b16 %v1203
    %v1340 = vunpack.c.h.b16 %v1203
    %v1341 = vunpack.c.l.b16 %v1204
    %v1342 = vunpack.c.h.b16 %v1204
    %v1343 = vunpack.c.l.b16 %v1205
    %v1344 = vunpack.c.h.b16 %v1205
    %v1345 = vunpack.c.l.b16 %v1206
    %v1346 = vunpack.c.h.b16 %v1206
    %v1347 = vunpack.c.l.b16 %v1207
    %v1348 = vunpack.c.h.b16 %v1207
    %v1349 = vunpack.c.l.b16 %v1208
    %v1350 = vunpack.c.h.b16 %v1208
    %v1351 = vunpack.c.l.b16 %v1209
    %v1352 = vunpack.c.h.b16 %v1209
    %v1353 = vunpack.c.l.b16 %v1210
    %v1354 = vunpack.c.h.b16 %v1210
    %v1355 = vunpack.c.l.b16 %v1211
    %v1356 = vunpack.c.h.b16 %v1211
    %v1357 = vunpack.c.l.b16 %v1212
    %v1358 = vunpack.c.h.b16 %v1212
    %v1359 = vunpack.c.l.b16 %v1213
    %v1360 = vunpack.c.h.b16 %v1213
    %v1361 = vunpack.c.l.b16 %v1214
    %v1362 = vunpack.c.h.b16 %v1214
    %v1363 = vunpack.c.l.b16 %v1215
    %v1364 = vunpack.c.h.b16 %v1215
    %v1365 = vunpack.c.l.b16 %v1216
    %v1366 = vunpack.c.h.b16 %v1216
    %v1367 = vunpack.c.l.b16 %v1217
    %v1368 = vunpack.c.h.b16 %v1217
    %v1369 = vunpack.c.l.b16 %v1218
    %v1370 = vunpack.c.h.b16 %v1218
    %v1371 = vunpack.c.l.b16 %v1219
    %v1372 = vunpack.c.h.b16 %v1219
    %v1373 = vunpack.c.l.b16 %v1220
    %v1374 = vunpack.c.h.b16 %v1220
    %v1375 = vunpack.c.l.b16 %v1221
    %v1376 = vunpack.c.h.b16 %v1221
    %v1377 = vunpack.c.l.b16 %v1222
    %v1378 = vunpack.c.h.b16 %v1222
    %v1379 = vunpack.c.l.b16 %v1223
    %v1380 = vunpack.c.h.b16 %v1223
    %v1381 = vunpack.c.l.b16 %v1224
    %v1382 = vunpack.c.h.b16 %v1224
    %v1383 = vunpack.c.l.b16 %v1225
    %v1384 = vunpack.c.h.b16 %v1225
    %v1385 = vunpack.c.l.b16 %v1226
    %v1386 = vunpack.c.h.b16 %v1226
    %v1387 = vunpack.c.l.b16 %v1227
    %v1388 = vunpack.c.h.b16 %v1227
    %v1389 = vunpack.c.l.b16 %v1228
    %v1390 = vunpack.c.h.b16 %v1228
    %v1391 = vunpack.c.l.b16 %v1229
    %v1392 = vunpack.c.h.b16 %v1229
    %v1393 = vunpack.c.l.b16 %v1230
    %v1394 = vunpack.c.h.b16 %v1230
    %v1395 = vunpack.c.l.b16 %v1231
    %v1396 = vunpack.c.h.b16 %v1231
    %v1397 = vunpack.c.l.b16 %v1232
    %v1398 = vunpack.c.h.b16 %v1232
    %v1399 = vunpack.c.l.b16 %v1233
    %v1400 = vunpack.c.h.b16 %v1233
    %v1401 = vunpack.c.l.b16 %v1234
    %v1402 = vunpack.c.h.b16 %v1234
    %v1403 = vunpack.c.l.b16 %v1235
    %v1404 = vunpack.c.h.b16 %v1235
    %v1405 = vunpack.c.l.b16 %v1236
    %v1406 = vunpack.c.h.b16 %v1236
    %v1407 = vunpack.c.l.b16 %v1237
    %v1408 = vunpack.c.h.b16 %v1237
    %v1409 = vunpack.c.l.b16 %v1238
    %v1410 = vunpack.c.h.b16 %v1238
    %v1411 = vunpack.c.l.b16 %v1239
    %v1412 = vunpack.c.h.b16 %v1239
    %v1413 = vunpack.c.l.b16 %v1240
    %v1414 = vunpack.c.h.b16 %v1240
    %v1415 = vunpack.c.l.b16 %v1241
    %v1416 = vunpack.c.h.b16 %v1241
    %v1417 = vunpack.c.l.b16 %v1242
    %v1418 = vunpack.c.h.b16 %v1242
    %v1419 = vunpack.c.l.b16 %v1243
    %v1420 = vunpack.c.h.b16 %v1243
    %v1421 = vunpack.c.l.b16 %v1244
    %v1422 = vunpack.c.h.b16 %v1244
    %v1423 = vunpack.c.l.b16 %v1245
    %v1424 = vunpack.c.h.b16 %v1245
    %v1425 = vunpack.c.l.b16 %v1246
    %v1426 = vunpack.c.h.b16 %v1246
    %v1427 = vunpack.c.l.b16 %v1247
    %v1428 = vunpack.c.h.b16 %v1247
    %v1429 = vunpack.c.l.b16 %v1248
    %v1430 = vunpack.c.h.b16 %v1248
    %v1431 = vunpack.c.l.b16 %v1249
    %v1432 = vunpack.c.h.b16 %v1249
    %v1433 = vunpack.c.l.b16 %v1250
    %v1434 = vunpack.c.h.b16 %v1250
    %v1435 = vunpack.c.l.b16 %v1251
    %v1436 = vunpack.c.h.b16 %v1251
    %v1437 = vunpack.c.l.b16 %v1252
    %v1438 = vunpack.c.h.b16 %v1252
    %v1439 = vunpack.c.l.b16 %v1253
    %v1440 = vunpack.c.h.b16 %v1253
    %v1441 = vunpack.c.l.b16 %v1254
    %v1442 = vunpack.c.h.b16 %v1254
    %v1443 = vunpack.c.l.b16 %v1255
    %v1444 = vunpack.c.h.b16 %v1255
    %v1445 = vunpack.c.l.b16 %v1256
    %v1446 = vunpack.c.h.b16 %v1256
    %v1447 = vunpack.c.l.b16 %v1257
    %v1448 = vunpack.c.h.b16 %v1257
    %v1449 = vunpack.c.l.b16 %v1258
    %v1450 = vunpack.c.h.b16 %v1258
    %v1451 = vunpack.c.l.b16 %v1259
    %v1452 = vunpack.c.h.b16 %v1259
    %v1453 = vunpack.c.l.b16 %v1260
    %v1454 = vunpack.c.h.b16 %v1260
    %v1455 = vunpack.c.l.b16 %v1261
    %v1456 = vunpack.c.h.b16 %v1261
    %v1457 = vunpack.c.l.b16 %v1262
    %v1458 = vunpack.c.h.b16 %v1262
    %v1459 = vunpack.c.l.b16 %v1263
    %v1460 = vunpack.c.h.b16 %v1263
    %v1461 = vunpack.c.l.b16 %v1264
    %v1462 = vunpack.c.h.b16 %v1264
    %v1463 = vpack.c.b16 %v1339, %v1335
    %v1464 = vpack.c.b16 %v1340, %v1336
    %v1465 = vpack.c.b16 %v1341, %v1337
    %v1466 = vpack.c.b16 %v1342, %v1338
    %v1467 = vpack.c.b16 %v1347, %v1343
    %v1468 = vpack.c.b16 %v1348, %v1344
    %v1469 = vpack.c.b16 %v1349, %v1345
    %v1470 = vpack.c.b16 %v1350, %v1346
    %v1471 = vpack.c.b16 %v1355, %v1351
    %v1472 = vpack.c.b16 %v1356, %v1352
    %v1473 = vpack.c.b16 %v1357, %v1353
    %v1474 = vpack.c.b16 %v1358, %v1354
    %v1475 = vpack.c.b16 %v1363, %v1359
    %v1476 = vpack.c.b16 %v1364, %v1360
    %v1477 = vpack.c.b16 %v1365, %v1361
    %v1478 = vpack.c.b16 %v1366, %v1362
    %v1479 = vpack.c.b16 %v1371, %v1367
    %v1480 = vpack.c.b16 %v1372, %v1368
    %v1481 = vpack.c.b16 %v1373, %v1369
    %v1482 = vpack.c.b16 %v1374, %v1370
    %v1483 = vpack.c.b16 %v1379, %v1375
    %v1484 = vpack.c.b16 %v1380, %v1376
    %v1485 = vpack.c.b16 %v1381, %v1377
    %v1486 = vpack.c.b16 %v1382, %v1378
    %v1487 = vpack.c.b16 %v1387, %v1383
    %v1488 = vpack.c.b16 %v1388, %v1384
    %v1489 = vpack.c.b16 %v1389, %v1385
    %v1490 = vpack.c.b16 %v1390, %v1386
    %v1491 = vpack.c.b16 %v1395, %v1391
    %v1492 = vpack.c.b16 %v1396, %v1392
    %v1493 = vpack.c.b16 %v1397, %v1393
    %v1494 = vpack.c.b16 %v1398, %v1394
    %v1495 = vpack.c.b16 %v1403, %v1399
    %v1496 = vpack.c.b16 %v1404, %v1400
    %v1497 = vpack.c.b16 %v1405, %v1401
    %v1498 = vpack.c.b16 %v1406, %v1402
    %v1499 = vpack.c.b16 %v1411, %v1407
    %v1500 = vpack.c.b16 %v1412, %v1408
    %v1501 = vpack.c.b16 %v1413, %v1409
    %v1502 = vpack.c.b16 %v1414, %v1410
    %v1503 = vpack.c.b16 %v1419, %v1415
    %v1504 = vpack.c.b16 %v1420, %v1416
    %v1505 = vpack.c.b16 %v1421, %v1417
    %v1506 = vpack.c.b16 %v1422, %v1418
    %v1507 = vpack.c.b16 %v1427, %v1423
    %v1508 = vpack.c.b16 %v1428, %v1424
    %v1509 = vpack.c.b16 %v1429, %v1425
    %v1510 = vpack.c.b16 %v1430, %v1426
    %v1511 = vpack.c.b16 %v1435, %v1431
    %v1512 = vpack.c.b16 %v1436, %v1432
    %v1513 = vpack.c.b16 %v1437, %v1433
    %v1514 = vpack.c.b16 %v1438, %v1434
    %v1515 = vpack.c.b16 %v1443, %v1439
    %v1516 = vpack.c.b16 %v1444, %v1440
    %v1517 = vpack.c.b16 %v1445, %v1441
    %v1518 = vpack.c.b16 %v1446, %v1442
    %v1519 = vpack.c.b16 %v1451, %v1447
    %v1520 = vpack.c.b16 %v1452, %v1448
    %v1521 = vpack.c.b16 %v1453, %v1449
    %v1522 = vpack.c.b16 %v1454, %v1450
    %v1523 = vpack.c.b16 %v1459, %v1455
    %v1524 = vpack.c.b16 %v1460, %v1456
    %v1525 = vpack.c.b16 %v1461, %v1457
    %v1526 = vpack.c.b16 %v1462, %v1458
    %1591 = vmatprep.subr.bf16.mxu0 %v1492
    %1592 = vmatpush1.bf16.msra.mxu0 %v1491
    %1593 = vmatprep.subr.bf16.mxu0 %v1488
    %1594 = vmatpush1.bf16.msra.mxu0 %v1487
    %1595 = vmatprep.subr.bf16.mxu0 %v1484
    %1596 = vmatpush1.bf16.msra.mxu0 %v1483
    %1597 = vmatprep.subr.bf16.mxu0 %v1480
    %1598 = vmatpush1.bf16.msra.mxu0 %v1479
    %1599 = vmatprep.subr.bf16.mxu0 %v1476
    %1600 = vmatpush1.bf16.msra.mxu0 %v1475
    %1601 = vmatprep.subr.bf16.mxu0 %v1472
    %1602 = vmatpush1.bf16.msra.mxu0 %v1471
    %1603 = vmatprep.subr.bf16.mxu0 %v1468
    %1604 = vmatpush1.bf16.msra.mxu0 %v1467
    %1605 = vmatprep.subr.bf16.mxu0 %v1464
    %1606 = vmatpush1.bf16.msra.mxu0 %v1463
    %1607 = vmatprep.subr.bf16.mxu0 %v1524
    %1608 = vmatpush2.bf16.msra.mxu0 %v1523
    %1609 = vmatprep.subr.bf16.mxu0 %v1520
    %1610 = vmatpush2.bf16.msra.mxu0 %v1519
    %1611 = vmatprep.subr.bf16.mxu0 %v1516
    %1612 = vmatpush2.bf16.msra.mxu0 %v1515
    %1613 = vmatprep.subr.bf16.mxu0 %v1512
    %1614 = vmatpush2.bf16.msra.mxu0 %v1511
    %1615 = vmatprep.subr.bf16.mxu0 %v1508
    %1616 = vmatpush2.bf16.msra.mxu0 %v1507
    %1617 = vmatprep.subr.bf16.mxu0 %v1504
    %1618 = vmatpush2.bf16.msra.mxu0 %v1503
    %1619 = vmatprep.subr.bf16.mxu0 %v1500
    %1620 = vmatpush2.bf16.msra.mxu0 %v1499
    %1621 = vmatprep.subr.bf16.mxu0 %v1496
    %1622 = vmatpush2.bf16.msra.mxu0 %v1495
    %1623 = vmatprep.mubr.bf16.mxu0 %v1268
    %1624 = vmatmul.mubr.bf16.gmra.mxu0 %v1267
    %v1625 = vpop.f32.mrf.mxu0
    %v1626 = vadd.f32 0.0, %v1625
    %v1627 = vpop.f32.mrf.mxu0
    %v1628 = vadd.f32 0.0, %v1627
    %v1629 = vpop.f32.mrf.mxu0
    %v1630 = vpop.f32.mrf.mxu0
    %1631 = vdwg.mxu0
    %1632 = vmatprep.subr.bf16.mxu0 %v1494
    %1633 = vmatpush1.bf16.msra.mxu0 %v1493
    %1634 = vmatprep.subr.bf16.mxu0 %v1490
    %1635 = vmatpush1.bf16.msra.mxu0 %v1489
    %1636 = vmatprep.subr.bf16.mxu0 %v1486
    %1637 = vmatpush1.bf16.msra.mxu0 %v1485
    %1638 = vmatprep.subr.bf16.mxu0 %v1482
    %1639 = vmatpush1.bf16.msra.mxu0 %v1481
    %1640 = vmatprep.subr.bf16.mxu0 %v1478
    %1641 = vmatpush1.bf16.msra.mxu0 %v1477
    %1642 = vmatprep.subr.bf16.mxu0 %v1474
    %1643 = vmatpush1.bf16.msra.mxu0 %v1473
    %1644 = vmatprep.subr.bf16.mxu0 %v1470
    %1645 = vmatpush1.bf16.msra.mxu0 %v1469
    %1646 = vmatprep.subr.bf16.mxu0 %v1466
    %1647 = vmatpush1.bf16.msra.mxu0 %v1465
    %1648 = vmatprep.subr.bf16.mxu0 %v1526
    %1649 = vmatpush2.bf16.msra.mxu0 %v1525
    %1650 = vmatprep.subr.bf16.mxu0 %v1522
    %1651 = vmatpush2.bf16.msra.mxu0 %v1521
    %1652 = vmatprep.subr.bf16.mxu0 %v1518
    %1653 = vmatpush2.bf16.msra.mxu0 %v1517
    %1654 = vmatprep.subr.bf16.mxu0 %v1514
    %1655 = vmatpush2.bf16.msra.mxu0 %v1513
    %1656 = vmatprep.subr.bf16.mxu0 %v1510
    %1657 = vmatpush2.bf16.msra.mxu0 %v1509
    %1658 = vmatprep.subr.bf16.mxu0 %v1506
    %1659 = vmatpush2.bf16.msra.mxu0 %v1505
    %1660 = vmatprep.subr.bf16.mxu0 %v1502
    %1661 = vmatpush2.bf16.msra.mxu0 %v1501
    %1662 = vmatprep.subr.bf16.mxu0 %v1498
    %1663 = vmatpush2.bf16.msra.mxu0 %v1497
    %1664 = vmatprep.mubr.bf16.mxu0 %v1268
    %1665 = vmatmul.mubr.bf16.gmra.mxu0 %v1267
    %v1666 = vpop.f32.mrf.mxu0
    %v1667 = vadd.f32 0.0, %v1666
    %v1668 = vpop.f32.mrf.mxu0
    %v1669 = vadd.f32 0.0, %v1668
    %v1670 = vpop.f32.mrf.mxu0
    %v1671 = vpop.f32.mrf.mxu0
    %1672 = vdwg.mxu0
    %v1737 = vunpack.c.l.b16 %v1136
    %v1738 = vunpack.c.h.b16 %v1136
    %v1739 = vunpack.c.l.b16 %v1137
    %v1740 = vunpack.c.h.b16 %v1137
    %v1741 = vunpack.c.l.b16 %v1138
    %v1742 = vunpack.c.h.b16 %v1138
    %v1743 = vunpack.c.l.b16 %v1139
    %v1744 = vunpack.c.h.b16 %v1139
    %v1745 = vunpack.c.l.b16 %v1140
    %v1746 = vunpack.c.h.b16 %v1140
    %v1747 = vunpack.c.l.b16 %v1141
    %v1748 = vunpack.c.h.b16 %v1141
    %v1749 = vunpack.c.l.b16 %v1142
    %v1750 = vunpack.c.h.b16 %v1142
    %v1751 = vunpack.c.l.b16 %v1143
    %v1752 = vunpack.c.h.b16 %v1143
    %v1753 = vunpack.c.l.b16 %v1144
    %v1754 = vunpack.c.h.b16 %v1144
    %v1755 = vunpack.c.l.b16 %v1145
    %v1756 = vunpack.c.h.b16 %v1145
    %v1757 = vunpack.c.l.b16 %v1146
    %v1758 = vunpack.c.h.b16 %v1146
    %v1759 = vunpack.c.l.b16 %v1147
    %v1760 = vunpack.c.h.b16 %v1147
    %v1761 = vunpack.c.l.b16 %v1148
    %v1762 = vunpack.c.h.b16 %v1148
    %v1763 = vunpack.c.l.b16 %v1149
    %v1764 = vunpack.c.h.b16 %v1149
    %v1765 = vunpack.c.l.b16 %v1150
    %v1766 = vunpack.c.h.b16 %v1150
    %v1767 = vunpack.c.l.b16 %v1151
    %v1768 = vunpack.c.h.b16 %v1151
    %v1769 = vunpack.c.l.b16 %v1152
    %v1770 = vunpack.c.h.b16 %v1152
    %v1771 = vunpack.c.l.b16 %v1153
    %v1772 = vunpack.c.h.b16 %v1153
    %v1773 = vunpack.c.l.b16 %v1154
    %v1774 = vunpack.c.h.b16 %v1154
    %v1775 = vunpack.c.l.b16 %v1155
    %v1776 = vunpack.c.h.b16 %v1155
    %v1777 = vunpack.c.l.b16 %v1156
    %v1778 = vunpack.c.h.b16 %v1156
    %v1779 = vunpack.c.l.b16 %v1157
    %v1780 = vunpack.c.h.b16 %v1157
    %v1781 = vunpack.c.l.b16 %v1158
    %v1782 = vunpack.c.h.b16 %v1158
    %v1783 = vunpack.c.l.b16 %v1159
    %v1784 = vunpack.c.h.b16 %v1159
    %v1785 = vunpack.c.l.b16 %v1160
    %v1786 = vunpack.c.h.b16 %v1160
    %v1787 = vunpack.c.l.b16 %v1161
    %v1788 = vunpack.c.h.b16 %v1161
    %v1789 = vunpack.c.l.b16 %v1162
    %v1790 = vunpack.c.h.b16 %v1162
    %v1791 = vunpack.c.l.b16 %v1163
    %v1792 = vunpack.c.h.b16 %v1163
    %v1793 = vunpack.c.l.b16 %v1164
    %v1794 = vunpack.c.h.b16 %v1164
    %v1795 = vunpack.c.l.b16 %v1165
    %v1796 = vunpack.c.h.b16 %v1165
    %v1797 = vunpack.c.l.b16 %v1166
    %v1798 = vunpack.c.h.b16 %v1166
    %v1799 = vunpack.c.l.b16 %v1167
    %v1800 = vunpack.c.h.b16 %v1167
    %v1801 = vunpack.c.l.b16 %v1168
    %v1802 = vunpack.c.h.b16 %v1168
    %v1803 = vunpack.c.l.b16 %v1169
    %v1804 = vunpack.c.h.b16 %v1169
    %v1805 = vunpack.c.l.b16 %v1170
    %v1806 = vunpack.c.h.b16 %v1170
    %v1807 = vunpack.c.l.b16 %v1171
    %v1808 = vunpack.c.h.b16 %v1171
    %v1809 = vunpack.c.l.b16 %v1172
    %v1810 = vunpack.c.h.b16 %v1172
    %v1811 = vunpack.c.l.b16 %v1173
    %v1812 = vunpack.c.h.b16 %v1173
    %v1813 = vunpack.c.l.b16 %v1174
    %v1814 = vunpack.c.h.b16 %v1174
    %v1815 = vunpack.c.l.b16 %v1175
    %v1816 = vunpack.c.h.b16 %v1175
    %v1817 = vunpack.c.l.b16 %v1176
    %v1818 = vunpack.c.h.b16 %v1176
    %v1819 = vunpack.c.l.b16 %v1177
    %v1820 = vunpack.c.h.b16 %v1177
    %v1821 = vunpack.c.l.b16 %v1178
    %v1822 = vunpack.c.h.b16 %v1178
    %v1823 = vunpack.c.l.b16 %v1179
    %v1824 = vunpack.c.h.b16 %v1179
    %v1825 = vunpack.c.l.b16 %v1180
    %v1826 = vunpack.c.h.b16 %v1180
    %v1827 = vunpack.c.l.b16 %v1181
    %v1828 = vunpack.c.h.b16 %v1181
    %v1829 = vunpack.c.l.b16 %v1182
    %v1830 = vunpack.c.h.b16 %v1182
    %v1831 = vunpack.c.l.b16 %v1183
    %v1832 = vunpack.c.h.b16 %v1183
    %v1833 = vunpack.c.l.b16 %v1184
    %v1834 = vunpack.c.h.b16 %v1184
    %v1835 = vunpack.c.l.b16 %v1185
    %v1836 = vunpack.c.h.b16 %v1185
    %v1837 = vunpack.c.l.b16 %v1186
    %v1838 = vunpack.c.h.b16 %v1186
    %v1839 = vunpack.c.l.b16 %v1187
    %v1840 = vunpack.c.h.b16 %v1187
    %v1841 = vunpack.c.l.b16 %v1188
    %v1842 = vunpack.c.h.b16 %v1188
    %v1843 = vunpack.c.l.b16 %v1189
    %v1844 = vunpack.c.h.b16 %v1189
    %v1845 = vunpack.c.l.b16 %v1190
    %v1846 = vunpack.c.h.b16 %v1190
    %v1847 = vunpack.c.l.b16 %v1191
    %v1848 = vunpack.c.h.b16 %v1191
    %v1849 = vunpack.c.l.b16 %v1192
    %v1850 = vunpack.c.h.b16 %v1192
    %v1851 = vunpack.c.l.b16 %v1193
    %v1852 = vunpack.c.h.b16 %v1193
    %v1853 = vunpack.c.l.b16 %v1194
    %v1854 = vunpack.c.h.b16 %v1194
    %v1855 = vunpack.c.l.b16 %v1195
    %v1856 = vunpack.c.h.b16 %v1195
    %v1857 = vunpack.c.l.b16 %v1196
    %v1858 = vunpack.c.h.b16 %v1196
    %v1859 = vunpack.c.l.b16 %v1197
    %v1860 = vunpack.c.h.b16 %v1197
    %v1861 = vunpack.c.l.b16 %v1198
    %v1862 = vunpack.c.h.b16 %v1198
    %v1863 = vunpack.c.l.b16 %v1199
    %v1864 = vunpack.c.h.b16 %v1199
    %v1865 = vpack.c.b16 %v1741, %v1737
    %v1866 = vpack.c.b16 %v1742, %v1738
    %v1867 = vpack.c.b16 %v1743, %v1739
    %v1868 = vpack.c.b16 %v1744, %v1740
    %v1869 = vpack.c.b16 %v1749, %v1745
    %v1870 = vpack.c.b16 %v1750, %v1746
    %v1871 = vpack.c.b16 %v1751, %v1747
    %v1872 = vpack.c.b16 %v1752, %v1748
    %v1873 = vpack.c.b16 %v1757, %v1753
    %v1874 = vpack.c.b16 %v1758, %v1754
    %v1875 = vpack.c.b16 %v1759, %v1755
    %v1876 = vpack.c.b16 %v1760, %v1756
    %v1877 = vpack.c.b16 %v1765, %v1761
    %v1878 = vpack.c.b16 %v1766, %v1762
    %v1879 = vpack.c.b16 %v1767, %v1763
    %v1880 = vpack.c.b16 %v1768, %v1764
    %v1881 = vpack.c.b16 %v1773, %v1769
    %v1882 = vpack.c.b16 %v1774, %v1770
    %v1883 = vpack.c.b16 %v1775, %v1771
    %v1884 = vpack.c.b16 %v1776, %v1772
    %v1885 = vpack.c.b16 %v1781, %v1777
    %v1886 = vpack.c.b16 %v1782, %v1778
    %v1887 = vpack.c.b16 %v1783, %v1779
    %v1888 = vpack.c.b16 %v1784, %v1780
    %v1889 = vpack.c.b16 %v1789, %v1785
    %v1890 = vpack.c.b16 %v1790, %v1786
    %v1891 = vpack.c.b16 %v1791, %v1787
    %v1892 = vpack.c.b16 %v1792, %v1788
    %v1893 = vpack.c.b16 %v1797, %v1793
    %v1894 = vpack.c.b16 %v1798, %v1794
    %v1895 = vpack.c.b16 %v1799, %v1795
    %v1896 = vpack.c.b16 %v1800, %v1796
    %v1897 = vpack.c.b16 %v1805, %v1801
    %v1898 = vpack.c.b16 %v1806, %v1802
    %v1899 = vpack.c.b16 %v1807, %v1803
    %v1900 = vpack.c.b16 %v1808, %v1804
    %v1901 = vpack.c.b16 %v1813, %v1809
    %v1902 = vpack.c.b16 %v1814, %v1810
    %v1903 = vpack.c.b16 %v1815, %v1811
    %v1904 = vpack.c.b16 %v1816, %v1812
    %v1905 = vpack.c.b16 %v1821, %v1817
    %v1906 = vpack.c.b16 %v1822, %v1818
    %v1907 = vpack.c.b16 %v1823, %v1819
    %v1908 = vpack.c.b16 %v1824, %v1820
    %v1909 = vpack.c.b16 %v1829, %v1825
    %v1910 = vpack.c.b16 %v1830, %v1826
    %v1911 = vpack.c.b16 %v1831, %v1827
    %v1912 = vpack.c.b16 %v1832, %v1828
    %v1913 = vpack.c.b16 %v1837, %v1833
    %v1914 = vpack.c.b16 %v1838, %v1834
    %v1915 = vpack.c.b16 %v1839, %v1835
    %v1916 = vpack.c.b16 %v1840, %v1836
    %v1917 = vpack.c.b16 %v1845, %v1841
    %v1918 = vpack.c.b16 %v1846, %v1842
    %v1919 = vpack.c.b16 %v1847, %v1843
    %v1920 = vpack.c.b16 %v1848, %v1844
    %v1921 = vpack.c.b16 %v1853, %v1849
    %v1922 = vpack.c.b16 %v1854, %v1850
    %v1923 = vpack.c.b16 %v1855, %v1851
    %v1924 = vpack.c.b16 %v1856, %v1852
    %v1925 = vpack.c.b16 %v1861, %v1857
    %v1926 = vpack.c.b16 %v1862, %v1858
    %v1927 = vpack.c.b16 %v1863, %v1859
    %v1928 = vpack.c.b16 %v1864, %v1860
    %1993 = vmatprep.subr.bf16.mxu0 %v1894
    %1994 = vmatpush1.bf16.msra.mxu0 %v1893
    %1995 = vmatprep.subr.bf16.mxu0 %v1890
    %1996 = vmatpush1.bf16.msra.mxu0 %v1889
    %1997 = vmatprep.subr.bf16.mxu0 %v1886
    %1998 = vmatpush1.bf16.msra.mxu0 %v1885
    %1999 = vmatprep.subr.bf16.mxu0 %v1882
    %2000 = vmatpush1.bf16.msra.mxu0 %v1881
    %2001 = vmatprep.subr.bf16.mxu0 %v1878
    %2002 = vmatpush1.bf16.msra.mxu0 %v1877
    %2003 = vmatprep.subr.bf16.mxu0 %v1874
    %2004 = vmatpush1.bf16.msra.mxu0 %v1873
    %2005 = vmatprep.subr.bf16.mxu0 %v1870
    %2006 = vmatpush1.bf16.msra.mxu0 %v1869
    %2007 = vmatprep.subr.bf16.mxu0 %v1866
    %2008 = vmatpush1.bf16.msra.mxu0 %v1865
    %2009 = vmatprep.subr.bf16.mxu0 %v1926
    %2010 = vmatpush2.bf16.msra.mxu0 %v1925
    %2011 = vmatprep.subr.bf16.mxu0 %v1922
    %2012 = vmatpush2.bf16.msra.mxu0 %v1921
    %2013 = vmatprep.subr.bf16.mxu0 %v1918
    %2014 = vmatpush2.bf16.msra.mxu0 %v1917
    %2015 = vmatprep.subr.bf16.mxu0 %v1914
    %2016 = vmatpush2.bf16.msra.mxu0 %v1913
    %2017 = vmatprep.subr.bf16.mxu0 %v1910
    %2018 = vmatpush2.bf16.msra.mxu0 %v1909
    %2019 = vmatprep.subr.bf16.mxu0 %v1906
    %2020 = vmatpush2.bf16.msra.mxu0 %v1905
    %2021 = vmatprep.subr.bf16.mxu0 %v1902
    %2022 = vmatpush2.bf16.msra.mxu0 %v1901
    %2023 = vmatprep.subr.bf16.mxu0 %v1898
    %2024 = vmatpush2.bf16.msra.mxu0 %v1897
    %2025 = vmatprep.mubr.bf16.mxu0 %v1135
    %2026 = vmatmul.mubr.bf16.gmra.mxu0 %v1134
    %v2027 = vpop.f32.mrf.mxu0
    %v2028 = vadd.f32 %v1626, %v2027
    %v2029 = vpop.f32.mrf.mxu0
    %v2030 = vadd.f32 %v1628, %v2029
    %v2031 = vpop.f32.mrf.mxu0
    %v2032 = vpop.f32.mrf.mxu0
    %2033 = vdwg.mxu0
    %2034 = vmatprep.subr.bf16.mxu0 %v1896
    %2035 = vmatpush1.bf16.msra.mxu0 %v1895
    %2036 = vmatprep.subr.bf16.mxu0 %v1892
    %2037 = vmatpush1.bf16.msra.mxu0 %v1891
    %2038 = vmatprep.subr.bf16.mxu0 %v1888
    %2039 = vmatpush1.bf16.msra.mxu0 %v1887
    %2040 = vmatprep.subr.bf16.mxu0 %v1884
    %2041 = vmatpush1.bf16.msra.mxu0 %v1883
    %2042 = vmatprep.subr.bf16.mxu0 %v1880
    %2043 = vmatpush1.bf16.msra.mxu0 %v1879
    %2044 = vmatprep.subr.bf16.mxu0 %v1876
    %2045 = vmatpush1.bf16.msra.mxu0 %v1875
    %2046 = vmatprep.subr.bf16.mxu0 %v1872
    %2047 = vmatpush1.bf16.msra.mxu0 %v1871
    %2048 = vmatprep.subr.bf16.mxu0 %v1868
    %2049 = vmatpush1.bf16.msra.mxu0 %v1867
    %2050 = vmatprep.subr.bf16.mxu0 %v1928
    %2051 = vmatpush2.bf16.msra.mxu0 %v1927
    %2052 = vmatprep.subr.bf16.mxu0 %v1924
    %2053 = vmatpush2.bf16.msra.mxu0 %v1923
    %2054 = vmatprep.subr.bf16.mxu0 %v1920
    %2055 = vmatpush2.bf16.msra.mxu0 %v1919
    %2056 = vmatprep.subr.bf16.mxu0 %v1916
    %2057 = vmatpush2.bf16.msra.mxu0 %v1915
    %2058 = vmatprep.subr.bf16.mxu0 %v1912
    %2059 = vmatpush2.bf16.msra.mxu0 %v1911
    %2060 = vmatprep.subr.bf16.mxu0 %v1908
    %2061 = vmatpush2.bf16.msra.mxu0 %v1907
    %2062 = vmatprep.subr.bf16.mxu0 %v1904
    %2063 = vmatpush2.bf16.msra.mxu0 %v1903
    %2064 = vmatprep.subr.bf16.mxu0 %v1900
    %2065 = vmatpush2.bf16.msra.mxu0 %v1899
    %2066 = vmatprep.mubr.bf16.mxu0 %v1135
    %2067 = vmatmul.mubr.bf16.gmra.mxu0 %v1134
    %v2068 = vpop.f32.mrf.mxu0
    %v2069 = vadd.f32 %v1667, %v2068
    %v2070 = vpop.f32.mrf.mxu0
    %v2071 = vadd.f32 %v1669, %v2070
    %v2072 = vpop.f32.mrf.mxu0
    %v2073 = vpop.f32.mrf.mxu0
    %2074 = vdwg.mxu0
    %s2075 = scalar_lea.vmem [#allocation10], 1024
    %v2076 = vld [vmem:[%s2075] sm:$0xff]
    %v2077 = vld [vmem:[%s2075 + $0x8] sm:$0xff]
    %v2078 = vld [vmem:[%s2075 + $0x10] sm:$0xff]
    %v2079 = vld [vmem:[%s2075 + $0x18] sm:$0xff]
    %v2080 = vld [vmem:[%s2075 + $0x20] sm:$0xff]
    %v2081 = vld [vmem:[%s2075 + $0x28] sm:$0xff]
    %v2082 = vld [vmem:[%s2075 + $0x30] sm:$0xff]
    %v2083 = vld [vmem:[%s2075 + $0x38] sm:$0xff]
    %v2084 = vld [vmem:[%s2075 + $0x40] sm:$0xff]
    %v2085 = vld [vmem:[%s2075 + $0x48] sm:$0xff]
    %v2086 = vld [vmem:[%s2075 + $0x50] sm:$0xff]
    %v2087 = vld [vmem:[%s2075 + $0x58] sm:$0xff]
    %v2088 = vld [vmem:[%s2075 + $0x60] sm:$0xff]
    %v2089 = vld [vmem:[%s2075 + $0x68] sm:$0xff]
    %v2090 = vld [vmem:[%s2075 + $0x70] sm:$0xff]
    %v2091 = vld [vmem:[%s2075 + $0x78] sm:$0xff]
    %v2092 = vld [vmem:[%s2075 + $0x80] sm:$0xff]
    %v2093 = vld [vmem:[%s2075 + $0x88] sm:$0xff]
    %v2094 = vld [vmem:[%s2075 + $0x90] sm:$0xff]
    %v2095 = vld [vmem:[%s2075 + $0x98] sm:$0xff]
    %v2096 = vld [vmem:[%s2075 + $0xa0] sm:$0xff]
    %v2097 = vld [vmem:[%s2075 + $0xa8] sm:$0xff]
    %v2098 = vld [vmem:[%s2075 + $0xb0] sm:$0xff]
    %v2099 = vld [vmem:[%s2075 + $0xb8] sm:$0xff]
    %v2100 = vld [vmem:[%s2075 + $0xc0] sm:$0xff]
    %v2101 = vld [vmem:[%s2075 + $0xc8] sm:$0xff]
    %v2102 = vld [vmem:[%s2075 + $0xd0] sm:$0xff]
    %v2103 = vld [vmem:[%s2075 + $0xd8] sm:$0xff]
    %v2104 = vld [vmem:[%s2075 + $0xe0] sm:$0xff]
    %v2105 = vld [vmem:[%s2075 + $0xe8] sm:$0xff]
    %v2106 = vld [vmem:[%s2075 + $0xf0] sm:$0xff]
    %v2107 = vld [vmem:[%s2075 + $0xf8] sm:$0xff]
    %v2108 = vld [vmem:[%s2075 + $0x100] sm:$0xff]
    %v2109 = vld [vmem:[%s2075 + $0x108] sm:$0xff]
    %v2110 = vld [vmem:[%s2075 + $0x110] sm:$0xff]
    %v2111 = vld [vmem:[%s2075 + $0x118] sm:$0xff]
    %v2112 = vld [vmem:[%s2075 + $0x120] sm:$0xff]
    %v2113 = vld [vmem:[%s2075 + $0x128] sm:$0xff]
    %v2114 = vld [vmem:[%s2075 + $0x130] sm:$0xff]
    %v2115 = vld [vmem:[%s2075 + $0x138] sm:$0xff]
    %v2116 = vld [vmem:[%s2075 + $0x140] sm:$0xff]
    %v2117 = vld [vmem:[%s2075 + $0x148] sm:$0xff]
    %v2118 = vld [vmem:[%s2075 + $0x150] sm:$0xff]
    %v2119 = vld [vmem:[%s2075 + $0x158] sm:$0xff]
    %v2120 = vld [vmem:[%s2075 + $0x160] sm:$0xff]
    %v2121 = vld [vmem:[%s2075 + $0x168] sm:$0xff]
    %v2122 = vld [vmem:[%s2075 + $0x170] sm:$0xff]
    %v2123 = vld [vmem:[%s2075 + $0x178] sm:$0xff]
    %v2124 = vld [vmem:[%s2075 + $0x180] sm:$0xff]
    %v2125 = vld [vmem:[%s2075 + $0x188] sm:$0xff]
    %v2126 = vld [vmem:[%s2075 + $0x190] sm:$0xff]
    %v2127 = vld [vmem:[%s2075 + $0x198] sm:$0xff]
    %v2128 = vld [vmem:[%s2075 + $0x1a0] sm:$0xff]
    %v2129 = vld [vmem:[%s2075 + $0x1a8] sm:$0xff]
    %v2130 = vld [vmem:[%s2075 + $0x1b0] sm:$0xff]
    %v2131 = vld [vmem:[%s2075 + $0x1b8] sm:$0xff]
    %v2132 = vld [vmem:[%s2075 + $0x1c0] sm:$0xff]
    %v2133 = vld [vmem:[%s2075 + $0x1c8] sm:$0xff]
    %v2134 = vld [vmem:[%s2075 + $0x1d0] sm:$0xff]
    %v2135 = vld [vmem:[%s2075 + $0x1d8] sm:$0xff]
    %v2136 = vld [vmem:[%s2075 + $0x1e0] sm:$0xff]
    %v2137 = vld [vmem:[%s2075 + $0x1e8] sm:$0xff]
    %v2138 = vld [vmem:[%s2075 + $0x1f0] sm:$0xff]
    %v2139 = vld [vmem:[%s2075 + $0x1f8] sm:$0xff]
    %v2140 = vrot.slane %v1134, 2
    %v2141 = vrot.slane %v1135, 2
    %v2208 = vunpack.c.l.b16 %v2076
    %v2209 = vunpack.c.h.b16 %v2076
    %v2210 = vunpack.c.l.b16 %v2077
    %v2211 = vunpack.c.h.b16 %v2077
    %v2212 = vunpack.c.l.b16 %v2078
    %v2213 = vunpack.c.h.b16 %v2078
    %v2214 = vunpack.c.l.b16 %v2079
    %v2215 = vunpack.c.h.b16 %v2079
    %v2216 = vunpack.c.l.b16 %v2080
    %v2217 = vunpack.c.h.b16 %v2080
    %v2218 = vunpack.c.l.b16 %v2081
    %v2219 = vunpack.c.h.b16 %v2081
    %v2220 = vunpack.c.l.b16 %v2082
    %v2221 = vunpack.c.h.b16 %v2082
    %v2222 = vunpack.c.l.b16 %v2083
    %v2223 = vunpack.c.h.b16 %v2083
    %v2224 = vunpack.c.l.b16 %v2084
    %v2225 = vunpack.c.h.b16 %v2084
    %v2226 = vunpack.c.l.b16 %v2085
    %v2227 = vunpack.c.h.b16 %v2085
    %v2228 = vunpack.c.l.b16 %v2086
    %v2229 = vunpack.c.h.b16 %v2086
    %v2230 = vunpack.c.l.b16 %v2087
    %v2231 = vunpack.c.h.b16 %v2087
    %v2232 = vunpack.c.l.b16 %v2088
    %v2233 = vunpack.c.h.b16 %v2088
    %v2234 = vunpack.c.l.b16 %v2089
    %v2235 = vunpack.c.h.b16 %v2089
    %v2236 = vunpack.c.l.b16 %v2090
    %v2237 = vunpack.c.h.b16 %v2090
    %v2238 = vunpack.c.l.b16 %v2091
    %v2239 = vunpack.c.h.b16 %v2091
    %v2240 = vunpack.c.l.b16 %v2092
    %v2241 = vunpack.c.h.b16 %v2092
    %v2242 = vunpack.c.l.b16 %v2093
    %v2243 = vunpack.c.h.b16 %v2093
    %v2244 = vunpack.c.l.b16 %v2094
    %v2245 = vunpack.c.h.b16 %v2094
    %v2246 = vunpack.c.l.b16 %v2095
    %v2247 = vunpack.c.h.b16 %v2095
    %v2248 = vunpack.c.l.b16 %v2096
    %v2249 = vunpack.c.h.b16 %v2096
    %v2250 = vunpack.c.l.b16 %v2097
    %v2251 = vunpack.c.h.b16 %v2097
    %v2252 = vunpack.c.l.b16 %v2098
    %v2253 = vunpack.c.h.b16 %v2098
    %v2254 = vunpack.c.l.b16 %v2099
    %v2255 = vunpack.c.h.b16 %v2099
    %v2256 = vunpack.c.l.b16 %v2100
    %v2257 = vunpack.c.h.b16 %v2100
    %v2258 = vunpack.c.l.b16 %v2101
    %v2259 = vunpack.c.h.b16 %v2101
    %v2260 = vunpack.c.l.b16 %v2102
    %v2261 = vunpack.c.h.b16 %v2102
    %v2262 = vunpack.c.l.b16 %v2103
    %v2263 = vunpack.c.h.b16 %v2103
    %v2264 = vunpack.c.l.b16 %v2104
    %v2265 = vunpack.c.h.b16 %v2104
    %v2266 = vunpack.c.l.b16 %v2105
    %v2267 = vunpack.c.h.b16 %v2105
    %v2268 = vunpack.c.l.b16 %v2106
    %v2269 = vunpack.c.h.b16 %v2106
    %v2270 = vunpack.c.l.b16 %v2107
    %v2271 = vunpack.c.h.b16 %v2107
    %v2272 = vunpack.c.l.b16 %v2108
    %v2273 = vunpack.c.h.b16 %v2108
    %v2274 = vunpack.c.l.b16 %v2109
    %v2275 = vunpack.c.h.b16 %v2109
    %v2276 = vunpack.c.l.b16 %v2110
    %v2277 = vunpack.c.h.b16 %v2110
    %v2278 = vunpack.c.l.b16 %v2111
    %v2279 = vunpack.c.h.b16 %v2111
    %v2280 = vunpack.c.l.b16 %v2112
    %v2281 = vunpack.c.h.b16 %v2112
    %v2282 = vunpack.c.l.b16 %v2113
    %v2283 = vunpack.c.h.b16 %v2113
    %v2284 = vunpack.c.l.b16 %v2114
    %v2285 = vunpack.c.h.b16 %v2114
    %v2286 = vunpack.c.l.b16 %v2115
    %v2287 = vunpack.c.h.b16 %v2115
    %v2288 = vunpack.c.l.b16 %v2116
    %v2289 = vunpack.c.h.b16 %v2116
    %v2290 = vunpack.c.l.b16 %v2117
    %v2291 = vunpack.c.h.b16 %v2117
    %v2292 = vunpack.c.l.b16 %v2118
    %v2293 = vunpack.c.h.b16 %v2118
    %v2294 = vunpack.c.l.b16 %v2119
    %v2295 = vunpack.c.h.b16 %v2119
    %v2296 = vunpack.c.l.b16 %v2120
    %v2297 = vunpack.c.h.b16 %v2120
    %v2298 = vunpack.c.l.b16 %v2121
    %v2299 = vunpack.c.h.b16 %v2121
    %v2300 = vunpack.c.l.b16 %v2122
    %v2301 = vunpack.c.h.b16 %v2122
    %v2302 = vunpack.c.l.b16 %v2123
    %v2303 = vunpack.c.h.b16 %v2123
    %v2304 = vunpack.c.l.b16 %v2124
    %v2305 = vunpack.c.h.b16 %v2124
    %v2306 = vunpack.c.l.b16 %v2125
    %v2307 = vunpack.c.h.b16 %v2125
    %v2308 = vunpack.c.l.b16 %v2126
    %v2309 = vunpack.c.h.b16 %v2126
    %v2310 = vunpack.c.l.b16 %v2127
    %v2311 = vunpack.c.h.b16 %v2127
    %v2312 = vunpack.c.l.b16 %v2128
    %v2313 = vunpack.c.h.b16 %v2128
    %v2314 = vunpack.c.l.b16 %v2129
    %v2315 = vunpack.c.h.b16 %v2129
    %v2316 = vunpack.c.l.b16 %v2130
    %v2317 = vunpack.c.h.b16 %v2130
    %v2318 = vunpack.c.l.b16 %v2131
    %v2319 = vunpack.c.h.b16 %v2131
    %v2320 = vunpack.c.l.b16 %v2132
    %v2321 = vunpack.c.h.b16 %v2132
    %v2322 = vunpack.c.l.b16 %v2133
    %v2323 = vunpack.c.h.b16 %v2133
    %v2324 = vunpack.c.l.b16 %v2134
    %v2325 = vunpack.c.h.b16 %v2134
    %v2326 = vunpack.c.l.b16 %v2135
    %v2327 = vunpack.c.h.b16 %v2135
    %v2328 = vunpack.c.l.b16 %v2136
    %v2329 = vunpack.c.h.b16 %v2136
    %v2330 = vunpack.c.l.b16 %v2137
    %v2331 = vunpack.c.h.b16 %v2137
    %v2332 = vunpack.c.l.b16 %v2138
    %v2333 = vunpack.c.h.b16 %v2138
    %v2334 = vunpack.c.l.b16 %v2139
    %v2335 = vunpack.c.h.b16 %v2139
    %v2336 = vpack.c.b16 %v2212, %v2208
    %v2337 = vpack.c.b16 %v2213, %v2209
    %v2338 = vpack.c.b16 %v2214, %v2210
    %v2339 = vpack.c.b16 %v2215, %v2211
    %v2340 = vpack.c.b16 %v2220, %v2216
    %v2341 = vpack.c.b16 %v2221, %v2217
    %v2342 = vpack.c.b16 %v2222, %v2218
    %v2343 = vpack.c.b16 %v2223, %v2219
    %v2344 = vpack.c.b16 %v2228, %v2224
    %v2345 = vpack.c.b16 %v2229, %v2225
    %v2346 = vpack.c.b16 %v2230, %v2226
    %v2347 = vpack.c.b16 %v2231, %v2227
    %v2348 = vpack.c.b16 %v2236, %v2232
    %v2349 = vpack.c.b16 %v2237, %v2233
    %v2350 = vpack.c.b16 %v2238, %v2234
    %v2351 = vpack.c.b16 %v2239, %v2235
    %v2352 = vpack.c.b16 %v2244, %v2240
    %v2353 = vpack.c.b16 %v2245, %v2241
    %v2354 = vpack.c.b16 %v2246, %v2242
    %v2355 = vpack.c.b16 %v2247, %v2243
    %v2356 = vpack.c.b16 %v2252, %v2248
    %v2357 = vpack.c.b16 %v2253, %v2249
    %v2358 = vpack.c.b16 %v2254, %v2250
    %v2359 = vpack.c.b16 %v2255, %v2251
    %v2360 = vpack.c.b16 %v2260, %v2256
    %v2361 = vpack.c.b16 %v2261, %v2257
    %v2362 = vpack.c.b16 %v2262, %v2258
    %v2363 = vpack.c.b16 %v2263, %v2259
    %v2364 = vpack.c.b16 %v2268, %v2264
    %v2365 = vpack.c.b16 %v2269, %v2265
    %v2366 = vpack.c.b16 %v2270, %v2266
    %v2367 = vpack.c.b16 %v2271, %v2267
    %v2368 = vpack.c.b16 %v2276, %v2272
    %v2369 = vpack.c.b16 %v2277, %v2273
    %v2370 = vpack.c.b16 %v2278, %v2274
    %v2371 = vpack.c.b16 %v2279, %v2275
    %v2372 = vpack.c.b16 %v2284, %v2280
    %v2373 = vpack.c.b16 %v2285, %v2281
    %v2374 = vpack.c.b16 %v2286, %v2282
    %v2375 = vpack.c.b16 %v2287, %v2283
    %v2376 = vpack.c.b16 %v2292, %v2288
    %v2377 = vpack.c.b16 %v2293, %v2289
    %v2378 = vpack.c.b16 %v2294, %v2290
    %v2379 = vpack.c.b16 %v2295, %v2291
    %v2380 = vpack.c.b16 %v2300, %v2296
    %v2381 = vpack.c.b16 %v2301, %v2297
    %v2382 = vpack.c.b16 %v2302, %v2298
    %v2383 = vpack.c.b16 %v2303, %v2299
    %v2384 = vpack.c.b16 %v2308, %v2304
    %v2385 = vpack.c.b16 %v2309, %v2305
    %v2386 = vpack.c.b16 %v2310, %v2306
    %v2387 = vpack.c.b16 %v2311, %v2307
    %v2388 = vpack.c.b16 %v2316, %v2312
    %v2389 = vpack.c.b16 %v2317, %v2313
    %v2390 = vpack.c.b16 %v2318, %v2314
    %v2391 = vpack.c.b16 %v2319, %v2315
    %v2392 = vpack.c.b16 %v2324, %v2320
    %v2393 = vpack.c.b16 %v2325, %v2321
    %v2394 = vpack.c.b16 %v2326, %v2322
    %v2395 = vpack.c.b16 %v2327, %v2323
    %v2396 = vpack.c.b16 %v2332, %v2328
    %v2397 = vpack.c.b16 %v2333, %v2329
    %v2398 = vpack.c.b16 %v2334, %v2330
    %v2399 = vpack.c.b16 %v2335, %v2331
    %2464 = vmatprep.subr.bf16.mxu0 %v2365
    %2465 = vmatpush1.bf16.msra.mxu0 %v2364
    %2466 = vmatprep.subr.bf16.mxu0 %v2361
    %2467 = vmatpush1.bf16.msra.mxu0 %v2360
    %2468 = vmatprep.subr.bf16.mxu0 %v2357
    %2469 = vmatpush1.bf16.msra.mxu0 %v2356
    %2470 = vmatprep.subr.bf16.mxu0 %v2353
    %2471 = vmatpush1.bf16.msra.mxu0 %v2352
    %2472 = vmatprep.subr.bf16.mxu0 %v2349
    %2473 = vmatpush1.bf16.msra.mxu0 %v2348
    %2474 = vmatprep.subr.bf16.mxu0 %v2345
    %2475 = vmatpush1.bf16.msra.mxu0 %v2344
    %2476 = vmatprep.subr.bf16.mxu0 %v2341
    %2477 = vmatpush1.bf16.msra.mxu0 %v2340
    %2478 = vmatprep.subr.bf16.mxu0 %v2337
    %2479 = vmatpush1.bf16.msra.mxu0 %v2336
    %2480 = vmatprep.subr.bf16.mxu0 %v2397
    %2481 = vmatpush2.bf16.msra.mxu0 %v2396
    %2482 = vmatprep.subr.bf16.mxu0 %v2393
    %2483 = vmatpush2.bf16.msra.mxu0 %v2392
    %2484 = vmatprep.subr.bf16.mxu0 %v2389
    %2485 = vmatpush2.bf16.msra.mxu0 %v2388
    %2486 = vmatprep.subr.bf16.mxu0 %v2385
    %2487 = vmatpush2.bf16.msra.mxu0 %v2384
    %2488 = vmatprep.subr.bf16.mxu0 %v2381
    %2489 = vmatpush2.bf16.msra.mxu0 %v2380
    %2490 = vmatprep.subr.bf16.mxu0 %v2377
    %2491 = vmatpush2.bf16.msra.mxu0 %v2376
    %2492 = vmatprep.subr.bf16.mxu0 %v2373
    %2493 = vmatpush2.bf16.msra.mxu0 %v2372
    %2494 = vmatprep.subr.bf16.mxu0 %v2369
    %2495 = vmatpush2.bf16.msra.mxu0 %v2368
    %2496 = vmatprep.mubr.bf16.mxu0 %v2141
    %2497 = vmatmul.mubr.bf16.gmra.mxu0 %v2140
    %v2498 = vpop.f32.mrf.mxu0
    %v2499 = vadd.f32 0.0, %v2498
    %v2500 = vpop.f32.mrf.mxu0
    %v2501 = vadd.f32 0.0, %v2500
    %v2502 = vpop.f32.mrf.mxu0
    %v2503 = vpop.f32.mrf.mxu0
    %2504 = vdwg.mxu0
    %2505 = vmatprep.subr.bf16.mxu0 %v2367
    %2506 = vmatpush1.bf16.msra.mxu0 %v2366
    %2507 = vmatprep.subr.bf16.mxu0 %v2363
    %2508 = vmatpush1.bf16.msra.mxu0 %v2362
    %2509 = vmatprep.subr.bf16.mxu0 %v2359
    %2510 = vmatpush1.bf16.msra.mxu0 %v2358
    %2511 = vmatprep.subr.bf16.mxu0 %v2355
    %2512 = vmatpush1.bf16.msra.mxu0 %v2354
    %2513 = vmatprep.subr.bf16.mxu0 %v2351
    %2514 = vmatpush1.bf16.msra.mxu0 %v2350
    %2515 = vmatprep.subr.bf16.mxu0 %v2347
    %2516 = vmatpush1.bf16.msra.mxu0 %v2346
    %2517 = vmatprep.subr.bf16.mxu0 %v2343
    %2518 = vmatpush1.bf16.msra.mxu0 %v2342
    %2519 = vmatprep.subr.bf16.mxu0 %v2339
    %2520 = vmatpush1.bf16.msra.mxu0 %v2338
    %2521 = vmatprep.subr.bf16.mxu0 %v2399
    %2522 = vmatpush2.bf16.msra.mxu0 %v2398
    %2523 = vmatprep.subr.bf16.mxu0 %v2395
    %2524 = vmatpush2.bf16.msra.mxu0 %v2394
    %2525 = vmatprep.subr.bf16.mxu0 %v2391
    %2526 = vmatpush2.bf16.msra.mxu0 %v2390
    %2527 = vmatprep.subr.bf16.mxu0 %v2387
    %2528 = vmatpush2.bf16.msra.mxu0 %v2386
    %2529 = vmatprep.subr.bf16.mxu0 %v2383
    %2530 = vmatpush2.bf16.msra.mxu0 %v2382
    %2531 = vmatprep.subr.bf16.mxu0 %v2379
    %2532 = vmatpush2.bf16.msra.mxu0 %v2378
    %2533 = vmatprep.subr.bf16.mxu0 %v2375
    %2534 = vmatpush2.bf16.msra.mxu0 %v2374
    %2535 = vmatprep.subr.bf16.mxu0 %v2371
    %2536 = vmatpush2.bf16.msra.mxu0 %v2370
    %2537 = vmatprep.mubr.bf16.mxu0 %v2141
    %2538 = vmatmul.mubr.bf16.gmra.mxu0 %v2140
    %v2539 = vpop.f32.mrf.mxu0
    %v2540 = vadd.f32 0.0, %v2539
    %v2541 = vpop.f32.mrf.mxu0
    %v2542 = vadd.f32 0.0, %v2541
    %v2543 = vpop.f32.mrf.mxu0
    %v2544 = vpop.f32.mrf.mxu0
    %2545 = vdwg.mxu0
    %v2546 = vadd.f32 %v2028, %v2499
    %v2547 = vadd.f32 %v2030, %v2501
    %v2548 = vadd.f32 %v2069, %v2540
    %v2549 = vadd.f32 %v2071, %v2542
    %s2550 = scalar_lea.vmem [#allocation10], 1536
    %v2551 = vld [vmem:[%s2550] sm:$0xff]
    %v2552 = vld [vmem:[%s2550 + $0x8] sm:$0xff]
    %v2553 = vld [vmem:[%s2550 + $0x10] sm:$0xff]
    %v2554 = vld [vmem:[%s2550 + $0x18] sm:$0xff]
    %v2555 = vld [vmem:[%s2550 + $0x20] sm:$0xff]
    %v2556 = vld [vmem:[%s2550 + $0x28] sm:$0xff]
    %v2557 = vld [vmem:[%s2550 + $0x30] sm:$0xff]
    %v2558 = vld [vmem:[%s2550 + $0x38] sm:$0xff]
    %v2559 = vld [vmem:[%s2550 + $0x40] sm:$0xff]
    %v2560 = vld [vmem:[%s2550 + $0x48] sm:$0xff]
    %v2561 = vld [vmem:[%s2550 + $0x50] sm:$0xff]
    %v2562 = vld [vmem:[%s2550 + $0x58] sm:$0xff]
    %v2563 = vld [vmem:[%s2550 + $0x60] sm:$0xff]
    %v2564 = vld [vmem:[%s2550 + $0x68] sm:$0xff]
    %v2565 = vld [vmem:[%s2550 + $0x70] sm:$0xff]
    %v2566 = vld [vmem:[%s2550 + $0x78] sm:$0xff]
    %v2567 = vld [vmem:[%s2550 + $0x80] sm:$0xff]
    %v2568 = vld [vmem:[%s2550 + $0x88] sm:$0xff]
    %v2569 = vld [vmem:[%s2550 + $0x90] sm:$0xff]
    %v2570 = vld [vmem:[%s2550 + $0x98] sm:$0xff]
    %v2571 = vld [vmem:[%s2550 + $0xa0] sm:$0xff]
    %v2572 = vld [vmem:[%s2550 + $0xa8] sm:$0xff]
    %v2573 = vld [vmem:[%s2550 + $0xb0] sm:$0xff]
    %v2574 = vld [vmem:[%s2550 + $0xb8] sm:$0xff]
    %v2575 = vld [vmem:[%s2550 + $0xc0] sm:$0xff]
    %v2576 = vld [vmem:[%s2550 + $0xc8] sm:$0xff]
    %v2577 = vld [vmem:[%s2550 + $0xd0] sm:$0xff]
    %v2578 = vld [vmem:[%s2550 + $0xd8] sm:$0xff]
    %v2579 = vld [vmem:[%s2550 + $0xe0] sm:$0xff]
    %v2580 = vld [vmem:[%s2550 + $0xe8] sm:$0xff]
    %v2581 = vld [vmem:[%s2550 + $0xf0] sm:$0xff]
    %v2582 = vld [vmem:[%s2550 + $0xf8] sm:$0xff]
    %v2583 = vld [vmem:[%s2550 + $0x100] sm:$0xff]
    %v2584 = vld [vmem:[%s2550 + $0x108] sm:$0xff]
    %v2585 = vld [vmem:[%s2550 + $0x110] sm:$0xff]
    %v2586 = vld [vmem:[%s2550 + $0x118] sm:$0xff]
    %v2587 = vld [vmem:[%s2550 + $0x120] sm:$0xff]
    %v2588 = vld [vmem:[%s2550 + $0x128] sm:$0xff]
    %v2589 = vld [vmem:[%s2550 + $0x130] sm:$0xff]
    %v2590 = vld [vmem:[%s2550 + $0x138] sm:$0xff]
    %v2591 = vld [vmem:[%s2550 + $0x140] sm:$0xff]
    %v2592 = vld [vmem:[%s2550 + $0x148] sm:$0xff]
    %v2593 = vld [vmem:[%s2550 + $0x150] sm:$0xff]
    %v2594 = vld [vmem:[%s2550 + $0x158] sm:$0xff]
    %v2595 = vld [vmem:[%s2550 + $0x160] sm:$0xff]
    %v2596 = vld [vmem:[%s2550 + $0x168] sm:$0xff]
    %v2597 = vld [vmem:[%s2550 + $0x170] sm:$0xff]
    %v2598 = vld [vmem:[%s2550 + $0x178] sm:$0xff]
    %v2599 = vld [vmem:[%s2550 + $0x180] sm:$0xff]
    %v2600 = vld [vmem:[%s2550 + $0x188] sm:$0xff]
    %v2601 = vld [vmem:[%s2550 + $0x190] sm:$0xff]
    %v2602 = vld [vmem:[%s2550 + $0x198] sm:$0xff]
    %v2603 = vld [vmem:[%s2550 + $0x1a0] sm:$0xff]
    %v2604 = vld [vmem:[%s2550 + $0x1a8] sm:$0xff]
    %v2605 = vld [vmem:[%s2550 + $0x1b0] sm:$0xff]
    %v2606 = vld [vmem:[%s2550 + $0x1b8] sm:$0xff]
    %v2607 = vld [vmem:[%s2550 + $0x1c0] sm:$0xff]
    %v2608 = vld [vmem:[%s2550 + $0x1c8] sm:$0xff]
    %v2609 = vld [vmem:[%s2550 + $0x1d0] sm:$0xff]
    %v2610 = vld [vmem:[%s2550 + $0x1d8] sm:$0xff]
    %v2611 = vld [vmem:[%s2550 + $0x1e0] sm:$0xff]
    %v2612 = vld [vmem:[%s2550 + $0x1e8] sm:$0xff]
    %v2613 = vld [vmem:[%s2550 + $0x1f0] sm:$0xff]
    %v2614 = vld [vmem:[%s2550 + $0x1f8] sm:$0xff]
    %v2615 = vrot.slane %v1134, 3
    %v2616 = vrot.slane %v1135, 3
    %v2683 = vunpack.c.l.b16 %v2551
    %v2684 = vunpack.c.h.b16 %v2551
    %v2685 = vunpack.c.l.b16 %v2552
    %v2686 = vunpack.c.h.b16 %v2552
    %v2687 = vunpack.c.l.b16 %v2553
    %v2688 = vunpack.c.h.b16 %v2553
    %v2689 = vunpack.c.l.b16 %v2554
    %v2690 = vunpack.c.h.b16 %v2554
    %v2691 = vunpack.c.l.b16 %v2555
    %v2692 = vunpack.c.h.b16 %v2555
    %v2693 = vunpack.c.l.b16 %v2556
    %v2694 = vunpack.c.h.b16 %v2556
    %v2695 = vunpack.c.l.b16 %v2557
    %v2696 = vunpack.c.h.b16 %v2557
    %v2697 = vunpack.c.l.b16 %v2558
    %v2698 = vunpack.c.h.b16 %v2558
    %v2699 = vunpack.c.l.b16 %v2559
    %v2700 = vunpack.c.h.b16 %v2559
    %v2701 = vunpack.c.l.b16 %v2560
    %v2702 = vunpack.c.h.b16 %v2560
    %v2703 = vunpack.c.l.b16 %v2561
    %v2704 = vunpack.c.h.b16 %v2561
    %v2705 = vunpack.c.l.b16 %v2562
    %v2706 = vunpack.c.h.b16 %v2562
    %v2707 = vunpack.c.l.b16 %v2563
    %v2708 = vunpack.c.h.b16 %v2563
    %v2709 = vunpack.c.l.b16 %v2564
    %v2710 = vunpack.c.h.b16 %v2564
    %v2711 = vunpack.c.l.b16 %v2565
    %v2712 = vunpack.c.h.b16 %v2565
    %v2713 = vunpack.c.l.b16 %v2566
    %v2714 = vunpack.c.h.b16 %v2566
    %v2715 = vunpack.c.l.b16 %v2567
    %v2716 = vunpack.c.h.b16 %v2567
    %v2717 = vunpack.c.l.b16 %v2568
    %v2718 = vunpack.c.h.b16 %v2568
    %v2719 = vunpack.c.l.b16 %v2569
    %v2720 = vunpack.c.h.b16 %v2569
    %v2721 = vunpack.c.l.b16 %v2570
    %v2722 = vunpack.c.h.b16 %v2570
    %v2723 = vunpack.c.l.b16 %v2571
    %v2724 = vunpack.c.h.b16 %v2571
    %v2725 = vunpack.c.l.b16 %v2572
    %v2726 = vunpack.c.h.b16 %v2572
    %v2727 = vunpack.c.l.b16 %v2573
    %v2728 = vunpack.c.h.b16 %v2573
    %v2729 = vunpack.c.l.b16 %v2574
    %v2730 = vunpack.c.h.b16 %v2574
    %v2731 = vunpack.c.l.b16 %v2575
    %v2732 = vunpack.c.h.b16 %v2575
    %v2733 = vunpack.c.l.b16 %v2576
    %v2734 = vunpack.c.h.b16 %v2576
    %v2735 = vunpack.c.l.b16 %v2577
    %v2736 = vunpack.c.h.b16 %v2577
    %v2737 = vunpack.c.l.b16 %v2578
    %v2738 = vunpack.c.h.b16 %v2578
    %v2739 = vunpack.c.l.b16 %v2579
    %v2740 = vunpack.c.h.b16 %v2579
    %v2741 = vunpack.c.l.b16 %v2580
    %v2742 = vunpack.c.h.b16 %v2580
    %v2743 = vunpack.c.l.b16 %v2581
    %v2744 = vunpack.c.h.b16 %v2581
    %v2745 = vunpack.c.l.b16 %v2582
    %v2746 = vunpack.c.h.b16 %v2582
    %v2747 = vunpack.c.l.b16 %v2583
    %v2748 = vunpack.c.h.b16 %v2583
    %v2749 = vunpack.c.l.b16 %v2584
    %v2750 = vunpack.c.h.b16 %v2584
    %v2751 = vunpack.c.l.b16 %v2585
    %v2752 = vunpack.c.h.b16 %v2585
    %v2753 = vunpack.c.l.b16 %v2586
    %v2754 = vunpack.c.h.b16 %v2586
    %v2755 = vunpack.c.l.b16 %v2587
    %v2756 = vunpack.c.h.b16 %v2587
    %v2757 = vunpack.c.l.b16 %v2588
    %v2758 = vunpack.c.h.b16 %v2588
    %v2759 = vunpack.c.l.b16 %v2589
    %v2760 = vunpack.c.h.b16 %v2589
    %v2761 = vunpack.c.l.b16 %v2590
    %v2762 = vunpack.c.h.b16 %v2590
    %v2763 = vunpack.c.l.b16 %v2591
    %v2764 = vunpack.c.h.b16 %v2591
    %v2765 = vunpack.c.l.b16 %v2592
    %v2766 = vunpack.c.h.b16 %v2592
    %v2767 = vunpack.c.l.b16 %v2593
    %v2768 = vunpack.c.h.b16 %v2593
    %v2769 = vunpack.c.l.b16 %v2594
    %v2770 = vunpack.c.h.b16 %v2594
    %v2771 = vunpack.c.l.b16 %v2595
    %v2772 = vunpack.c.h.b16 %v2595
    %v2773 = vunpack.c.l.b16 %v2596
    %v2774 = vunpack.c.h.b16 %v2596
    %v2775 = vunpack.c.l.b16 %v2597
    %v2776 = vunpack.c.h.b16 %v2597
    %v2777 = vunpack.c.l.b16 %v2598
    %v2778 = vunpack.c.h.b16 %v2598
    %v2779 = vunpack.c.l.b16 %v2599
    %v2780 = vunpack.c.h.b16 %v2599
    %v2781 = vunpack.c.l.b16 %v2600
    %v2782 = vunpack.c.h.b16 %v2600
    %v2783 = vunpack.c.l.b16 %v2601
    %v2784 = vunpack.c.h.b16 %v2601
    %v2785 = vunpack.c.l.b16 %v2602
    %v2786 = vunpack.c.h.b16 %v2602
    %v2787 = vunpack.c.l.b16 %v2603
    %v2788 = vunpack.c.h.b16 %v2603
    %v2789 = vunpack.c.l.b16 %v2604
    %v2790 = vunpack.c.h.b16 %v2604
    %v2791 = vunpack.c.l.b16 %v2605
    %v2792 = vunpack.c.h.b16 %v2605
    %v2793 = vunpack.c.l.b16 %v2606
    %v2794 = vunpack.c.h.b16 %v2606
    %v2795 = vunpack.c.l.b16 %v2607
    %v2796 = vunpack.c.h.b16 %v2607
    %v2797 = vunpack.c.l.b16 %v2608
    %v2798 = vunpack.c.h.b16 %v2608
    %v2799 = vunpack.c.l.b16 %v2609
    %v2800 = vunpack.c.h.b16 %v2609
    %v2801 = vunpack.c.l.b16 %v2610
    %v2802 = vunpack.c.h.b16 %v2610
    %v2803 = vunpack.c.l.b16 %v2611
    %v2804 = vunpack.c.h.b16 %v2611
    %v2805 = vunpack.c.l.b16 %v2612
    %v2806 = vunpack.c.h.b16 %v2612
    %v2807 = vunpack.c.l.b16 %v2613
    %v2808 = vunpack.c.h.b16 %v2613
    %v2809 = vunpack.c.l.b16 %v2614
    %v2810 = vunpack.c.h.b16 %v2614
    %v2811 = vpack.c.b16 %v2687, %v2683
    %v2812 = vpack.c.b16 %v2688, %v2684
    %v2813 = vpack.c.b16 %v2689, %v2685
    %v2814 = vpack.c.b16 %v2690, %v2686
    %v2815 = vpack.c.b16 %v2695, %v2691
    %v2816 = vpack.c.b16 %v2696, %v2692
    %v2817 = vpack.c.b16 %v2697, %v2693
    %v2818 = vpack.c.b16 %v2698, %v2694
    %v2819 = vpack.c.b16 %v2703, %v2699
    %v2820 = vpack.c.b16 %v2704, %v2700
    %v2821 = vpack.c.b16 %v2705, %v2701
    %v2822 = vpack.c.b16 %v2706, %v2702
    %v2823 = vpack.c.b16 %v2711, %v2707
    %v2824 = vpack.c.b16 %v2712, %v2708
    %v2825 = vpack.c.b16 %v2713, %v2709
    %v2826 = vpack.c.b16 %v2714, %v2710
    %v2827 = vpack.c.b16 %v2719, %v2715
    %v2828 = vpack.c.b16 %v2720, %v2716
    %v2829 = vpack.c.b16 %v2721, %v2717
    %v2830 = vpack.c.b16 %v2722, %v2718
    %v2831 = vpack.c.b16 %v2727, %v2723
    %v2832 = vpack.c.b16 %v2728, %v2724
    %v2833 = vpack.c.b16 %v2729, %v2725
    %v2834 = vpack.c.b16 %v2730, %v2726
    %v2835 = vpack.c.b16 %v2735, %v2731
    %v2836 = vpack.c.b16 %v2736, %v2732
    %v2837 = vpack.c.b16 %v2737, %v2733
    %v2838 = vpack.c.b16 %v2738, %v2734
    %v2839 = vpack.c.b16 %v2743, %v2739
    %v2840 = vpack.c.b16 %v2744, %v2740
    %v2841 = vpack.c.b16 %v2745, %v2741
    %v2842 = vpack.c.b16 %v2746, %v2742
    %v2843 = vpack.c.b16 %v2751, %v2747
    %v2844 = vpack.c.b16 %v2752, %v2748
    %v2845 = vpack.c.b16 %v2753, %v2749
    %v2846 = vpack.c.b16 %v2754, %v2750
    %v2847 = vpack.c.b16 %v2759, %v2755
    %v2848 = vpack.c.b16 %v2760, %v2756
    %v2849 = vpack.c.b16 %v2761, %v2757
    %v2850 = vpack.c.b16 %v2762, %v2758
    %v2851 = vpack.c.b16 %v2767, %v2763
    %v2852 = vpack.c.b16 %v2768, %v2764
    %v2853 = vpack.c.b16 %v2769, %v2765
    %v2854 = vpack.c.b16 %v2770, %v2766
    %v2855 = vpack.c.b16 %v2775, %v2771
    %v2856 = vpack.c.b16 %v2776, %v2772
    %v2857 = vpack.c.b16 %v2777, %v2773
    %v2858 = vpack.c.b16 %v2778, %v2774
    %v2859 = vpack.c.b16 %v2783, %v2779
    %v2860 = vpack.c.b16 %v2784, %v2780
    %v2861 = vpack.c.b16 %v2785, %v2781
    %v2862 = vpack.c.b16 %v2786, %v2782
    %v2863 = vpack.c.b16 %v2791, %v2787
    %v2864 = vpack.c.b16 %v2792, %v2788
    %v2865 = vpack.c.b16 %v2793, %v2789
    %v2866 = vpack.c.b16 %v2794, %v2790
    %v2867 = vpack.c.b16 %v2799, %v2795
    %v2868 = vpack.c.b16 %v2800, %v2796
    %v2869 = vpack.c.b16 %v2801, %v2797
    %v2870 = vpack.c.b16 %v2802, %v2798
    %v2871 = vpack.c.b16 %v2807, %v2803
    %v2872 = vpack.c.b16 %v2808, %v2804
    %v2873 = vpack.c.b16 %v2809, %v2805
    %v2874 = vpack.c.b16 %v2810, %v2806
    %2939 = vmatprep.subr.bf16.mxu0 %v2840
    %2940 = vmatpush1.bf16.msra.mxu0 %v2839
    %2941 = vmatprep.subr.bf16.mxu0 %v2836
    %2942 = vmatpush1.bf16.msra.mxu0 %v2835
    %2943 = vmatprep.subr.bf16.mxu0 %v2832
    %2944 = vmatpush1.bf16.msra.mxu0 %v2831
    %2945 = vmatprep.subr.bf16.mxu0 %v2828
    %2946 = vmatpush1.bf16.msra.mxu0 %v2827
    %2947 = vmatprep.subr.bf16.mxu0 %v2824
    %2948 = vmatpush1.bf16.msra.mxu0 %v2823
    %2949 = vmatprep.subr.bf16.mxu0 %v2820
    %2950 = vmatpush1.bf16.msra.mxu0 %v2819
    %2951 = vmatprep.subr.bf16.mxu0 %v2816
    %2952 = vmatpush1.bf16.msra.mxu0 %v2815
    %2953 = vmatprep.subr.bf16.mxu0 %v2812
    %2954 = vmatpush1.bf16.msra.mxu0 %v2811
    %2955 = vmatprep.subr.bf16.mxu0 %v2872
    %2956 = vmatpush2.bf16.msra.mxu0 %v2871
    %2957 = vmatprep.subr.bf16.mxu0 %v2868
    %2958 = vmatpush2.bf16.msra.mxu0 %v2867
    %2959 = vmatprep.subr.bf16.mxu0 %v2864
    %2960 = vmatpush2.bf16.msra.mxu0 %v2863
    %2961 = vmatprep.subr.bf16.mxu0 %v2860
    %2962 = vmatpush2.bf16.msra.mxu0 %v2859
    %2963 = vmatprep.subr.bf16.mxu0 %v2856
    %2964 = vmatpush2.bf16.msra.mxu0 %v2855
    %2965 = vmatprep.subr.bf16.mxu0 %v2852
    %2966 = vmatpush2.bf16.msra.mxu0 %v2851
    %2967 = vmatprep.subr.bf16.mxu0 %v2848
    %2968 = vmatpush2.bf16.msra.mxu0 %v2847
    %2969 = vmatprep.subr.bf16.mxu0 %v2844
    %2970 = vmatpush2.bf16.msra.mxu0 %v2843
    %2971 = vmatprep.mubr.bf16.mxu0 %v2616
    %2972 = vmatmul.mubr.bf16.gmra.mxu0 %v2615
    %v2973 = vpop.f32.mrf.mxu0
    %v2974 = vadd.f32 0.0, %v2973
    %v2975 = vpop.f32.mrf.mxu0
    %v2976 = vadd.f32 0.0, %v2975
    %v2977 = vpop.f32.mrf.mxu0
    %v2978 = vpop.f32.mrf.mxu0
    %2979 = vdwg.mxu0
    %2980 = vmatprep.subr.bf16.mxu0 %v2842
    %2981 = vmatpush1.bf16.msra.mxu0 %v2841
    %2982 = vmatprep.subr.bf16.mxu0 %v2838
    %2983 = vmatpush1.bf16.msra.mxu0 %v2837
    %2984 = vmatprep.subr.bf16.mxu0 %v2834
    %2985 = vmatpush1.bf16.msra.mxu0 %v2833
    %2986 = vmatprep.subr.bf16.mxu0 %v2830
    %2987 = vmatpush1.bf16.msra.mxu0 %v2829
    %2988 = vmatprep.subr.bf16.mxu0 %v2826
    %2989 = vmatpush1.bf16.msra.mxu0 %v2825
    %2990 = vmatprep.subr.bf16.mxu0 %v2822
    %2991 = vmatpush1.bf16.msra.mxu0 %v2821
    %2992 = vmatprep.subr.bf16.mxu0 %v2818
    %2993 = vmatpush1.bf16.msra.mxu0 %v2817
    %2994 = vmatprep.subr.bf16.mxu0 %v2814
    %2995 = vmatpush1.bf16.msra.mxu0 %v2813
    %2996 = vmatprep.subr.bf16.mxu0 %v2874
    %2997 = vmatpush2.bf16.msra.mxu0 %v2873
    %2998 = vmatprep.subr.bf16.mxu0 %v2870
    %2999 = vmatpush2.bf16.msra.mxu0 %v2869
    %3000 = vmatprep.subr.bf16.mxu0 %v2866
    %3001 = vmatpush2.bf16.msra.mxu0 %v2865
    %3002 = vmatprep.subr.bf16.mxu0 %v2862
    %3003 = vmatpush2.bf16.msra.mxu0 %v2861
    %3004 = vmatprep.subr.bf16.mxu0 %v2858
    %3005 = vmatpush2.bf16.msra.mxu0 %v2857
    %3006 = vmatprep.subr.bf16.mxu0 %v2854
    %3007 = vmatpush2.bf16.msra.mxu0 %v2853
    %3008 = vmatprep.subr.bf16.mxu0 %v2850
    %3009 = vmatpush2.bf16.msra.mxu0 %v2849
    %3010 = vmatprep.subr.bf16.mxu0 %v2846
    %3011 = vmatpush2.bf16.msra.mxu0 %v2845
    %3012 = vmatprep.mubr.bf16.mxu0 %v2616
    %3013 = vmatmul.mubr.bf16.gmra.mxu0 %v2615
    %v3014 = vpop.f32.mrf.mxu0
    %v3015 = vadd.f32 0.0, %v3014
    %v3016 = vpop.f32.mrf.mxu0
    %v3017 = vadd.f32 0.0, %v3016
    %v3018 = vpop.f32.mrf.mxu0
    %v3019 = vpop.f32.mrf.mxu0
    %3020 = vdwg.mxu0
    %v3021 = vadd.f32 %v2546, %v2974
    %v3022 = vadd.f32 %v2547, %v2976
    %v3023 = vadd.f32 %v2548, %v3015
    %v3024 = vadd.f32 %v2549, %v3017
    %v3025 = vpack.c.bf16 %v1132, %v1132
    %v3026 = vpack.c.bf16 %v1133, %v1133
    %s3027 = scalar_lea.vmem [#allocation10], 2048
    %v3028 = vld [vmem:[%s3027] sm:$0xff]
    %v3029 = vld [vmem:[%s3027 + $0x8] sm:$0xff]
    %v3030 = vld [vmem:[%s3027 + $0x10] sm:$0xff]
    %v3031 = vld [vmem:[%s3027 + $0x18] sm:$0xff]
    %v3032 = vld [vmem:[%s3027 + $0x20] sm:$0xff]
    %v3033 = vld [vmem:[%s3027 + $0x28] sm:$0xff]
    %v3034 = vld [vmem:[%s3027 + $0x30] sm:$0xff]
    %v3035 = vld [vmem:[%s3027 + $0x38] sm:$0xff]
    %v3036 = vld [vmem:[%s3027 + $0x40] sm:$0xff]
    %v3037 = vld [vmem:[%s3027 + $0x48] sm:$0xff]
    %v3038 = vld [vmem:[%s3027 + $0x50] sm:$0xff]
    %v3039 = vld [vmem:[%s3027 + $0x58] sm:$0xff]
    %v3040 = vld [vmem:[%s3027 + $0x60] sm:$0xff]
    %v3041 = vld [vmem:[%s3027 + $0x68] sm:$0xff]
    %v3042 = vld [vmem:[%s3027 + $0x70] sm:$0xff]
    %v3043 = vld [vmem:[%s3027 + $0x78] sm:$0xff]
    %v3044 = vld [vmem:[%s3027 + $0x80] sm:$0xff]
    %v3045 = vld [vmem:[%s3027 + $0x88] sm:$0xff]
    %v3046 = vld [vmem:[%s3027 + $0x90] sm:$0xff]
    %v3047 = vld [vmem:[%s3027 + $0x98] sm:$0xff]
    %v3048 = vld [vmem:[%s3027 + $0xa0] sm:$0xff]
    %v3049 = vld [vmem:[%s3027 + $0xa8] sm:$0xff]
    %v3050 = vld [vmem:[%s3027 + $0xb0] sm:$0xff]
    %v3051 = vld [vmem:[%s3027 + $0xb8] sm:$0xff]
    %v3052 = vld [vmem:[%s3027 + $0xc0] sm:$0xff]
    %v3053 = vld [vmem:[%s3027 + $0xc8] sm:$0xff]
    %v3054 = vld [vmem:[%s3027 + $0xd0] sm:$0xff]
    %v3055 = vld [vmem:[%s3027 + $0xd8] sm:$0xff]
    %v3056 = vld [vmem:[%s3027 + $0xe0] sm:$0xff]
    %v3057 = vld [vmem:[%s3027 + $0xe8] sm:$0xff]
    %v3058 = vld [vmem:[%s3027 + $0xf0] sm:$0xff]
    %v3059 = vld [vmem:[%s3027 + $0xf8] sm:$0xff]
    %v3060 = vld [vmem:[%s3027 + $0x100] sm:$0xff]
    %v3061 = vld [vmem:[%s3027 + $0x108] sm:$0xff]
    %v3062 = vld [vmem:[%s3027 + $0x110] sm:$0xff]
    %v3063 = vld [vmem:[%s3027 + $0x118] sm:$0xff]
    %v3064 = vld [vmem:[%s3027 + $0x120] sm:$0xff]
    %v3065 = vld [vmem:[%s3027 + $0x128] sm:$0xff]
    %v3066 = vld [vmem:[%s3027 + $0x130] sm:$0xff]
    %v3067 = vld [vmem:[%s3027 + $0x138] sm:$0xff]
    %v3068 = vld [vmem:[%s3027 + $0x140] sm:$0xff]
    %v3069 = vld [vmem:[%s3027 + $0x148] sm:$0xff]
    %v3070 = vld [vmem:[%s3027 + $0x150] sm:$0xff]
    %v3071 = vld [vmem:[%s3027 + $0x158] sm:$0xff]
    %v3072 = vld [vmem:[%s3027 + $0x160] sm:$0xff]
    %v3073 = vld [vmem:[%s3027 + $0x168] sm:$0xff]
    %v3074 = vld [vmem:[%s3027 + $0x170] sm:$0xff]
    %v3075 = vld [vmem:[%s3027 + $0x178] sm:$0xff]
    %v3076 = vld [vmem:[%s3027 + $0x180] sm:$0xff]
    %v3077 = vld [vmem:[%s3027 + $0x188] sm:$0xff]
    %v3078 = vld [vmem:[%s3027 + $0x190] sm:$0xff]
    %v3079 = vld [vmem:[%s3027 + $0x198] sm:$0xff]
    %v3080 = vld [vmem:[%s3027 + $0x1a0] sm:$0xff]
    %v3081 = vld [vmem:[%s3027 + $0x1a8] sm:$0xff]
    %v3082 = vld [vmem:[%s3027 + $0x1b0] sm:$0xff]
    %v3083 = vld [vmem:[%s3027 + $0x1b8] sm:$0xff]
    %v3084 = vld [vmem:[%s3027 + $0x1c0] sm:$0xff]
    %v3085 = vld [vmem:[%s3027 + $0x1c8] sm:$0xff]
    %v3086 = vld [vmem:[%s3027 + $0x1d0] sm:$0xff]
    %v3087 = vld [vmem:[%s3027 + $0x1d8] sm:$0xff]
    %v3088 = vld [vmem:[%s3027 + $0x1e0] sm:$0xff]
    %v3089 = vld [vmem:[%s3027 + $0x1e8] sm:$0xff]
    %v3090 = vld [vmem:[%s3027 + $0x1f0] sm:$0xff]
    %v3091 = vld [vmem:[%s3027 + $0x1f8] sm:$0xff]
    %v3156 = vunpack.c.l.b16 %v3028
    %v3157 = vunpack.c.h.b16 %v3028
    %v3158 = vunpack.c.l.b16 %v3029
    %v3159 = vunpack.c.h.b16 %v3029
    %v3160 = vunpack.c.l.b16 %v3030
    %v3161 = vunpack.c.h.b16 %v3030
    %v3162 = vunpack.c.l.b16 %v3031
    %v3163 = vunpack.c.h.b16 %v3031
    %v3164 = vunpack.c.l.b16 %v3032
    %v3165 = vunpack.c.h.b16 %v3032
    %v3166 = vunpack.c.l.b16 %v3033
    %v3167 = vunpack.c.h.b16 %v3033
    %v3168 = vunpack.c.l.b16 %v3034
    %v3169 = vunpack.c.h.b16 %v3034
    %v3170 = vunpack.c.l.b16 %v3035
    %v3171 = vunpack.c.h.b16 %v3035
    %v3172 = vunpack.c.l.b16 %v3036
    %v3173 = vunpack.c.h.b16 %v3036
    %v3174 = vunpack.c.l.b16 %v3037
    %v3175 = vunpack.c.h.b16 %v3037
    %v3176 = vunpack.c.l.b16 %v3038
    %v3177 = vunpack.c.h.b16 %v3038
    %v3178 = vunpack.c.l.b16 %v3039
    %v3179 = vunpack.c.h.b16 %v3039
    %v3180 = vunpack.c.l.b16 %v3040
    %v3181 = vunpack.c.h.b16 %v3040
    %v3182 = vunpack.c.l.b16 %v3041
    %v3183 = vunpack.c.h.b16 %v3041
    %v3184 = vunpack.c.l.b16 %v3042
    %v3185 = vunpack.c.h.b16 %v3042
    %v3186 = vunpack.c.l.b16 %v3043
    %v3187 = vunpack.c.h.b16 %v3043
    %v3188 = vunpack.c.l.b16 %v3044
    %v3189 = vunpack.c.h.b16 %v3044
    %v3190 = vunpack.c.l.b16 %v3045
    %v3191 = vunpack.c.h.b16 %v3045
    %v3192 = vunpack.c.l.b16 %v3046
    %v3193 = vunpack.c.h.b16 %v3046
    %v3194 = vunpack.c.l.b16 %v3047
    %v3195 = vunpack.c.h.b16 %v3047
    %v3196 = vunpack.c.l.b16 %v3048
    %v3197 = vunpack.c.h.b16 %v3048
    %v3198 = vunpack.c.l.b16 %v3049
    %v3199 = vunpack.c.h.b16 %v3049
    %v3200 = vunpack.c.l.b16 %v3050
    %v3201 = vunpack.c.h.b16 %v3050
    %v3202 = vunpack.c.l.b16 %v3051
    %v3203 = vunpack.c.h.b16 %v3051
    %v3204 = vunpack.c.l.b16 %v3052
    %v3205 = vunpack.c.h.b16 %v3052
    %v3206 = vunpack.c.l.b16 %v3053
    %v3207 = vunpack.c.h.b16 %v3053
    %v3208 = vunpack.c.l.b16 %v3054
    %v3209 = vunpack.c.h.b16 %v3054
    %v3210 = vunpack.c.l.b16 %v3055
    %v3211 = vunpack.c.h.b16 %v3055
    %v3212 = vunpack.c.l.b16 %v3056
    %v3213 = vunpack.c.h.b16 %v3056
    %v3214 = vunpack.c.l.b16 %v3057
    %v3215 = vunpack.c.h.b16 %v3057
    %v3216 = vunpack.c.l.b16 %v3058
    %v3217 = vunpack.c.h.b16 %v3058
    %v3218 = vunpack.c.l.b16 %v3059
    %v3219 = vunpack.c.h.b16 %v3059
    %v3220 = vunpack.c.l.b16 %v3060
    %v3221 = vunpack.c.h.b16 %v3060
    %v3222 = vunpack.c.l.b16 %v3061
    %v3223 = vunpack.c.h.b16 %v3061
    %v3224 = vunpack.c.l.b16 %v3062
    %v3225 = vunpack.c.h.b16 %v3062
    %v3226 = vunpack.c.l.b16 %v3063
    %v3227 = vunpack.c.h.b16 %v3063
    %v3228 = vunpack.c.l.b16 %v3064
    %v3229 = vunpack.c.h.b16 %v3064
    %v3230 = vunpack.c.l.b16 %v3065
    %v3231 = vunpack.c.h.b16 %v3065
    %v3232 = vunpack.c.l.b16 %v3066
    %v3233 = vunpack.c.h.b16 %v3066
    %v3234 = vunpack.c.l.b16 %v3067
    %v3235 = vunpack.c.h.b16 %v3067
    %v3236 = vunpack.c.l.b16 %v3068
    %v3237 = vunpack.c.h.b16 %v3068
    %v3238 = vunpack.c.l.b16 %v3069
    %v3239 = vunpack.c.h.b16 %v3069
    %v3240 = vunpack.c.l.b16 %v3070
    %v3241 = vunpack.c.h.b16 %v3070
    %v3242 = vunpack.c.l.b16 %v3071
    %v3243 = vunpack.c.h.b16 %v3071
    %v3244 = vunpack.c.l.b16 %v3072
    %v3245 = vunpack.c.h.b16 %v3072
    %v3246 = vunpack.c.l.b16 %v3073
    %v3247 = vunpack.c.h.b16 %v3073
    %v3248 = vunpack.c.l.b16 %v3074
    %v3249 = vunpack.c.h.b16 %v3074
    %v3250 = vunpack.c.l.b16 %v3075
    %v3251 = vunpack.c.h.b16 %v3075
    %v3252 = vunpack.c.l.b16 %v3076
    %v3253 = vunpack.c.h.b16 %v3076
    %v3254 = vunpack.c.l.b16 %v3077
    %v3255 = vunpack.c.h.b16 %v3077
    %v3256 = vunpack.c.l.b16 %v3078
    %v3257 = vunpack.c.h.b16 %v3078
    %v3258 = vunpack.c.l.b16 %v3079
    %v3259 = vunpack.c.h.b16 %v3079
    %v3260 = vunpack.c.l.b16 %v3080
    %v3261 = vunpack.c.h.b16 %v3080
    %v3262 = vunpack.c.l.b16 %v3081
    %v3263 = vunpack.c.h.b16 %v3081
    %v3264 = vunpack.c.l.b16 %v3082
    %v3265 = vunpack.c.h.b16 %v3082
    %v3266 = vunpack.c.l.b16 %v3083
    %v3267 = vunpack.c.h.b16 %v3083
    %v3268 = vunpack.c.l.b16 %v3084
    %v3269 = vunpack.c.h.b16 %v3084
    %v3270 = vunpack.c.l.b16 %v3085
    %v3271 = vunpack.c.h.b16 %v3085
    %v3272 = vunpack.c.l.b16 %v3086
    %v3273 = vunpack.c.h.b16 %v3086
    %v3274 = vunpack.c.l.b16 %v3087
    %v3275 = vunpack.c.h.b16 %v3087
    %v3276 = vunpack.c.l.b16 %v3088
    %v3277 = vunpack.c.h.b16 %v3088
    %v3278 = vunpack.c.l.b16 %v3089
    %v3279 = vunpack.c.h.b16 %v3089
    %v3280 = vunpack.c.l.b16 %v3090
    %v3281 = vunpack.c.h.b16 %v3090
    %v3282 = vunpack.c.l.b16 %v3091
    %v3283 = vunpack.c.h.b16 %v3091
    %v3284 = vpack.c.b16 %v3160, %v3156
    %v3285 = vpack.c.b16 %v3161, %v3157
    %v3286 = vpack.c.b16 %v3162, %v3158
    %v3287 = vpack.c.b16 %v3163, %v3159
    %v3288 = vpack.c.b16 %v3168, %v3164
    %v3289 = vpack.c.b16 %v3169, %v3165
    %v3290 = vpack.c.b16 %v3170, %v3166
    %v3291 = vpack.c.b16 %v3171, %v3167
    %v3292 = vpack.c.b16 %v3176, %v3172
    %v3293 = vpack.c.b16 %v3177, %v3173
    %v3294 = vpack.c.b16 %v3178, %v3174
    %v3295 = vpack.c.b16 %v3179, %v3175
    %v3296 = vpack.c.b16 %v3184, %v3180
    %v3297 = vpack.c.b16 %v3185, %v3181
    %v3298 = vpack.c.b16 %v3186, %v3182
    %v3299 = vpack.c.b16 %v3187, %v3183
    %v3300 = vpack.c.b16 %v3192, %v3188
    %v3301 = vpack.c.b16 %v3193, %v3189
    %v3302 = vpack.c.b16 %v3194, %v3190
    %v3303 = vpack.c.b16 %v3195, %v3191
    %v3304 = vpack.c.b16 %v3200, %v3196
    %v3305 = vpack.c.b16 %v3201, %v3197
    %v3306 = vpack.c.b16 %v3202, %v3198
    %v3307 = vpack.c.b16 %v3203, %v3199
    %v3308 = vpack.c.b16 %v3208, %v3204
    %v3309 = vpack.c.b16 %v3209, %v3205
    %v3310 = vpack.c.b16 %v3210, %v3206
    %v3311 = vpack.c.b16 %v3211, %v3207
    %v3312 = vpack.c.b16 %v3216, %v3212
    %v3313 = vpack.c.b16 %v3217, %v3213
    %v3314 = vpack.c.b16 %v3218, %v3214
    %v3315 = vpack.c.b16 %v3219, %v3215
    %v3316 = vpack.c.b16 %v3224, %v3220
    %v3317 = vpack.c.b16 %v3225, %v3221
    %v3318 = vpack.c.b16 %v3226, %v3222
    %v3319 = vpack.c.b16 %v3227, %v3223
    %v3320 = vpack.c.b16 %v3232, %v3228
    %v3321 = vpack.c.b16 %v3233, %v3229
    %v3322 = vpack.c.b16 %v3234, %v3230
    %v3323 = vpack.c.b16 %v3235, %v3231
    %v3324 = vpack.c.b16 %v3240, %v3236
    %v3325 = vpack.c.b16 %v3241, %v3237
    %v3326 = vpack.c.b16 %v3242, %v3238
    %v3327 = vpack.c.b16 %v3243, %v3239
    %v3328 = vpack.c.b16 %v3248, %v3244
    %v3329 = vpack.c.b16 %v3249, %v3245
    %v3330 = vpack.c.b16 %v3250, %v3246
    %v3331 = vpack.c.b16 %v3251, %v3247
    %v3332 = vpack.c.b16 %v3256, %v3252
    %v3333 = vpack.c.b16 %v3257, %v3253
    %v3334 = vpack.c.b16 %v3258, %v3254
    %v3335 = vpack.c.b16 %v3259, %v3255
    %v3336 = vpack.c.b16 %v3264, %v3260
    %v3337 = vpack.c.b16 %v3265, %v3261
    %v3338 = vpack.c.b16 %v3266, %v3262
    %v3339 = vpack.c.b16 %v3267, %v3263
    %v3340 = vpack.c.b16 %v3272, %v3268
    %v3341 = vpack.c.b16 %v3273, %v3269
    %v3342 = vpack.c.b16 %v3274, %v3270
    %v3343 = vpack.c.b16 %v3275, %v3271
    %v3344 = vpack.c.b16 %v3280, %v3276
    %v3345 = vpack.c.b16 %v3281, %v3277
    %v3346 = vpack.c.b16 %v3282, %v3278
    %v3347 = vpack.c.b16 %v3283, %v3279
    %3412 = vmatprep.subr.bf16.mxu0 %v3313
    %3413 = vmatpush1.bf16.msra.mxu0 %v3312
    %3414 = vmatprep.subr.bf16.mxu0 %v3309
    %3415 = vmatpush1.bf16.msra.mxu0 %v3308
    %3416 = vmatprep.subr.bf16.mxu0 %v3305
    %3417 = vmatpush1.bf16.msra.mxu0 %v3304
    %3418 = vmatprep.subr.bf16.mxu0 %v3301
    %3419 = vmatpush1.bf16.msra.mxu0 %v3300
    %3420 = vmatprep.subr.bf16.mxu0 %v3297
    %3421 = vmatpush1.bf16.msra.mxu0 %v3296
    %3422 = vmatprep.subr.bf16.mxu0 %v3293
    %3423 = vmatpush1.bf16.msra.mxu0 %v3292
    %3424 = vmatprep.subr.bf16.mxu0 %v3289
    %3425 = vmatpush1.bf16.msra.mxu0 %v3288
    %3426 = vmatprep.subr.bf16.mxu0 %v3285
    %3427 = vmatpush1.bf16.msra.mxu0 %v3284
    %3428 = vmatprep.subr.bf16.mxu0 %v3345
    %3429 = vmatpush2.bf16.msra.mxu0 %v3344
    %3430 = vmatprep.subr.bf16.mxu0 %v3341
    %3431 = vmatpush2.bf16.msra.mxu0 %v3340
    %3432 = vmatprep.subr.bf16.mxu0 %v3337
    %3433 = vmatpush2.bf16.msra.mxu0 %v3336
    %3434 = vmatprep.subr.bf16.mxu0 %v3333
    %3435 = vmatpush2.bf16.msra.mxu0 %v3332
    %3436 = vmatprep.subr.bf16.mxu0 %v3329
    %3437 = vmatpush2.bf16.msra.mxu0 %v3328
    %3438 = vmatprep.subr.bf16.mxu0 %v3325
    %3439 = vmatpush2.bf16.msra.mxu0 %v3324
    %3440 = vmatprep.subr.bf16.mxu0 %v3321
    %3441 = vmatpush2.bf16.msra.mxu0 %v3320
    %3442 = vmatprep.subr.bf16.mxu0 %v3317
    %3443 = vmatpush2.bf16.msra.mxu0 %v3316
    %3444 = vmatprep.mubr.bf16.mxu0 %v3026
    %3445 = vmatmul.mubr.bf16.gmra.mxu0 %v3025
    %v3446 = vpop.f32.mrf.mxu0
    %v3447 = vadd.f32 0.0, %v3446
    %v3448 = vpop.f32.mrf.mxu0
    %v3449 = vadd.f32 0.0, %v3448
    %v3450 = vpop.f32.mrf.mxu0
    %v3451 = vpop.f32.mrf.mxu0
    %3452 = vdwg.mxu0
    %3453 = vmatprep.subr.bf16.mxu0 %v3315
    %3454 = vmatpush1.bf16.msra.mxu0 %v3314
    %3455 = vmatprep.subr.bf16.mxu0 %v3311
    %3456 = vmatpush1.bf16.msra.mxu0 %v3310
    %3457 = vmatprep.subr.bf16.mxu0 %v3307
    %3458 = vmatpush1.bf16.msra.mxu0 %v3306
    %3459 = vmatprep.subr.bf16.mxu0 %v3303
    %3460 = vmatpush1.bf16.msra.mxu0 %v3302
    %3461 = vmatprep.subr.bf16.mxu0 %v3299
    %3462 = vmatpush1.bf16.msra.mxu0 %v3298
    %3463 = vmatprep.subr.bf16.mxu0 %v3295
    %3464 = vmatpush1.bf16.msra.mxu0 %v3294
    %3465 = vmatprep.subr.bf16.mxu0 %v3291
    %3466 = vmatpush1.bf16.msra.mxu0 %v3290
    %3467 = vmatprep.subr.bf16.mxu0 %v3287
    %3468 = vmatpush1.bf16.msra.mxu0 %v3286
    %3469 = vmatprep.subr.bf16.mxu0 %v3347
    %3470 = vmatpush2.bf16.msra.mxu0 %v3346
    %3471 = vmatprep.subr.bf16.mxu0 %v3343
    %3472 = vmatpush2.bf16.msra.mxu0 %v3342
    %3473 = vmatprep.subr.bf16.mxu0 %v3339
    %3474 = vmatpush2.bf16.msra.mxu0 %v3338
    %3475 = vmatprep.subr.bf16.mxu0 %v3335
    %3476 = vmatpush2.bf16.msra.mxu0 %v3334
    %3477 = vmatprep.subr.bf16.mxu0 %v3331
    %3478 = vmatpush2.bf16.msra.mxu0 %v3330
    %3479 = vmatprep.subr.bf16.mxu0 %v3327
    %3480 = vmatpush2.bf16.msra.mxu0 %v3326
    %3481 = vmatprep.subr.bf16.mxu0 %v3323
    %3482 = vmatpush2.bf16.msra.mxu0 %v3322
    %3483 = vmatprep.subr.bf16.mxu0 %v3319
    %3484 = vmatpush2.bf16.msra.mxu0 %v3318
    %3485 = vmatprep.mubr.bf16.mxu0 %v3026
    %3486 = vmatmul.mubr.bf16.gmra.mxu0 %v3025
    %v3487 = vpop.f32.mrf.mxu0
    %v3488 = vadd.f32 0.0, %v3487
    %v3489 = vpop.f32.mrf.mxu0
    %v3490 = vadd.f32 0.0, %v3489
    %v3491 = vpop.f32.mrf.mxu0
    %v3492 = vpop.f32.mrf.mxu0
    %3493 = vdwg.mxu0
    %v3494 = vadd.f32 %v3021, %v3447
    %v3495 = vadd.f32 %v3022, %v3449
    %v3496 = vadd.f32 %v3023, %v3488
    %v3497 = vadd.f32 %v3024, %v3490
    %s3498 = scalar_lea.vmem [#allocation10], 2560
    %v3499 = vld [vmem:[%s3498] sm:$0xff]
    %v3500 = vld [vmem:[%s3498 + $0x8] sm:$0xff]
    %v3501 = vld [vmem:[%s3498 + $0x10] sm:$0xff]
    %v3502 = vld [vmem:[%s3498 + $0x18] sm:$0xff]
    %v3503 = vld [vmem:[%s3498 + $0x20] sm:$0xff]
    %v3504 = vld [vmem:[%s3498 + $0x28] sm:$0xff]
    %v3505 = vld [vmem:[%s3498 + $0x30] sm:$0xff]
    %v3506 = vld [vmem:[%s3498 + $0x38] sm:$0xff]
    %v3507 = vld [vmem:[%s3498 + $0x40] sm:$0xff]
    %v3508 = vld [vmem:[%s3498 + $0x48] sm:$0xff]
    %v3509 = vld [vmem:[%s3498 + $0x50] sm:$0xff]
    %v3510 = vld [vmem:[%s3498 + $0x58] sm:$0xff]
    %v3511 = vld [vmem:[%s3498 + $0x60] sm:$0xff]
    %v3512 = vld [vmem:[%s3498 + $0x68] sm:$0xff]
    %v3513 = vld [vmem:[%s3498 + $0x70] sm:$0xff]
    %v3514 = vld [vmem:[%s3498 + $0x78] sm:$0xff]
    %v3515 = vld [vmem:[%s3498 + $0x80] sm:$0xff]
    %v3516 = vld [vmem:[%s3498 + $0x88] sm:$0xff]
    %v3517 = vld [vmem:[%s3498 + $0x90] sm:$0xff]
    %v3518 = vld [vmem:[%s3498 + $0x98] sm:$0xff]
    %v3519 = vld [vmem:[%s3498 + $0xa0] sm:$0xff]
    %v3520 = vld [vmem:[%s3498 + $0xa8] sm:$0xff]
    %v3521 = vld [vmem:[%s3498 + $0xb0] sm:$0xff]
    %v3522 = vld [vmem:[%s3498 + $0xb8] sm:$0xff]
    %v3523 = vld [vmem:[%s3498 + $0xc0] sm:$0xff]
    %v3524 = vld [vmem:[%s3498 + $0xc8] sm:$0xff]
    %v3525 = vld [vmem:[%s3498 + $0xd0] sm:$0xff]
    %v3526 = vld [vmem:[%s3498 + $0xd8] sm:$0xff]
    %v3527 = vld [vmem:[%s3498 + $0xe0] sm:$0xff]
    %v3528 = vld [vmem:[%s3498 + $0xe8] sm:$0xff]
    %v3529 = vld [vmem:[%s3498 + $0xf0] sm:$0xff]
    %v3530 = vld [vmem:[%s3498 + $0xf8] sm:$0xff]
    %v3531 = vld [vmem:[%s3498 + $0x100] sm:$0xff]
    %v3532 = vld [vmem:[%s3498 + $0x108] sm:$0xff]
    %v3533 = vld [vmem:[%s3498 + $0x110] sm:$0xff]
    %v3534 = vld [vmem:[%s3498 + $0x118] sm:$0xff]
    %v3535 = vld [vmem:[%s3498 + $0x120] sm:$0xff]
    %v3536 = vld [vmem:[%s3498 + $0x128] sm:$0xff]
    %v3537 = vld [vmem:[%s3498 + $0x130] sm:$0xff]
    %v3538 = vld [vmem:[%s3498 + $0x138] sm:$0xff]
    %v3539 = vld [vmem:[%s3498 + $0x140] sm:$0xff]
    %v3540 = vld [vmem:[%s3498 + $0x148] sm:$0xff]
    %v3541 = vld [vmem:[%s3498 + $0x150] sm:$0xff]
    %v3542 = vld [vmem:[%s3498 + $0x158] sm:$0xff]
    %v3543 = vld [vmem:[%s3498 + $0x160] sm:$0xff]
    %v3544 = vld [vmem:[%s3498 + $0x168] sm:$0xff]
    %v3545 = vld [vmem:[%s3498 + $0x170] sm:$0xff]
    %v3546 = vld [vmem:[%s3498 + $0x178] sm:$0xff]
    %v3547 = vld [vmem:[%s3498 + $0x180] sm:$0xff]
    %v3548 = vld [vmem:[%s3498 + $0x188] sm:$0xff]
    %v3549 = vld [vmem:[%s3498 + $0x190] sm:$0xff]
    %v3550 = vld [vmem:[%s3498 + $0x198] sm:$0xff]
    %v3551 = vld [vmem:[%s3498 + $0x1a0] sm:$0xff]
    %v3552 = vld [vmem:[%s3498 + $0x1a8] sm:$0xff]
    %v3553 = vld [vmem:[%s3498 + $0x1b0] sm:$0xff]
    %v3554 = vld [vmem:[%s3498 + $0x1b8] sm:$0xff]
    %v3555 = vld [vmem:[%s3498 + $0x1c0] sm:$0xff]
    %v3556 = vld [vmem:[%s3498 + $0x1c8] sm:$0xff]
    %v3557 = vld [vmem:[%s3498 + $0x1d0] sm:$0xff]
    %v3558 = vld [vmem:[%s3498 + $0x1d8] sm:$0xff]
    %v3559 = vld [vmem:[%s3498 + $0x1e0] sm:$0xff]
    %v3560 = vld [vmem:[%s3498 + $0x1e8] sm:$0xff]
    %v3561 = vld [vmem:[%s3498 + $0x1f0] sm:$0xff]
    %v3562 = vld [vmem:[%s3498 + $0x1f8] sm:$0xff]
    %v3565 = vrot.slane %v3025, 1
    %v3566 = vrot.slane %v3026, 1
    %v3633 = vunpack.c.l.b16 %v3499
    %v3634 = vunpack.c.h.b16 %v3499
    %v3635 = vunpack.c.l.b16 %v3500
    %v3636 = vunpack.c.h.b16 %v3500
    %v3637 = vunpack.c.l.b16 %v3501
    %v3638 = vunpack.c.h.b16 %v3501
    %v3639 = vunpack.c.l.b16 %v3502
    %v3640 = vunpack.c.h.b16 %v3502
    %v3641 = vunpack.c.l.b16 %v3503
    %v3642 = vunpack.c.h.b16 %v3503
    %v3643 = vunpack.c.l.b16 %v3504
    %v3644 = vunpack.c.h.b16 %v3504
    %v3645 = vunpack.c.l.b16 %v3505
    %v3646 = vunpack.c.h.b16 %v3505
    %v3647 = vunpack.c.l.b16 %v3506
    %v3648 = vunpack.c.h.b16 %v3506
    %v3649 = vunpack.c.l.b16 %v3507
    %v3650 = vunpack.c.h.b16 %v3507
    %v3651 = vunpack.c.l.b16 %v3508
    %v3652 = vunpack.c.h.b16 %v3508
    %v3653 = vunpack.c.l.b16 %v3509
    %v3654 = vunpack.c.h.b16 %v3509
    %v3655 = vunpack.c.l.b16 %v3510
    %v3656 = vunpack.c.h.b16 %v3510
    %v3657 = vunpack.c.l.b16 %v3511
    %v3658 = vunpack.c.h.b16 %v3511
    %v3659 = vunpack.c.l.b16 %v3512
    %v3660 = vunpack.c.h.b16 %v3512
    %v3661 = vunpack.c.l.b16 %v3513
    %v3662 = vunpack.c.h.b16 %v3513
    %v3663 = vunpack.c.l.b16 %v3514
    %v3664 = vunpack.c.h.b16 %v3514
    %v3665 = vunpack.c.l.b16 %v3515
    %v3666 = vunpack.c.h.b16 %v3515
    %v3667 = vunpack.c.l.b16 %v3516
    %v3668 = vunpack.c.h.b16 %v3516
    %v3669 = vunpack.c.l.b16 %v3517
    %v3670 = vunpack.c.h.b16 %v3517
    %v3671 = vunpack.c.l.b16 %v3518
    %v3672 = vunpack.c.h.b16 %v3518
    %v3673 = vunpack.c.l.b16 %v3519
    %v3674 = vunpack.c.h.b16 %v3519
    %v3675 = vunpack.c.l.b16 %v3520
    %v3676 = vunpack.c.h.b16 %v3520
    %v3677 = vunpack.c.l.b16 %v3521
    %v3678 = vunpack.c.h.b16 %v3521
    %v3679 = vunpack.c.l.b16 %v3522
    %v3680 = vunpack.c.h.b16 %v3522
    %v3681 = vunpack.c.l.b16 %v3523
    %v3682 = vunpack.c.h.b16 %v3523
    %v3683 = vunpack.c.l.b16 %v3524
    %v3684 = vunpack.c.h.b16 %v3524
    %v3685 = vunpack.c.l.b16 %v3525
    %v3686 = vunpack.c.h.b16 %v3525
    %v3687 = vunpack.c.l.b16 %v3526
    %v3688 = vunpack.c.h.b16 %v3526
    %v3689 = vunpack.c.l.b16 %v3527
    %v3690 = vunpack.c.h.b16 %v3527
    %v3691 = vunpack.c.l.b16 %v3528
    %v3692 = vunpack.c.h.b16 %v3528
    %v3693 = vunpack.c.l.b16 %v3529
    %v3694 = vunpack.c.h.b16 %v3529
    %v3695 = vunpack.c.l.b16 %v3530
    %v3696 = vunpack.c.h.b16 %v3530
    %v3697 = vunpack.c.l.b16 %v3531
    %v3698 = vunpack.c.h.b16 %v3531
    %v3699 = vunpack.c.l.b16 %v3532
    %v3700 = vunpack.c.h.b16 %v3532
    %v3701 = vunpack.c.l.b16 %v3533
    %v3702 = vunpack.c.h.b16 %v3533
    %v3703 = vunpack.c.l.b16 %v3534
    %v3704 = vunpack.c.h.b16 %v3534
    %v3705 = vunpack.c.l.b16 %v3535
    %v3706 = vunpack.c.h.b16 %v3535
    %v3707 = vunpack.c.l.b16 %v3536
    %v3708 = vunpack.c.h.b16 %v3536
    %v3709 = vunpack.c.l.b16 %v3537
    %v3710 = vunpack.c.h.b16 %v3537
    %v3711 = vunpack.c.l.b16 %v3538
    %v3712 = vunpack.c.h.b16 %v3538
    %v3713 = vunpack.c.l.b16 %v3539
    %v3714 = vunpack.c.h.b16 %v3539
    %v3715 = vunpack.c.l.b16 %v3540
    %v3716 = vunpack.c.h.b16 %v3540
    %v3717 = vunpack.c.l.b16 %v3541
    %v3718 = vunpack.c.h.b16 %v3541
    %v3719 = vunpack.c.l.b16 %v3542
    %v3720 = vunpack.c.h.b16 %v3542
    %v3721 = vunpack.c.l.b16 %v3543
    %v3722 = vunpack.c.h.b16 %v3543
    %v3723 = vunpack.c.l.b16 %v3544
    %v3724 = vunpack.c.h.b16 %v3544
    %v3725 = vunpack.c.l.b16 %v3545
    %v3726 = vunpack.c.h.b16 %v3545
    %v3727 = vunpack.c.l.b16 %v3546
    %v3728 = vunpack.c.h.b16 %v3546
    %v3729 = vunpack.c.l.b16 %v3547
    %v3730 = vunpack.c.h.b16 %v3547
    %v3731 = vunpack.c.l.b16 %v3548
    %v3732 = vunpack.c.h.b16 %v3548
    %v3733 = vunpack.c.l.b16 %v3549
    %v3734 = vunpack.c.h.b16 %v3549
    %v3735 = vunpack.c.l.b16 %v3550
    %v3736 = vunpack.c.h.b16 %v3550
    %v3737 = vunpack.c.l.b16 %v3551
    %v3738 = vunpack.c.h.b16 %v3551
    %v3739 = vunpack.c.l.b16 %v3552
    %v3740 = vunpack.c.h.b16 %v3552
    %v3741 = vunpack.c.l.b16 %v3553
    %v3742 = vunpack.c.h.b16 %v3553
    %v3743 = vunpack.c.l.b16 %v3554
    %v3744 = vunpack.c.h.b16 %v3554
    %v3745 = vunpack.c.l.b16 %v3555
    %v3746 = vunpack.c.h.b16 %v3555
    %v3747 = vunpack.c.l.b16 %v3556
    %v3748 = vunpack.c.h.b16 %v3556
    %v3749 = vunpack.c.l.b16 %v3557
    %v3750 = vunpack.c.h.b16 %v3557
    %v3751 = vunpack.c.l.b16 %v3558
    %v3752 = vunpack.c.h.b16 %v3558
    %v3753 = vunpack.c.l.b16 %v3559
    %v3754 = vunpack.c.h.b16 %v3559
    %v3755 = vunpack.c.l.b16 %v3560
    %v3756 = vunpack.c.h.b16 %v3560
    %v3757 = vunpack.c.l.b16 %v3561
    %v3758 = vunpack.c.h.b16 %v3561
    %v3759 = vunpack.c.l.b16 %v3562
    %v3760 = vunpack.c.h.b16 %v3562
    %v3761 = vpack.c.b16 %v3637, %v3633
    %v3762 = vpack.c.b16 %v3638, %v3634
    %v3763 = vpack.c.b16 %v3639, %v3635
    %v3764 = vpack.c.b16 %v3640, %v3636
    %v3765 = vpack.c.b16 %v3645, %v3641
    %v3766 = vpack.c.b16 %v3646, %v3642
    %v3767 = vpack.c.b16 %v3647, %v3643
    %v3768 = vpack.c.b16 %v3648, %v3644
    %v3769 = vpack.c.b16 %v3653, %v3649
    %v3770 = vpack.c.b16 %v3654, %v3650
    %v3771 = vpack.c.b16 %v3655, %v3651
    %v3772 = vpack.c.b16 %v3656, %v3652
    %v3773 = vpack.c.b16 %v3661, %v3657
    %v3774 = vpack.c.b16 %v3662, %v3658
    %v3775 = vpack.c.b16 %v3663, %v3659
    %v3776 = vpack.c.b16 %v3664, %v3660
    %v3777 = vpack.c.b16 %v3669, %v3665
    %v3778 = vpack.c.b16 %v3670, %v3666
    %v3779 = vpack.c.b16 %v3671, %v3667
    %v3780 = vpack.c.b16 %v3672, %v3668
    %v3781 = vpack.c.b16 %v3677, %v3673
    %v3782 = vpack.c.b16 %v3678, %v3674
    %v3783 = vpack.c.b16 %v3679, %v3675
    %v3784 = vpack.c.b16 %v3680, %v3676
    %v3785 = vpack.c.b16 %v3685, %v3681
    %v3786 = vpack.c.b16 %v3686, %v3682
    %v3787 = vpack.c.b16 %v3687, %v3683
    %v3788 = vpack.c.b16 %v3688, %v3684
    %v3789 = vpack.c.b16 %v3693, %v3689
    %v3790 = vpack.c.b16 %v3694, %v3690
    %v3791 = vpack.c.b16 %v3695, %v3691
    %v3792 = vpack.c.b16 %v3696, %v3692
    %v3793 = vpack.c.b16 %v3701, %v3697
    %v3794 = vpack.c.b16 %v3702, %v3698
    %v3795 = vpack.c.b16 %v3703, %v3699
    %v3796 = vpack.c.b16 %v3704, %v3700
    %v3797 = vpack.c.b16 %v3709, %v3705
    %v3798 = vpack.c.b16 %v3710, %v3706
    %v3799 = vpack.c.b16 %v3711, %v3707
    %v3800 = vpack.c.b16 %v3712, %v3708
    %v3801 = vpack.c.b16 %v3717, %v3713
    %v3802 = vpack.c.b16 %v3718, %v3714
    %v3803 = vpack.c.b16 %v3719, %v3715
    %v3804 = vpack.c.b16 %v3720, %v3716
    %v3805 = vpack.c.b16 %v3725, %v3721
    %v3806 = vpack.c.b16 %v3726, %v3722
    %v3807 = vpack.c.b16 %v3727, %v3723
    %v3808 = vpack.c.b16 %v3728, %v3724
    %v3809 = vpack.c.b16 %v3733, %v3729
    %v3810 = vpack.c.b16 %v3734, %v3730
    %v3811 = vpack.c.b16 %v3735, %v3731
    %v3812 = vpack.c.b16 %v3736, %v3732
    %v3813 = vpack.c.b16 %v3741, %v3737
    %v3814 = vpack.c.b16 %v3742, %v3738
    %v3815 = vpack.c.b16 %v3743, %v3739
    %v3816 = vpack.c.b16 %v3744, %v3740
    %v3817 = vpack.c.b16 %v3749, %v3745
    %v3818 = vpack.c.b16 %v3750, %v3746
    %v3819 = vpack.c.b16 %v3751, %v3747
    %v3820 = vpack.c.b16 %v3752, %v3748
    %v3821 = vpack.c.b16 %v3757, %v3753
    %v3822 = vpack.c.b16 %v3758, %v3754
    %v3823 = vpack.c.b16 %v3759, %v3755
    %v3824 = vpack.c.b16 %v3760, %v3756
    %3889 = vmatprep.subr.bf16.mxu0 %v3790
    %3890 = vmatpush1.bf16.msra.mxu0 %v3789
    %3891 = vmatprep.subr.bf16.mxu0 %v3786
    %3892 = vmatpush1.bf16.msra.mxu0 %v3785
    %3893 = vmatprep.subr.bf16.mxu0 %v3782
    %3894 = vmatpush1.bf16.msra.mxu0 %v3781
    %3895 = vmatprep.subr.bf16.mxu0 %v3778
    %3896 = vmatpush1.bf16.msra.mxu0 %v3777
    %3897 = vmatprep.subr.bf16.mxu0 %v3774
    %3898 = vmatpush1.bf16.msra.mxu0 %v3773
    %3899 = vmatprep.subr.bf16.mxu0 %v3770
    %3900 = vmatpush1.bf16.msra.mxu0 %v3769
    %3901 = vmatprep.subr.bf16.mxu0 %v3766
    %3902 = vmatpush1.bf16.msra.mxu0 %v3765
    %3903 = vmatprep.subr.bf16.mxu0 %v3762
    %3904 = vmatpush1.bf16.msra.mxu0 %v3761
    %3905 = vmatprep.subr.bf16.mxu0 %v3822
    %3906 = vmatpush2.bf16.msra.mxu0 %v3821
    %3907 = vmatprep.subr.bf16.mxu0 %v3818
    %3908 = vmatpush2.bf16.msra.mxu0 %v3817
    %3909 = vmatprep.subr.bf16.mxu0 %v3814
    %3910 = vmatpush2.bf16.msra.mxu0 %v3813
    %3911 = vmatprep.subr.bf16.mxu0 %v3810
    %3912 = vmatpush2.bf16.msra.mxu0 %v3809
    %3913 = vmatprep.subr.bf16.mxu0 %v3806
    %3914 = vmatpush2.bf16.msra.mxu0 %v3805
    %3915 = vmatprep.subr.bf16.mxu0 %v3802
    %3916 = vmatpush2.bf16.msra.mxu0 %v3801
    %3917 = vmatprep.subr.bf16.mxu0 %v3798
    %3918 = vmatpush2.bf16.msra.mxu0 %v3797
    %3919 = vmatprep.subr.bf16.mxu0 %v3794
    %3920 = vmatpush2.bf16.msra.mxu0 %v3793
    %3921 = vmatprep.mubr.bf16.mxu0 %v3566
    %3922 = vmatmul.mubr.bf16.gmra.mxu0 %v3565
    %v3923 = vpop.f32.mrf.mxu0
    %v3924 = vadd.f32 0.0, %v3923
    %v3925 = vpop.f32.mrf.mxu0
    %v3926 = vadd.f32 0.0, %v3925
    %v3927 = vpop.f32.mrf.mxu0
    %v3928 = vpop.f32.mrf.mxu0
    %3929 = vdwg.mxu0
    %3930 = vmatprep.subr.bf16.mxu0 %v3792
    %3931 = vmatpush1.bf16.msra.mxu0 %v3791
    %3932 = vmatprep.subr.bf16.mxu0 %v3788
    %3933 = vmatpush1.bf16.msra.mxu0 %v3787
    %3934 = vmatprep.subr.bf16.mxu0 %v3784
    %3935 = vmatpush1.bf16.msra.mxu0 %v3783
    %3936 = vmatprep.subr.bf16.mxu0 %v3780
    %3937 = vmatpush1.bf16.msra.mxu0 %v3779
    %3938 = vmatprep.subr.bf16.mxu0 %v3776
    %3939 = vmatpush1.bf16.msra.mxu0 %v3775
    %3940 = vmatprep.subr.bf16.mxu0 %v3772
    %3941 = vmatpush1.bf16.msra.mxu0 %v3771
    %3942 = vmatprep.subr.bf16.mxu0 %v3768
    %3943 = vmatpush1.bf16.msra.mxu0 %v3767
    %3944 = vmatprep.subr.bf16.mxu0 %v3764
    %3945 = vmatpush1.bf16.msra.mxu0 %v3763
    %3946 = vmatprep.subr.bf16.mxu0 %v3824
    %3947 = vmatpush2.bf16.msra.mxu0 %v3823
    %3948 = vmatprep.subr.bf16.mxu0 %v3820
    %3949 = vmatpush2.bf16.msra.mxu0 %v3819
    %3950 = vmatprep.subr.bf16.mxu0 %v3816
    %3951 = vmatpush2.bf16.msra.mxu0 %v3815
    %3952 = vmatprep.subr.bf16.mxu0 %v3812
    %3953 = vmatpush2.bf16.msra.mxu0 %v3811
    %3954 = vmatprep.subr.bf16.mxu0 %v3808
    %3955 = vmatpush2.bf16.msra.mxu0 %v3807
    %3956 = vmatprep.subr.bf16.mxu0 %v3804
    %3957 = vmatpush2.bf16.msra.mxu0 %v3803
    %3958 = vmatprep.subr.bf16.mxu0 %v3800
    %3959 = vmatpush2.bf16.msra.mxu0 %v3799
    %3960 = vmatprep.subr.bf16.mxu0 %v3796
    %3961 = vmatpush2.bf16.msra.mxu0 %v3795
    %3962 = vmatprep.mubr.bf16.mxu0 %v3566
    %3963 = vmatmul.mubr.bf16.gmra.mxu0 %v3565
    %v3964 = vpop.f32.mrf.mxu0
    %v3965 = vadd.f32 0.0, %v3964
    %v3966 = vpop.f32.mrf.mxu0
    %v3967 = vadd.f32 0.0, %v3966
    %v3968 = vpop.f32.mrf.mxu0
    %v3969 = vpop.f32.mrf.mxu0
    %3970 = vdwg.mxu0
    %v3971 = vadd.f32 %v3494, %v3924
    %v3972 = vadd.f32 %v3495, %v3926
    %v3973 = vadd.f32 %v3496, %v3965
    %v3974 = vadd.f32 %v3497, %v3967
    %s3975 = scalar_lea.vmem [#allocation10], 3072
    %v3976 = vld [vmem:[%s3975] sm:$0xff]
    %v3977 = vld [vmem:[%s3975 + $0x8] sm:$0xff]
    %v3978 = vld [vmem:[%s3975 + $0x10] sm:$0xff]
    %v3979 = vld [vmem:[%s3975 + $0x18] sm:$0xff]
    %v3980 = vld [vmem:[%s3975 + $0x20] sm:$0xff]
    %v3981 = vld [vmem:[%s3975 + $0x28] sm:$0xff]
    %v3982 = vld [vmem:[%s3975 + $0x30] sm:$0xff]
    %v3983 = vld [vmem:[%s3975 + $0x38] sm:$0xff]
    %v3984 = vld [vmem:[%s3975 + $0x40] sm:$0xff]
    %v3985 = vld [vmem:[%s3975 + $0x48] sm:$0xff]
    %v3986 = vld [vmem:[%s3975 + $0x50] sm:$0xff]
    %v3987 = vld [vmem:[%s3975 + $0x58] sm:$0xff]
    %v3988 = vld [vmem:[%s3975 + $0x60] sm:$0xff]
    %v3989 = vld [vmem:[%s3975 + $0x68] sm:$0xff]
    %v3990 = vld [vmem:[%s3975 + $0x70] sm:$0xff]
    %v3991 = vld [vmem:[%s3975 + $0x78] sm:$0xff]
    %v3992 = vld [vmem:[%s3975 + $0x80] sm:$0xff]
    %v3993 = vld [vmem:[%s3975 + $0x88] sm:$0xff]
    %v3994 = vld [vmem:[%s3975 + $0x90] sm:$0xff]
    %v3995 = vld [vmem:[%s3975 + $0x98] sm:$0xff]
    %v3996 = vld [vmem:[%s3975 + $0xa0] sm:$0xff]
    %v3997 = vld [vmem:[%s3975 + $0xa8] sm:$0xff]
    %v3998 = vld [vmem:[%s3975 + $0xb0] sm:$0xff]
    %v3999 = vld [vmem:[%s3975 + $0xb8] sm:$0xff]
    %v4000 = vld [vmem:[%s3975 + $0xc0] sm:$0xff]
    %v4001 = vld [vmem:[%s3975 + $0xc8] sm:$0xff]
    %v4002 = vld [vmem:[%s3975 + $0xd0] sm:$0xff]
    %v4003 = vld [vmem:[%s3975 + $0xd8] sm:$0xff]
    %v4004 = vld [vmem:[%s3975 + $0xe0] sm:$0xff]
    %v4005 = vld [vmem:[%s3975 + $0xe8] sm:$0xff]
    %v4006 = vld [vmem:[%s3975 + $0xf0] sm:$0xff]
    %v4007 = vld [vmem:[%s3975 + $0xf8] sm:$0xff]
    %v4008 = vld [vmem:[%s3975 + $0x100] sm:$0xff]
    %v4009 = vld [vmem:[%s3975 + $0x108] sm:$0xff]
    %v4010 = vld [vmem:[%s3975 + $0x110] sm:$0xff]
    %v4011 = vld [vmem:[%s3975 + $0x118] sm:$0xff]
    %v4012 = vld [vmem:[%s3975 + $0x120] sm:$0xff]
    %v4013 = vld [vmem:[%s3975 + $0x128] sm:$0xff]
    %v4014 = vld [vmem:[%s3975 + $0x130] sm:$0xff]
    %v4015 = vld [vmem:[%s3975 + $0x138] sm:$0xff]
    %v4016 = vld [vmem:[%s3975 + $0x140] sm:$0xff]
    %v4017 = vld [vmem:[%s3975 + $0x148] sm:$0xff]
    %v4018 = vld [vmem:[%s3975 + $0x150] sm:$0xff]
    %v4019 = vld [vmem:[%s3975 + $0x158] sm:$0xff]
    %v4020 = vld [vmem:[%s3975 + $0x160] sm:$0xff]
    %v4021 = vld [vmem:[%s3975 + $0x168] sm:$0xff]
    %v4022 = vld [vmem:[%s3975 + $0x170] sm:$0xff]
    %v4023 = vld [vmem:[%s3975 + $0x178] sm:$0xff]
    %v4024 = vld [vmem:[%s3975 + $0x180] sm:$0xff]
    %v4025 = vld [vmem:[%s3975 + $0x188] sm:$0xff]
    %v4026 = vld [vmem:[%s3975 + $0x190] sm:$0xff]
    %v4027 = vld [vmem:[%s3975 + $0x198] sm:$0xff]
    %v4028 = vld [vmem:[%s3975 + $0x1a0] sm:$0xff]
    %v4029 = vld [vmem:[%s3975 + $0x1a8] sm:$0xff]
    %v4030 = vld [vmem:[%s3975 + $0x1b0] sm:$0xff]
    %v4031 = vld [vmem:[%s3975 + $0x1b8] sm:$0xff]
    %v4032 = vld [vmem:[%s3975 + $0x1c0] sm:$0xff]
    %v4033 = vld [vmem:[%s3975 + $0x1c8] sm:$0xff]
    %v4034 = vld [vmem:[%s3975 + $0x1d0] sm:$0xff]
    %v4035 = vld [vmem:[%s3975 + $0x1d8] sm:$0xff]
    %v4036 = vld [vmem:[%s3975 + $0x1e0] sm:$0xff]
    %v4037 = vld [vmem:[%s3975 + $0x1e8] sm:$0xff]
    %v4038 = vld [vmem:[%s3975 + $0x1f0] sm:$0xff]
    %v4039 = vld [vmem:[%s3975 + $0x1f8] sm:$0xff]
    %v4040 = vrot.slane %v3025, 2
    %v4041 = vrot.slane %v3026, 2
    %v4108 = vunpack.c.l.b16 %v3976
    %v4109 = vunpack.c.h.b16 %v3976
    %v4110 = vunpack.c.l.b16 %v3977
    %v4111 = vunpack.c.h.b16 %v3977
    %v4112 = vunpack.c.l.b16 %v3978
    %v4113 = vunpack.c.h.b16 %v3978
    %v4114 = vunpack.c.l.b16 %v3979
    %v4115 = vunpack.c.h.b16 %v3979
    %v4116 = vunpack.c.l.b16 %v3980
    %v4117 = vunpack.c.h.b16 %v3980
    %v4118 = vunpack.c.l.b16 %v3981
    %v4119 = vunpack.c.h.b16 %v3981
    %v4120 = vunpack.c.l.b16 %v3982
    %v4121 = vunpack.c.h.b16 %v3982
    %v4122 = vunpack.c.l.b16 %v3983
    %v4123 = vunpack.c.h.b16 %v3983
    %v4124 = vunpack.c.l.b16 %v3984
    %v4125 = vunpack.c.h.b16 %v3984
    %v4126 = vunpack.c.l.b16 %v3985
    %v4127 = vunpack.c.h.b16 %v3985
    %v4128 = vunpack.c.l.b16 %v3986
    %v4129 = vunpack.c.h.b16 %v3986
    %v4130 = vunpack.c.l.b16 %v3987
    %v4131 = vunpack.c.h.b16 %v3987
    %v4132 = vunpack.c.l.b16 %v3988
    %v4133 = vunpack.c.h.b16 %v3988
    %v4134 = vunpack.c.l.b16 %v3989
    %v4135 = vunpack.c.h.b16 %v3989
    %v4136 = vunpack.c.l.b16 %v3990
    %v4137 = vunpack.c.h.b16 %v3990
    %v4138 = vunpack.c.l.b16 %v3991
    %v4139 = vunpack.c.h.b16 %v3991
    %v4140 = vunpack.c.l.b16 %v3992
    %v4141 = vunpack.c.h.b16 %v3992
    %v4142 = vunpack.c.l.b16 %v3993
    %v4143 = vunpack.c.h.b16 %v3993
    %v4144 = vunpack.c.l.b16 %v3994
    %v4145 = vunpack.c.h.b16 %v3994
    %v4146 = vunpack.c.l.b16 %v3995
    %v4147 = vunpack.c.h.b16 %v3995
    %v4148 = vunpack.c.l.b16 %v3996
    %v4149 = vunpack.c.h.b16 %v3996
    %v4150 = vunpack.c.l.b16 %v3997
    %v4151 = vunpack.c.h.b16 %v3997
    %v4152 = vunpack.c.l.b16 %v3998
    %v4153 = vunpack.c.h.b16 %v3998
    %v4154 = vunpack.c.l.b16 %v3999
    %v4155 = vunpack.c.h.b16 %v3999
    %v4156 = vunpack.c.l.b16 %v4000
    %v4157 = vunpack.c.h.b16 %v4000
    %v4158 = vunpack.c.l.b16 %v4001
    %v4159 = vunpack.c.h.b16 %v4001
    %v4160 = vunpack.c.l.b16 %v4002
    %v4161 = vunpack.c.h.b16 %v4002
    %v4162 = vunpack.c.l.b16 %v4003
    %v4163 = vunpack.c.h.b16 %v4003
    %v4164 = vunpack.c.l.b16 %v4004
    %v4165 = vunpack.c.h.b16 %v4004
    %v4166 = vunpack.c.l.b16 %v4005
    %v4167 = vunpack.c.h.b16 %v4005
    %v4168 = vunpack.c.l.b16 %v4006
    %v4169 = vunpack.c.h.b16 %v4006
    %v4170 = vunpack.c.l.b16 %v4007
    %v4171 = vunpack.c.h.b16 %v4007
    %v4172 = vunpack.c.l.b16 %v4008
    %v4173 = vunpack.c.h.b16 %v4008
    %v4174 = vunpack.c.l.b16 %v4009
    %v4175 = vunpack.c.h.b16 %v4009
    %v4176 = vunpack.c.l.b16 %v4010
    %v4177 = vunpack.c.h.b16 %v4010
    %v4178 = vunpack.c.l.b16 %v4011
    %v4179 = vunpack.c.h.b16 %v4011
    %v4180 = vunpack.c.l.b16 %v4012
    %v4181 = vunpack.c.h.b16 %v4012
    %v4182 = vunpack.c.l.b16 %v4013
    %v4183 = vunpack.c.h.b16 %v4013
    %v4184 = vunpack.c.l.b16 %v4014
    %v4185 = vunpack.c.h.b16 %v4014
    %v4186 = vunpack.c.l.b16 %v4015
    %v4187 = vunpack.c.h.b16 %v4015
    %v4188 = vunpack.c.l.b16 %v4016
    %v4189 = vunpack.c.h.b16 %v4016
    %v4190 = vunpack.c.l.b16 %v4017
    %v4191 = vunpack.c.h.b16 %v4017
    %v4192 = vunpack.c.l.b16 %v4018
    %v4193 = vunpack.c.h.b16 %v4018
    %v4194 = vunpack.c.l.b16 %v4019
    %v4195 = vunpack.c.h.b16 %v4019
    %v4196 = vunpack.c.l.b16 %v4020
    %v4197 = vunpack.c.h.b16 %v4020
    %v4198 = vunpack.c.l.b16 %v4021
    %v4199 = vunpack.c.h.b16 %v4021
    %v4200 = vunpack.c.l.b16 %v4022
    %v4201 = vunpack.c.h.b16 %v4022
    %v4202 = vunpack.c.l.b16 %v4023
    %v4203 = vunpack.c.h.b16 %v4023
    %v4204 = vunpack.c.l.b16 %v4024
    %v4205 = vunpack.c.h.b16 %v4024
    %v4206 = vunpack.c.l.b16 %v4025
    %v4207 = vunpack.c.h.b16 %v4025
    %v4208 = vunpack.c.l.b16 %v4026
    %v4209 = vunpack.c.h.b16 %v4026
    %v4210 = vunpack.c.l.b16 %v4027
    %v4211 = vunpack.c.h.b16 %v4027
    %v4212 = vunpack.c.l.b16 %v4028
    %v4213 = vunpack.c.h.b16 %v4028
    %v4214 = vunpack.c.l.b16 %v4029
    %v4215 = vunpack.c.h.b16 %v4029
    %v4216 = vunpack.c.l.b16 %v4030
    %v4217 = vunpack.c.h.b16 %v4030
    %v4218 = vunpack.c.l.b16 %v4031
    %v4219 = vunpack.c.h.b16 %v4031
    %v4220 = vunpack.c.l.b16 %v4032
    %v4221 = vunpack.c.h.b16 %v4032
    %v4222 = vunpack.c.l.b16 %v4033
    %v4223 = vunpack.c.h.b16 %v4033
    %v4224 = vunpack.c.l.b16 %v4034
    %v4225 = vunpack.c.h.b16 %v4034
    %v4226 = vunpack.c.l.b16 %v4035
    %v4227 = vunpack.c.h.b16 %v4035
    %v4228 = vunpack.c.l.b16 %v4036
    %v4229 = vunpack.c.h.b16 %v4036
    %v4230 = vunpack.c.l.b16 %v4037
    %v4231 = vunpack.c.h.b16 %v4037
    %v4232 = vunpack.c.l.b16 %v4038
    %v4233 = vunpack.c.h.b16 %v4038
    %v4234 = vunpack.c.l.b16 %v4039
    %v4235 = vunpack.c.h.b16 %v4039
    %v4236 = vpack.c.b16 %v4112, %v4108
    %v4237 = vpack.c.b16 %v4113, %v4109
    %v4238 = vpack.c.b16 %v4114, %v4110
    %v4239 = vpack.c.b16 %v4115, %v4111
    %v4240 = vpack.c.b16 %v4120, %v4116
    %v4241 = vpack.c.b16 %v4121, %v4117
    %v4242 = vpack.c.b16 %v4122, %v4118
    %v4243 = vpack.c.b16 %v4123, %v4119
    %v4244 = vpack.c.b16 %v4128, %v4124
    %v4245 = vpack.c.b16 %v4129, %v4125
    %v4246 = vpack.c.b16 %v4130, %v4126
    %v4247 = vpack.c.b16 %v4131, %v4127
    %v4248 = vpack.c.b16 %v4136, %v4132
    %v4249 = vpack.c.b16 %v4137, %v4133
    %v4250 = vpack.c.b16 %v4138, %v4134
    %v4251 = vpack.c.b16 %v4139, %v4135
    %v4252 = vpack.c.b16 %v4144, %v4140
    %v4253 = vpack.c.b16 %v4145, %v4141
    %v4254 = vpack.c.b16 %v4146, %v4142
    %v4255 = vpack.c.b16 %v4147, %v4143
    %v4256 = vpack.c.b16 %v4152, %v4148
    %v4257 = vpack.c.b16 %v4153, %v4149
    %v4258 = vpack.c.b16 %v4154, %v4150
    %v4259 = vpack.c.b16 %v4155, %v4151
    %v4260 = vpack.c.b16 %v4160, %v4156
    %v4261 = vpack.c.b16 %v4161, %v4157
    %v4262 = vpack.c.b16 %v4162, %v4158
    %v4263 = vpack.c.b16 %v4163, %v4159
    %v4264 = vpack.c.b16 %v4168, %v4164
    %v4265 = vpack.c.b16 %v4169, %v4165
    %v4266 = vpack.c.b16 %v4170, %v4166
    %v4267 = vpack.c.b16 %v4171, %v4167
    %v4268 = vpack.c.b16 %v4176, %v4172
    %v4269 = vpack.c.b16 %v4177, %v4173
    %v4270 = vpack.c.b16 %v4178, %v4174
    %v4271 = vpack.c.b16 %v4179, %v4175
    %v4272 = vpack.c.b16 %v4184, %v4180
    %v4273 = vpack.c.b16 %v4185, %v4181
    %v4274 = vpack.c.b16 %v4186, %v4182
    %v4275 = vpack.c.b16 %v4187, %v4183
    %v4276 = vpack.c.b16 %v4192, %v4188
    %v4277 = vpack.c.b16 %v4193, %v4189
    %v4278 = vpack.c.b16 %v4194, %v4190
    %v4279 = vpack.c.b16 %v4195, %v4191
    %v4280 = vpack.c.b16 %v4200, %v4196
    %v4281 = vpack.c.b16 %v4201, %v4197
    %v4282 = vpack.c.b16 %v4202, %v4198
    %v4283 = vpack.c.b16 %v4203, %v4199
    %v4284 = vpack.c.b16 %v4208, %v4204
    %v4285 = vpack.c.b16 %v4209, %v4205
    %v4286 = vpack.c.b16 %v4210, %v4206
    %v4287 = vpack.c.b16 %v4211, %v4207
    %v4288 = vpack.c.b16 %v4216, %v4212
    %v4289 = vpack.c.b16 %v4217, %v4213
    %v4290 = vpack.c.b16 %v4218, %v4214
    %v4291 = vpack.c.b16 %v4219, %v4215
    %v4292 = vpack.c.b16 %v4224, %v4220
    %v4293 = vpack.c.b16 %v4225, %v4221
    %v4294 = vpack.c.b16 %v4226, %v4222
    %v4295 = vpack.c.b16 %v4227, %v4223
    %v4296 = vpack.c.b16 %v4232, %v4228
    %v4297 = vpack.c.b16 %v4233, %v4229
    %v4298 = vpack.c.b16 %v4234, %v4230
    %v4299 = vpack.c.b16 %v4235, %v4231
    %4364 = vmatprep.subr.bf16.mxu0 %v4265
    %4365 = vmatpush1.bf16.msra.mxu0 %v4264
    %4366 = vmatprep.subr.bf16.mxu0 %v4261
    %4367 = vmatpush1.bf16.msra.mxu0 %v4260
    %4368 = vmatprep.subr.bf16.mxu0 %v4257
    %4369 = vmatpush1.bf16.msra.mxu0 %v4256
    %4370 = vmatprep.subr.bf16.mxu0 %v4253
    %4371 = vmatpush1.bf16.msra.mxu0 %v4252
    %4372 = vmatprep.subr.bf16.mxu0 %v4249
    %4373 = vmatpush1.bf16.msra.mxu0 %v4248
    %4374 = vmatprep.subr.bf16.mxu0 %v4245
    %4375 = vmatpush1.bf16.msra.mxu0 %v4244
    %4376 = vmatprep.subr.bf16.mxu0 %v4241
    %4377 = vmatpush1.bf16.msra.mxu0 %v4240
    %4378 = vmatprep.subr.bf16.mxu0 %v4237
    %4379 = vmatpush1.bf16.msra.mxu0 %v4236
    %4380 = vmatprep.subr.bf16.mxu0 %v4297
    %4381 = vmatpush2.bf16.msra.mxu0 %v4296
    %4382 = vmatprep.subr.bf16.mxu0 %v4293
    %4383 = vmatpush2.bf16.msra.mxu0 %v4292
    %4384 = vmatprep.subr.bf16.mxu0 %v4289
    %4385 = vmatpush2.bf16.msra.mxu0 %v4288
    %4386 = vmatprep.subr.bf16.mxu0 %v4285
    %4387 = vmatpush2.bf16.msra.mxu0 %v4284
    %4388 = vmatprep.subr.bf16.mxu0 %v4281
    %4389 = vmatpush2.bf16.msra.mxu0 %v4280
    %4390 = vmatprep.subr.bf16.mxu0 %v4277
    %4391 = vmatpush2.bf16.msra.mxu0 %v4276
    %4392 = vmatprep.subr.bf16.mxu0 %v4273
    %4393 = vmatpush2.bf16.msra.mxu0 %v4272
    %4394 = vmatprep.subr.bf16.mxu0 %v4269
    %4395 = vmatpush2.bf16.msra.mxu0 %v4268
    %4396 = vmatprep.mubr.bf16.mxu0 %v4041
    %4397 = vmatmul.mubr.bf16.gmra.mxu0 %v4040
    %v4398 = vpop.f32.mrf.mxu0
    %v4399 = vadd.f32 0.0, %v4398
    %v4400 = vpop.f32.mrf.mxu0
    %v4401 = vadd.f32 0.0, %v4400
    %v4402 = vpop.f32.mrf.mxu0
    %v4403 = vpop.f32.mrf.mxu0
    %4404 = vdwg.mxu0
    %4405 = vmatprep.subr.bf16.mxu0 %v4267
    %4406 = vmatpush1.bf16.msra.mxu0 %v4266
    %4407 = vmatprep.subr.bf16.mxu0 %v4263
    %4408 = vmatpush1.bf16.msra.mxu0 %v4262
    %4409 = vmatprep.subr.bf16.mxu0 %v4259
    %4410 = vmatpush1.bf16.msra.mxu0 %v4258
    %4411 = vmatprep.subr.bf16.mxu0 %v4255
    %4412 = vmatpush1.bf16.msra.mxu0 %v4254
    %4413 = vmatprep.subr.bf16.mxu0 %v4251
    %4414 = vmatpush1.bf16.msra.mxu0 %v4250
    %4415 = vmatprep.subr.bf16.mxu0 %v4247
    %4416 = vmatpush1.bf16.msra.mxu0 %v4246
    %4417 = vmatprep.subr.bf16.mxu0 %v4243
    %4418 = vmatpush1.bf16.msra.mxu0 %v4242
    %4419 = vmatprep.subr.bf16.mxu0 %v4239
    %4420 = vmatpush1.bf16.msra.mxu0 %v4238
    %4421 = vmatprep.subr.bf16.mxu0 %v4299
    %4422 = vmatpush2.bf16.msra.mxu0 %v4298
    %4423 = vmatprep.subr.bf16.mxu0 %v4295
    %4424 = vmatpush2.bf16.msra.mxu0 %v4294
    %4425 = vmatprep.subr.bf16.mxu0 %v4291
    %4426 = vmatpush2.bf16.msra.mxu0 %v4290
    %4427 = vmatprep.subr.bf16.mxu0 %v4287
    %4428 = vmatpush2.bf16.msra.mxu0 %v4286
    %4429 = vmatprep.subr.bf16.mxu0 %v4283
    %4430 = vmatpush2.bf16.msra.mxu0 %v4282
    %4431 = vmatprep.subr.bf16.mxu0 %v4279
    %4432 = vmatpush2.bf16.msra.mxu0 %v4278
    %4433 = vmatprep.subr.bf16.mxu0 %v4275
    %4434 = vmatpush2.bf16.msra.mxu0 %v4274
    %4435 = vmatprep.subr.bf16.mxu0 %v4271
    %4436 = vmatpush2.bf16.msra.mxu0 %v4270
    %4437 = vmatprep.mubr.bf16.mxu0 %v4041
    %4438 = vmatmul.mubr.bf16.gmra.mxu0 %v4040
    %v4439 = vpop.f32.mrf.mxu0
    %v4440 = vadd.f32 0.0, %v4439
    %v4441 = vpop.f32.mrf.mxu0
    %v4442 = vadd.f32 0.0, %v4441
    %v4443 = vpop.f32.mrf.mxu0
    %v4444 = vpop.f32.mrf.mxu0
    %4445 = vdwg.mxu0
    %v4446 = vadd.f32 %v3971, %v4399
    %v4447 = vadd.f32 %v3972, %v4401
    %v4448 = vadd.f32 %v3973, %v4440
    %v4449 = vadd.f32 %v3974, %v4442
    %s4450 = scalar_lea.vmem [#allocation10], 3584
    %v4451 = vld [vmem:[%s4450] sm:$0xff]
    %v4452 = vld [vmem:[%s4450 + $0x8] sm:$0xff]
    %v4453 = vld [vmem:[%s4450 + $0x10] sm:$0xff]
    %v4454 = vld [vmem:[%s4450 + $0x18] sm:$0xff]
    %v4455 = vld [vmem:[%s4450 + $0x20] sm:$0xff]
    %v4456 = vld [vmem:[%s4450 + $0x28] sm:$0xff]
    %v4457 = vld [vmem:[%s4450 + $0x30] sm:$0xff]
    %v4458 = vld [vmem:[%s4450 + $0x38] sm:$0xff]
    %v4459 = vld [vmem:[%s4450 + $0x40] sm:$0xff]
    %v4460 = vld [vmem:[%s4450 + $0x48] sm:$0xff]
    %v4461 = vld [vmem:[%s4450 + $0x50] sm:$0xff]
    %v4462 = vld [vmem:[%s4450 + $0x58] sm:$0xff]
    %v4463 = vld [vmem:[%s4450 + $0x60] sm:$0xff]
    %v4464 = vld [vmem:[%s4450 + $0x68] sm:$0xff]
    %v4465 = vld [vmem:[%s4450 + $0x70] sm:$0xff]
    %v4466 = vld [vmem:[%s4450 + $0x78] sm:$0xff]
    %v4467 = vld [vmem:[%s4450 + $0x80] sm:$0xff]
    %v4468 = vld [vmem:[%s4450 + $0x88] sm:$0xff]
    %v4469 = vld [vmem:[%s4450 + $0x90] sm:$0xff]
    %v4470 = vld [vmem:[%s4450 + $0x98] sm:$0xff]
    %v4471 = vld [vmem:[%s4450 + $0xa0] sm:$0xff]
    %v4472 = vld [vmem:[%s4450 + $0xa8] sm:$0xff]
    %v4473 = vld [vmem:[%s4450 + $0xb0] sm:$0xff]
    %v4474 = vld [vmem:[%s4450 + $0xb8] sm:$0xff]
    %v4475 = vld [vmem:[%s4450 + $0xc0] sm:$0xff]
    %v4476 = vld [vmem:[%s4450 + $0xc8] sm:$0xff]
    %v4477 = vld [vmem:[%s4450 + $0xd0] sm:$0xff]
    %v4478 = vld [vmem:[%s4450 + $0xd8] sm:$0xff]
    %v4479 = vld [vmem:[%s4450 + $0xe0] sm:$0xff]
    %v4480 = vld [vmem:[%s4450 + $0xe8] sm:$0xff]
    %v4481 = vld [vmem:[%s4450 + $0xf0] sm:$0xff]
    %v4482 = vld [vmem:[%s4450 + $0xf8] sm:$0xff]
    %v4483 = vld [vmem:[%s4450 + $0x100] sm:$0xff]
    %v4484 = vld [vmem:[%s4450 + $0x108] sm:$0xff]
    %v4485 = vld [vmem:[%s4450 + $0x110] sm:$0xff]
    %v4486 = vld [vmem:[%s4450 + $0x118] sm:$0xff]
    %v4487 = vld [vmem:[%s4450 + $0x120] sm:$0xff]
    %v4488 = vld [vmem:[%s4450 + $0x128] sm:$0xff]
    %v4489 = vld [vmem:[%s4450 + $0x130] sm:$0xff]
    %v4490 = vld [vmem:[%s4450 + $0x138] sm:$0xff]
    %v4491 = vld [vmem:[%s4450 + $0x140] sm:$0xff]
    %v4492 = vld [vmem:[%s4450 + $0x148] sm:$0xff]
    %v4493 = vld [vmem:[%s4450 + $0x150] sm:$0xff]
    %v4494 = vld [vmem:[%s4450 + $0x158] sm:$0xff]
    %v4495 = vld [vmem:[%s4450 + $0x160] sm:$0xff]
    %v4496 = vld [vmem:[%s4450 + $0x168] sm:$0xff]
    %v4497 = vld [vmem:[%s4450 + $0x170] sm:$0xff]
    %v4498 = vld [vmem:[%s4450 + $0x178] sm:$0xff]
    %v4499 = vld [vmem:[%s4450 + $0x180] sm:$0xff]
    %v4500 = vld [vmem:[%s4450 + $0x188] sm:$0xff]
    %v4501 = vld [vmem:[%s4450 + $0x190] sm:$0xff]
    %v4502 = vld [vmem:[%s4450 + $0x198] sm:$0xff]
    %v4503 = vld [vmem:[%s4450 + $0x1a0] sm:$0xff]
    %v4504 = vld [vmem:[%s4450 + $0x1a8] sm:$0xff]
    %v4505 = vld [vmem:[%s4450 + $0x1b0] sm:$0xff]
    %v4506 = vld [vmem:[%s4450 + $0x1b8] sm:$0xff]
    %v4507 = vld [vmem:[%s4450 + $0x1c0] sm:$0xff]
    %v4508 = vld [vmem:[%s4450 + $0x1c8] sm:$0xff]
    %v4509 = vld [vmem:[%s4450 + $0x1d0] sm:$0xff]
    %v4510 = vld [vmem:[%s4450 + $0x1d8] sm:$0xff]
    %v4511 = vld [vmem:[%s4450 + $0x1e0] sm:$0xff]
    %v4512 = vld [vmem:[%s4450 + $0x1e8] sm:$0xff]
    %v4513 = vld [vmem:[%s4450 + $0x1f0] sm:$0xff]
    %v4514 = vld [vmem:[%s4450 + $0x1f8] sm:$0xff]
    %v4515 = vrot.slane %v3025, 3
    %v4516 = vrot.slane %v3026, 3
    %v4583 = vunpack.c.l.b16 %v4451
    %v4584 = vunpack.c.h.b16 %v4451
    %v4585 = vunpack.c.l.b16 %v4452
    %v4586 = vunpack.c.h.b16 %v4452
    %v4587 = vunpack.c.l.b16 %v4453
    %v4588 = vunpack.c.h.b16 %v4453
    %v4589 = vunpack.c.l.b16 %v4454
    %v4590 = vunpack.c.h.b16 %v4454
    %v4591 = vunpack.c.l.b16 %v4455
    %v4592 = vunpack.c.h.b16 %v4455
    %v4593 = vunpack.c.l.b16 %v4456
    %v4594 = vunpack.c.h.b16 %v4456
    %v4595 = vunpack.c.l.b16 %v4457
    %v4596 = vunpack.c.h.b16 %v4457
    %v4597 = vunpack.c.l.b16 %v4458
    %v4598 = vunpack.c.h.b16 %v4458
    %v4599 = vunpack.c.l.b16 %v4459
    %v4600 = vunpack.c.h.b16 %v4459
    %v4601 = vunpack.c.l.b16 %v4460
    %v4602 = vunpack.c.h.b16 %v4460
    %v4603 = vunpack.c.l.b16 %v4461
    %v4604 = vunpack.c.h.b16 %v4461
    %v4605 = vunpack.c.l.b16 %v4462
    %v4606 = vunpack.c.h.b16 %v4462
    %v4607 = vunpack.c.l.b16 %v4463
    %v4608 = vunpack.c.h.b16 %v4463
    %v4609 = vunpack.c.l.b16 %v4464
    %v4610 = vunpack.c.h.b16 %v4464
    %v4611 = vunpack.c.l.b16 %v4465
    %v4612 = vunpack.c.h.b16 %v4465
    %v4613 = vunpack.c.l.b16 %v4466
    %v4614 = vunpack.c.h.b16 %v4466
    %v4615 = vunpack.c.l.b16 %v4467
    %v4616 = vunpack.c.h.b16 %v4467
    %v4617 = vunpack.c.l.b16 %v4468
    %v4618 = vunpack.c.h.b16 %v4468
    %v4619 = vunpack.c.l.b16 %v4469
    %v4620 = vunpack.c.h.b16 %v4469
    %v4621 = vunpack.c.l.b16 %v4470
    %v4622 = vunpack.c.h.b16 %v4470
    %v4623 = vunpack.c.l.b16 %v4471
    %v4624 = vunpack.c.h.b16 %v4471
    %v4625 = vunpack.c.l.b16 %v4472
    %v4626 = vunpack.c.h.b16 %v4472
    %v4627 = vunpack.c.l.b16 %v4473
    %v4628 = vunpack.c.h.b16 %v4473
    %v4629 = vunpack.c.l.b16 %v4474
    %v4630 = vunpack.c.h.b16 %v4474
    %v4631 = vunpack.c.l.b16 %v4475
    %v4632 = vunpack.c.h.b16 %v4475
    %v4633 = vunpack.c.l.b16 %v4476
    %v4634 = vunpack.c.h.b16 %v4476
    %v4635 = vunpack.c.l.b16 %v4477
    %v4636 = vunpack.c.h.b16 %v4477
    %v4637 = vunpack.c.l.b16 %v4478
    %v4638 = vunpack.c.h.b16 %v4478
    %v4639 = vunpack.c.l.b16 %v4479
    %v4640 = vunpack.c.h.b16 %v4479
    %v4641 = vunpack.c.l.b16 %v4480
    %v4642 = vunpack.c.h.b16 %v4480
    %v4643 = vunpack.c.l.b16 %v4481
    %v4644 = vunpack.c.h.b16 %v4481
    %v4645 = vunpack.c.l.b16 %v4482
    %v4646 = vunpack.c.h.b16 %v4482
    %v4647 = vunpack.c.l.b16 %v4483
    %v4648 = vunpack.c.h.b16 %v4483
    %v4649 = vunpack.c.l.b16 %v4484
    %v4650 = vunpack.c.h.b16 %v4484
    %v4651 = vunpack.c.l.b16 %v4485
    %v4652 = vunpack.c.h.b16 %v4485
    %v4653 = vunpack.c.l.b16 %v4486
    %v4654 = vunpack.c.h.b16 %v4486
    %v4655 = vunpack.c.l.b16 %v4487
    %v4656 = vunpack.c.h.b16 %v4487
    %v4657 = vunpack.c.l.b16 %v4488
    %v4658 = vunpack.c.h.b16 %v4488
    %v4659 = vunpack.c.l.b16 %v4489
    %v4660 = vunpack.c.h.b16 %v4489
    %v4661 = vunpack.c.l.b16 %v4490
    %v4662 = vunpack.c.h.b16 %v4490
    %v4663 = vunpack.c.l.b16 %v4491
    %v4664 = vunpack.c.h.b16 %v4491
    %v4665 = vunpack.c.l.b16 %v4492
    %v4666 = vunpack.c.h.b16 %v4492
    %v4667 = vunpack.c.l.b16 %v4493
    %v4668 = vunpack.c.h.b16 %v4493
    %v4669 = vunpack.c.l.b16 %v4494
    %v4670 = vunpack.c.h.b16 %v4494
    %v4671 = vunpack.c.l.b16 %v4495
    %v4672 = vunpack.c.h.b16 %v4495
    %v4673 = vunpack.c.l.b16 %v4496
    %v4674 = vunpack.c.h.b16 %v4496
    %v4675 = vunpack.c.l.b16 %v4497
    %v4676 = vunpack.c.h.b16 %v4497
    %v4677 = vunpack.c.l.b16 %v4498
    %v4678 = vunpack.c.h.b16 %v4498
    %v4679 = vunpack.c.l.b16 %v4499
    %v4680 = vunpack.c.h.b16 %v4499
    %v4681 = vunpack.c.l.b16 %v4500
    %v4682 = vunpack.c.h.b16 %v4500
    %v4683 = vunpack.c.l.b16 %v4501
    %v4684 = vunpack.c.h.b16 %v4501
    %v4685 = vunpack.c.l.b16 %v4502
    %v4686 = vunpack.c.h.b16 %v4502
    %v4687 = vunpack.c.l.b16 %v4503
    %v4688 = vunpack.c.h.b16 %v4503
    %v4689 = vunpack.c.l.b16 %v4504
    %v4690 = vunpack.c.h.b16 %v4504
    %v4691 = vunpack.c.l.b16 %v4505
    %v4692 = vunpack.c.h.b16 %v4505
    %v4693 = vunpack.c.l.b16 %v4506
    %v4694 = vunpack.c.h.b16 %v4506
    %v4695 = vunpack.c.l.b16 %v4507
    %v4696 = vunpack.c.h.b16 %v4507
    %v4697 = vunpack.c.l.b16 %v4508
    %v4698 = vunpack.c.h.b16 %v4508
    %v4699 = vunpack.c.l.b16 %v4509
    %v4700 = vunpack.c.h.b16 %v4509
    %v4701 = vunpack.c.l.b16 %v4510
    %v4702 = vunpack.c.h.b16 %v4510
    %v4703 = vunpack.c.l.b16 %v4511
    %v4704 = vunpack.c.h.b16 %v4511
    %v4705 = vunpack.c.l.b16 %v4512
    %v4706 = vunpack.c.h.b16 %v4512
    %v4707 = vunpack.c.l.b16 %v4513
    %v4708 = vunpack.c.h.b16 %v4513
    %v4709 = vunpack.c.l.b16 %v4514
    %v4710 = vunpack.c.h.b16 %v4514
    %v4711 = vpack.c.b16 %v4587, %v4583
    %v4712 = vpack.c.b16 %v4588, %v4584
    %v4713 = vpack.c.b16 %v4589, %v4585
    %v4714 = vpack.c.b16 %v4590, %v4586
    %v4715 = vpack.c.b16 %v4595, %v4591
    %v4716 = vpack.c.b16 %v4596, %v4592
    %v4717 = vpack.c.b16 %v4597, %v4593
    %v4718 = vpack.c.b16 %v4598, %v4594
    %v4719 = vpack.c.b16 %v4603, %v4599
    %v4720 = vpack.c.b16 %v4604, %v4600
    %v4721 = vpack.c.b16 %v4605, %v4601
    %v4722 = vpack.c.b16 %v4606, %v4602
    %v4723 = vpack.c.b16 %v4611, %v4607
    %v4724 = vpack.c.b16 %v4612, %v4608
    %v4725 = vpack.c.b16 %v4613, %v4609
    %v4726 = vpack.c.b16 %v4614, %v4610
    %v4727 = vpack.c.b16 %v4619, %v4615
    %v4728 = vpack.c.b16 %v4620, %v4616
    %v4729 = vpack.c.b16 %v4621, %v4617
    %v4730 = vpack.c.b16 %v4622, %v4618
    %v4731 = vpack.c.b16 %v4627, %v4623
    %v4732 = vpack.c.b16 %v4628, %v4624
    %v4733 = vpack.c.b16 %v4629, %v4625
    %v4734 = vpack.c.b16 %v4630, %v4626
    %v4735 = vpack.c.b16 %v4635, %v4631
    %v4736 = vpack.c.b16 %v4636, %v4632
    %v4737 = vpack.c.b16 %v4637, %v4633
    %v4738 = vpack.c.b16 %v4638, %v4634
    %v4739 = vpack.c.b16 %v4643, %v4639
    %v4740 = vpack.c.b16 %v4644, %v4640
    %v4741 = vpack.c.b16 %v4645, %v4641
    %v4742 = vpack.c.b16 %v4646, %v4642
    %v4743 = vpack.c.b16 %v4651, %v4647
    %v4744 = vpack.c.b16 %v4652, %v4648
    %v4745 = vpack.c.b16 %v4653, %v4649
    %v4746 = vpack.c.b16 %v4654, %v4650
    %v4747 = vpack.c.b16 %v4659, %v4655
    %v4748 = vpack.c.b16 %v4660, %v4656
    %v4749 = vpack.c.b16 %v4661, %v4657
    %v4750 = vpack.c.b16 %v4662, %v4658
    %v4751 = vpack.c.b16 %v4667, %v4663
    %v4752 = vpack.c.b16 %v4668, %v4664
    %v4753 = vpack.c.b16 %v4669, %v4665
    %v4754 = vpack.c.b16 %v4670, %v4666
    %v4755 = vpack.c.b16 %v4675, %v4671
    %v4756 = vpack.c.b16 %v4676, %v4672
    %v4757 = vpack.c.b16 %v4677, %v4673
    %v4758 = vpack.c.b16 %v4678, %v4674
    %v4759 = vpack.c.b16 %v4683, %v4679
    %v4760 = vpack.c.b16 %v4684, %v4680
    %v4761 = vpack.c.b16 %v4685, %v4681
    %v4762 = vpack.c.b16 %v4686, %v4682
    %v4763 = vpack.c.b16 %v4691, %v4687
    %v4764 = vpack.c.b16 %v4692, %v4688
    %v4765 = vpack.c.b16 %v4693, %v4689
    %v4766 = vpack.c.b16 %v4694, %v4690
    %v4767 = vpack.c.b16 %v4699, %v4695
    %v4768 = vpack.c.b16 %v4700, %v4696
    %v4769 = vpack.c.b16 %v4701, %v4697
    %v4770 = vpack.c.b16 %v4702, %v4698
    %v4771 = vpack.c.b16 %v4707, %v4703
    %v4772 = vpack.c.b16 %v4708, %v4704
    %v4773 = vpack.c.b16 %v4709, %v4705
    %v4774 = vpack.c.b16 %v4710, %v4706
    %4839 = vmatprep.subr.bf16.mxu0 %v4740
    %4840 = vmatpush1.bf16.msra.mxu0 %v4739
    %4841 = vmatprep.subr.bf16.mxu0 %v4736
    %4842 = vmatpush1.bf16.msra.mxu0 %v4735
    %4843 = vmatprep.subr.bf16.mxu0 %v4732
    %4844 = vmatpush1.bf16.msra.mxu0 %v4731
    %4845 = vmatprep.subr.bf16.mxu0 %v4728
    %4846 = vmatpush1.bf16.msra.mxu0 %v4727
    %4847 = vmatprep.subr.bf16.mxu0 %v4724
    %4848 = vmatpush1.bf16.msra.mxu0 %v4723
    %4849 = vmatprep.subr.bf16.mxu0 %v4720
    %4850 = vmatpush1.bf16.msra.mxu0 %v4719
    %4851 = vmatprep.subr.bf16.mxu0 %v4716
    %4852 = vmatpush1.bf16.msra.mxu0 %v4715
    %4853 = vmatprep.subr.bf16.mxu0 %v4712
    %4854 = vmatpush1.bf16.msra.mxu0 %v4711
    %4855 = vmatprep.subr.bf16.mxu0 %v4772
    %4856 = vmatpush2.bf16.msra.mxu0 %v4771
    %4857 = vmatprep.subr.bf16.mxu0 %v4768
    %4858 = vmatpush2.bf16.msra.mxu0 %v4767
    %4859 = vmatprep.subr.bf16.mxu0 %v4764
    %4860 = vmatpush2.bf16.msra.mxu0 %v4763
    %4861 = vmatprep.subr.bf16.mxu0 %v4760
    %4862 = vmatpush2.bf16.msra.mxu0 %v4759
    %4863 = vmatprep.subr.bf16.mxu0 %v4756
    %4864 = vmatpush2.bf16.msra.mxu0 %v4755
    %4865 = vmatprep.subr.bf16.mxu0 %v4752
    %4866 = vmatpush2.bf16.msra.mxu0 %v4751
    %4867 = vmatprep.subr.bf16.mxu0 %v4748
    %4868 = vmatpush2.bf16.msra.mxu0 %v4747
    %4869 = vmatprep.subr.bf16.mxu0 %v4744
    %4870 = vmatpush2.bf16.msra.mxu0 %v4743
    %4871 = vmatprep.mubr.bf16.mxu0 %v4516
    %4872 = vmatmul.mubr.bf16.gmra.mxu0 %v4515
    %v4873 = vpop.f32.mrf.mxu0
    %v4874 = vadd.f32 0.0, %v4873
    %v4875 = vpop.f32.mrf.mxu0
    %v4876 = vadd.f32 0.0, %v4875
    %v4877 = vpop.f32.mrf.mxu0
    %v4878 = vpop.f32.mrf.mxu0
    %4879 = vdwg.mxu0
    %4880 = vmatprep.subr.bf16.mxu0 %v4742
    %4881 = vmatpush1.bf16.msra.mxu0 %v4741
    %4882 = vmatprep.subr.bf16.mxu0 %v4738
    %4883 = vmatpush1.bf16.msra.mxu0 %v4737
    %4884 = vmatprep.subr.bf16.mxu0 %v4734
    %4885 = vmatpush1.bf16.msra.mxu0 %v4733
    %4886 = vmatprep.subr.bf16.mxu0 %v4730
    %4887 = vmatpush1.bf16.msra.mxu0 %v4729
    %4888 = vmatprep.subr.bf16.mxu0 %v4726
    %4889 = vmatpush1.bf16.msra.mxu0 %v4725
    %4890 = vmatprep.subr.bf16.mxu0 %v4722
    %4891 = vmatpush1.bf16.msra.mxu0 %v4721
    %4892 = vmatprep.subr.bf16.mxu0 %v4718
    %4893 = vmatpush1.bf16.msra.mxu0 %v4717
    %4894 = vmatprep.subr.bf16.mxu0 %v4714
    %4895 = vmatpush1.bf16.msra.mxu0 %v4713
    %4896 = vmatprep.subr.bf16.mxu0 %v4774
    %4897 = vmatpush2.bf16.msra.mxu0 %v4773
    %4898 = vmatprep.subr.bf16.mxu0 %v4770
    %4899 = vmatpush2.bf16.msra.mxu0 %v4769
    %4900 = vmatprep.subr.bf16.mxu0 %v4766
    %4901 = vmatpush2.bf16.msra.mxu0 %v4765
    %4902 = vmatprep.subr.bf16.mxu0 %v4762
    %4903 = vmatpush2.bf16.msra.mxu0 %v4761
    %4904 = vmatprep.subr.bf16.mxu0 %v4758
    %4905 = vmatpush2.bf16.msra.mxu0 %v4757
    %4906 = vmatprep.subr.bf16.mxu0 %v4754
    %4907 = vmatpush2.bf16.msra.mxu0 %v4753
    %4908 = vmatprep.subr.bf16.mxu0 %v4750
    %4909 = vmatpush2.bf16.msra.mxu0 %v4749
    %4910 = vmatprep.subr.bf16.mxu0 %v4746
    %4911 = vmatpush2.bf16.msra.mxu0 %v4745
    %4912 = vmatprep.mubr.bf16.mxu0 %v4516
    %4913 = vmatmul.mubr.bf16.gmra.mxu0 %v4515
    %v4914 = vpop.f32.mrf.mxu0
    %v4915 = vadd.f32 0.0, %v4914
    %v4916 = vpop.f32.mrf.mxu0
    %v4917 = vadd.f32 0.0, %v4916
    %v4918 = vpop.f32.mrf.mxu0
    %v4919 = vpop.f32.mrf.mxu0
    %4920 = vdwg.mxu0
    %v4921 = vadd.f32 %v4446, %v4874
    %v4922 = vadd.f32 %v4447, %v4876
    %v4923 = vadd.f32 %v4448, %v4915
    %v4924 = vadd.f32 %v4449, %v4917
    %v4925 = vld [vmem:[#allocation11] sm:$0xf]
    %v4927 = vlaneseq
    %v4928 = vshrl.u32 %v4927, 7
    %v4929 = vsub.s32 0, %v4928
    %v4930 = vrot.slane %v4925, %v4929
    %v4931 = vlaneseq
    %v4932 = vshrl.u32 %v4931, 7
    %v4933 = vsub.s32 1, %v4932
    %v4934 = vrot.slane %v4925, %v4933
    %v4935 = vlaneseq
    %v4936 = vshrl.u32 %v4935, 7
    %v4937 = vsub.s32 2, %v4936
    %v4938 = vrot.slane %v4925, %v4937
    %v4939 = vlaneseq
    %v4940 = vshrl.u32 %v4939, 7
    %v4941 = vsub.s32 3, %v4940
    %v4942 = vrot.slane %v4925, %v4941
    %v4947 = vadd.f32 %v4921, %v4930
    %v4948 = vadd.f32 %v4922, %v4934
    %v4949 = vadd.f32 %v4923, %v4938
    %v4950 = vadd.f32 %v4924, %v4942
    %v4951 = vmax.f32 %v4947, 0.0
    %v4952 = vmax.f32 %v4948, 0.0
    %v4953 = vmax.f32 %v4949, 0.0
    %v4954 = vmax.f32 %v4950, 0.0
    %v4955 = vpack.c.bf16 %v4951, %v4951
    %v4956 = vpack.c.bf16 %v4952, %v4952
    %v4957 = vpack.c.bf16 %v4953, %v4953
    %v4958 = vpack.c.bf16 %v4954, %v4954
    %v4959 = vld [vmem:[#allocation13] sm:$0xf]
    %v4960 = vld [vmem:[#allocation13 + $0x4] sm:$0xf]
    %v4961 = vld [vmem:[#allocation13 + $0x8] sm:$0xf]
    %v4962 = vld [vmem:[#allocation13 + $0xc] sm:$0xf]
    %v4963 = vld [vmem:[#allocation13 + $0x10] sm:$0xf]
    %v4964 = vld [vmem:[#allocation13 + $0x14] sm:$0xf]
    %v4965 = vld [vmem:[#allocation13 + $0x18] sm:$0xf]
    %v4966 = vld [vmem:[#allocation13 + $0x1c] sm:$0xf]
    %v4967 = vld [vmem:[#allocation13 + $0x20] sm:$0xf]
    %v4968 = vld [vmem:[#allocation13 + $0x24] sm:$0xf]
    %v4969 = vld [vmem:[#allocation13 + $0x28] sm:$0xf]
    %v4970 = vld [vmem:[#allocation13 + $0x2c] sm:$0xf]
    %v4971 = vld [vmem:[#allocation13 + $0x30] sm:$0xf]
    %v4972 = vld [vmem:[#allocation13 + $0x34] sm:$0xf]
    %v4973 = vld [vmem:[#allocation13 + $0x38] sm:$0xf]
    %v4974 = vld [vmem:[#allocation13 + $0x3c] sm:$0xf]
    %v4975 = vld [vmem:[#allocation13 + $0x40] sm:$0xf]
    %v4976 = vld [vmem:[#allocation13 + $0x44] sm:$0xf]
    %v4977 = vld [vmem:[#allocation13 + $0x48] sm:$0xf]
    %v4978 = vld [vmem:[#allocation13 + $0x4c] sm:$0xf]
    %v4979 = vld [vmem:[#allocation13 + $0x50] sm:$0xf]
    %v4980 = vld [vmem:[#allocation13 + $0x54] sm:$0xf]
    %v4981 = vld [vmem:[#allocation13 + $0x58] sm:$0xf]
    %v4982 = vld [vmem:[#allocation13 + $0x5c] sm:$0xf]
    %v4983 = vld [vmem:[#allocation13 + $0x60] sm:$0xf]
    %v4984 = vld [vmem:[#allocation13 + $0x64] sm:$0xf]
    %v4985 = vld [vmem:[#allocation13 + $0x68] sm:$0xf]
    %v4986 = vld [vmem:[#allocation13 + $0x6c] sm:$0xf]
    %v4987 = vld [vmem:[#allocation13 + $0x70] sm:$0xf]
    %v4988 = vld [vmem:[#allocation13 + $0x74] sm:$0xf]
    %v4989 = vld [vmem:[#allocation13 + $0x78] sm:$0xf]
    %v4990 = vld [vmem:[#allocation13 + $0x7c] sm:$0xf]
    %v4991 = vld [vmem:[#allocation13 + $0x80] sm:$0xf]
    %v4992 = vld [vmem:[#allocation13 + $0x84] sm:$0xf]
    %v4993 = vld [vmem:[#allocation13 + $0x88] sm:$0xf]
    %v4994 = vld [vmem:[#allocation13 + $0x8c] sm:$0xf]
    %v4995 = vld [vmem:[#allocation13 + $0x90] sm:$0xf]
    %v4996 = vld [vmem:[#allocation13 + $0x94] sm:$0xf]
    %v4997 = vld [vmem:[#allocation13 + $0x98] sm:$0xf]
    %v4998 = vld [vmem:[#allocation13 + $0x9c] sm:$0xf]
    %v4999 = vld [vmem:[#allocation13 + $0xa0] sm:$0xf]
    %v5000 = vld [vmem:[#allocation13 + $0xa4] sm:$0xf]
    %v5001 = vld [vmem:[#allocation13 + $0xa8] sm:$0xf]
    %v5002 = vld [vmem:[#allocation13 + $0xac] sm:$0xf]
    %v5003 = vld [vmem:[#allocation13 + $0xb0] sm:$0xf]
    %v5004 = vld [vmem:[#allocation13 + $0xb4] sm:$0xf]
    %v5005 = vld [vmem:[#allocation13 + $0xb8] sm:$0xf]
    %v5006 = vld [vmem:[#allocation13 + $0xbc] sm:$0xf]
    %v5007 = vld [vmem:[#allocation13 + $0xc0] sm:$0xf]
    %v5008 = vld [vmem:[#allocation13 + $0xc4] sm:$0xf]
    %v5009 = vld [vmem:[#allocation13 + $0xc8] sm:$0xf]
    %v5010 = vld [vmem:[#allocation13 + $0xcc] sm:$0xf]
    %v5011 = vld [vmem:[#allocation13 + $0xd0] sm:$0xf]
    %v5012 = vld [vmem:[#allocation13 + $0xd4] sm:$0xf]
    %v5013 = vld [vmem:[#allocation13 + $0xd8] sm:$0xf]
    %v5014 = vld [vmem:[#allocation13 + $0xdc] sm:$0xf]
    %v5015 = vld [vmem:[#allocation13 + $0xe0] sm:$0xf]
    %v5016 = vld [vmem:[#allocation13 + $0xe4] sm:$0xf]
    %v5017 = vld [vmem:[#allocation13 + $0xe8] sm:$0xf]
    %v5018 = vld [vmem:[#allocation13 + $0xec] sm:$0xf]
    %v5019 = vld [vmem:[#allocation13 + $0xf0] sm:$0xf]
    %v5020 = vld [vmem:[#allocation13 + $0xf4] sm:$0xf]
    %v5021 = vld [vmem:[#allocation13 + $0xf8] sm:$0xf]
    %v5022 = vld [vmem:[#allocation13 + $0xfc] sm:$0xf]
    %v5023 = vld [vmem:[#allocation14] sm:$0x1]
    %v5025 = vlaneseq
    %v5026 = vshrl.u32 %v5025, 7
    %v5027 = vsub.s32 0, %v5026
    %v5028 = vrot.slane %v5023, %v5027
    %v5094 = vunpack.c.l.b16 %v4959
    %v5095 = vunpack.c.l.b16 %v4960
    %v5096 = vunpack.c.l.b16 %v4961
    %v5097 = vunpack.c.l.b16 %v4962
    %v5098 = vunpack.c.l.b16 %v4963
    %v5099 = vunpack.c.l.b16 %v4964
    %v5100 = vunpack.c.l.b16 %v4965
    %v5101 = vunpack.c.l.b16 %v4966
    %v5102 = vunpack.c.l.b16 %v4967
    %v5103 = vunpack.c.l.b16 %v4968
    %v5104 = vunpack.c.l.b16 %v4969
    %v5105 = vunpack.c.l.b16 %v4970
    %v5106 = vunpack.c.l.b16 %v4971
    %v5107 = vunpack.c.l.b16 %v4972
    %v5108 = vunpack.c.l.b16 %v4973
    %v5109 = vunpack.c.l.b16 %v4974
    %v5110 = vunpack.c.l.b16 %v4975
    %v5111 = vunpack.c.l.b16 %v4976
    %v5112 = vunpack.c.l.b16 %v4977
    %v5113 = vunpack.c.l.b16 %v4978
    %v5114 = vunpack.c.l.b16 %v4979
    %v5115 = vunpack.c.l.b16 %v4980
    %v5116 = vunpack.c.l.b16 %v4981
    %v5117 = vunpack.c.l.b16 %v4982
    %v5118 = vunpack.c.l.b16 %v4983
    %v5119 = vunpack.c.l.b16 %v4984
    %v5120 = vunpack.c.l.b16 %v4985
    %v5121 = vunpack.c.l.b16 %v4986
    %v5122 = vunpack.c.l.b16 %v4987
    %v5123 = vunpack.c.l.b16 %v4988
    %v5124 = vunpack.c.l.b16 %v4989
    %v5125 = vunpack.c.l.b16 %v4990
    %v5126 = vunpack.c.l.b16 %v4991
    %v5127 = vunpack.c.l.b16 %v4992
    %v5128 = vunpack.c.l.b16 %v4993
    %v5129 = vunpack.c.l.b16 %v4994
    %v5130 = vunpack.c.l.b16 %v4995
    %v5131 = vunpack.c.l.b16 %v4996
    %v5132 = vunpack.c.l.b16 %v4997
    %v5133 = vunpack.c.l.b16 %v4998
    %v5134 = vunpack.c.l.b16 %v4999
    %v5135 = vunpack.c.l.b16 %v5000
    %v5136 = vunpack.c.l.b16 %v5001
    %v5137 = vunpack.c.l.b16 %v5002
    %v5138 = vunpack.c.l.b16 %v5003
    %v5139 = vunpack.c.l.b16 %v5004
    %v5140 = vunpack.c.l.b16 %v5005
    %v5141 = vunpack.c.l.b16 %v5006
    %v5142 = vunpack.c.l.b16 %v5007
    %v5143 = vunpack.c.l.b16 %v5008
    %v5144 = vunpack.c.l.b16 %v5009
    %v5145 = vunpack.c.l.b16 %v5010
    %v5146 = vunpack.c.l.b16 %v5011
    %v5147 = vunpack.c.l.b16 %v5012
    %v5148 = vunpack.c.l.b16 %v5013
    %v5149 = vunpack.c.l.b16 %v5014
    %v5150 = vunpack.c.l.b16 %v5015
    %v5151 = vunpack.c.l.b16 %v5016
    %v5152 = vunpack.c.l.b16 %v5017
    %v5153 = vunpack.c.l.b16 %v5018
    %v5154 = vunpack.c.l.b16 %v5019
    %v5155 = vunpack.c.l.b16 %v5020
    %v5156 = vunpack.c.l.b16 %v5021
    %v5157 = vunpack.c.l.b16 %v5022
    %v5158 = vpack.c.b16 %v5095, %v5094
    %v5159 = vpack.c.b16 %v5097, %v5096
    %v5160 = vpack.c.b16 %v5099, %v5098
    %v5161 = vpack.c.b16 %v5101, %v5100
    %v5162 = vpack.c.b16 %v5103, %v5102
    %v5163 = vpack.c.b16 %v5105, %v5104
    %v5164 = vpack.c.b16 %v5107, %v5106
    %v5165 = vpack.c.b16 %v5109, %v5108
    %v5166 = vpack.c.b16 %v5111, %v5110
    %v5167 = vpack.c.b16 %v5113, %v5112
    %v5168 = vpack.c.b16 %v5115, %v5114
    %v5169 = vpack.c.b16 %v5117, %v5116
    %v5170 = vpack.c.b16 %v5119, %v5118
    %v5171 = vpack.c.b16 %v5121, %v5120
    %v5172 = vpack.c.b16 %v5123, %v5122
    %v5173 = vpack.c.b16 %v5125, %v5124
    %v5174 = vpack.c.b16 %v5127, %v5126
    %v5175 = vpack.c.b16 %v5129, %v5128
    %v5176 = vpack.c.b16 %v5131, %v5130
    %v5177 = vpack.c.b16 %v5133, %v5132
    %v5178 = vpack.c.b16 %v5135, %v5134
    %v5179 = vpack.c.b16 %v5137, %v5136
    %v5180 = vpack.c.b16 %v5139, %v5138
    %v5181 = vpack.c.b16 %v5141, %v5140
    %v5182 = vpack.c.b16 %v5143, %v5142
    %v5183 = vpack.c.b16 %v5145, %v5144
    %v5184 = vpack.c.b16 %v5147, %v5146
    %v5185 = vpack.c.b16 %v5149, %v5148
    %v5186 = vpack.c.b16 %v5151, %v5150
    %v5187 = vpack.c.b16 %v5153, %v5152
    %v5188 = vpack.c.b16 %v5155, %v5154
    %v5189 = vpack.c.b16 %v5157, %v5156
    %5222 = vmatprep.subr.bf16.mxu0 0
    %5223 = vmatpush1.bf16.msra.mxu0 %v5165
    %5224 = vmatprep.subr.bf16.mxu0 0
    %5225 = vmatpush1.bf16.msra.mxu0 %v5164
    %5226 = vmatprep.subr.bf16.mxu0 0
    %5227 = vmatpush1.bf16.msra.mxu0 %v5163
    %5228 = vmatprep.subr.bf16.mxu0 0
    %5229 = vmatpush1.bf16.msra.mxu0 %v5162
    %5230 = vmatprep.subr.bf16.mxu0 0
    %5231 = vmatpush1.bf16.msra.mxu0 %v5161
    %5232 = vmatprep.subr.bf16.mxu0 0
    %5233 = vmatpush1.bf16.msra.mxu0 %v5160
    %5234 = vmatprep.subr.bf16.mxu0 0
    %5235 = vmatpush1.bf16.msra.mxu0 %v5159
    %5236 = vmatprep.subr.bf16.mxu0 0
    %5237 = vmatpush1.bf16.msra.mxu0 %v5158
    %5238 = vmatprep.subr.bf16.mxu0 0
    %5239 = vmatpush2.bf16.msra.mxu0 %v5173
    %5240 = vmatprep.subr.bf16.mxu0 0
    %5241 = vmatpush2.bf16.msra.mxu0 %v5172
    %5242 = vmatprep.subr.bf16.mxu0 0
    %5243 = vmatpush2.bf16.msra.mxu0 %v5171
    %5244 = vmatprep.subr.bf16.mxu0 0
    %5245 = vmatpush2.bf16.msra.mxu0 %v5170
    %5246 = vmatprep.subr.bf16.mxu0 0
    %5247 = vmatpush2.bf16.msra.mxu0 %v5169
    %5248 = vmatprep.subr.bf16.mxu0 0
    %5249 = vmatpush2.bf16.msra.mxu0 %v5168
    %5250 = vmatprep.subr.bf16.mxu0 0
    %5251 = vmatpush2.bf16.msra.mxu0 %v5167
    %5252 = vmatprep.subr.bf16.mxu0 0
    %5253 = vmatpush2.bf16.msra.mxu0 %v5166
    %5254 = vmatprep.mubr.bf16.mxu0 %v4956
    %5255 = vmatmul.mubr.bf16.gmra.mxu0 %v4955
    %v5256 = vpop.f32.mrf.mxu0
    %v5257 = vadd.f32 %v5028, %v5256
    %v5258 = vpop.f32.mrf.mxu0
    %v5259 = vpop.f32.mrf.mxu0
    %v5260 = vpop.f32.mrf.mxu0
    %5261 = vdwg.mxu0
    %5262 = vmatprep.subr.bf16.mxu0 0
    %5263 = vmatpush1.bf16.msra.mxu0 %v5181
    %5264 = vmatprep.subr.bf16.mxu0 0
    %5265 = vmatpush1.bf16.msra.mxu0 %v5180
    %5266 = vmatprep.subr.bf16.mxu0 0
    %5267 = vmatpush1.bf16.msra.mxu0 %v5179
    %5268 = vmatprep.subr.bf16.mxu0 0
    %5269 = vmatpush1.bf16.msra.mxu0 %v5178
    %5270 = vmatprep.subr.bf16.mxu0 0
    %5271 = vmatpush1.bf16.msra.mxu0 %v5177
    %5272 = vmatprep.subr.bf16.mxu0 0
    %5273 = vmatpush1.bf16.msra.mxu0 %v5176
    %5274 = vmatprep.subr.bf16.mxu0 0
    %5275 = vmatpush1.bf16.msra.mxu0 %v5175
    %5276 = vmatprep.subr.bf16.mxu0 0
    %5277 = vmatpush1.bf16.msra.mxu0 %v5174
    %5278 = vmatprep.subr.bf16.mxu0 0
    %5279 = vmatpush2.bf16.msra.mxu0 %v5189
    %5280 = vmatprep.subr.bf16.mxu0 0
    %5281 = vmatpush2.bf16.msra.mxu0 %v5188
    %5282 = vmatprep.subr.bf16.mxu0 0
    %5283 = vmatpush2.bf16.msra.mxu0 %v5187
    %5284 = vmatprep.subr.bf16.mxu0 0
    %5285 = vmatpush2.bf16.msra.mxu0 %v5186
    %5286 = vmatprep.subr.bf16.mxu0 0
    %5287 = vmatpush2.bf16.msra.mxu0 %v5185
    %5288 = vmatprep.subr.bf16.mxu0 0
    %5289 = vmatpush2.bf16.msra.mxu0 %v5184
    %5290 = vmatprep.subr.bf16.mxu0 0
    %5291 = vmatpush2.bf16.msra.mxu0 %v5183
    %5292 = vmatprep.subr.bf16.mxu0 0
    %5293 = vmatpush2.bf16.msra.mxu0 %v5182
    %5294 = vmatprep.mubr.bf16.mxu0 %v4958
    %5295 = vmatmul.mubr.bf16.gmra.mxu0 %v4957
    %v5296 = vpop.f32.mrf.mxu0
    %v5297 = vadd.f32 %v5257, %v5296
    %v5298 = vpop.f32.mrf.mxu0
    %v5299 = vpop.f32.mrf.mxu0
    %v5300 = vpop.f32.mrf.mxu0
    %5301 = vdwg.mxu0
    %v5302 = vsub.f32 0.0, %v5297
    %v5303 = vmul.f32 %v5302, 1.442695
    %v5304 = vpow.pop %v5303
    %v5305 = vadd.f32 %v5304, 1.0
    %v5306 = vrcp.pop %v5305
    %v5307 = vmax.f32 %v5306, 0.0
    %v5308 = vmin.f32 %v5307, 1.0
    %5309 = vst [vmem:[#allocation16] sm:$0x3] %v5308
    // Predicated region
    $region70: #{demonstrative_forward.1} parent=1 // pred_check
      _
    $region71: #{demonstrative_forward.1} parent=1 // pred_check_branch
      %5311 = sbr.rel (0) target = $region73
    $region72: #{demonstrative_forward.1} parent=1 // pred_region
      %s5313 = ssub.s32 32, 32
      %5314 = vsyncadd [#allocation4], %s5313
      %s5316 = sshll.u32 [#allocation16], 4
      %s5317 = int_to_ptr.vmem [resolvable:$true] %s5316
      %5319 = dma.vmem_to_hbm [thread:$0]  %s5317, 32, %s9, [#allocation4]
    $region73: #{demonstrative_forward.1} parent=1 // pred_fallthru
      _
    // Predicated region
    $region74: #{demonstrative_forward.1} parent=1 // pred_check
      _
    $region75: #{demonstrative_forward.1} parent=1 // pred_check_branch
      %5321 = sbr.rel (0) target = $region77
    $region76: #{demonstrative_forward.1} parent=1 // pred_region
      %5322 = dma.done [#allocation4], 32
    $region77: #{demonstrative_forward.1} parent=1 // pred_fallthru
      _
    %5323 = vsyncpa [#allocation3], 1
    %5324 = vsyncpa [#allocation6], 1
    %5325 = vsyncpa [#allocation9], 1
    %5326 = vsyncpa [#allocation12], 1
    %5327 = vsyncpa [#allocation15], 1
    %5328 = vsyncpa [#allocation4], 1

</llo_original>
